<compile_context>
chip_gen: v7x
topology: tpu7x:2x2x1
jax: 0.10.0
libtpu: 0.0.40
codegen_flags: <defaults>
</compile_context>

<pallas_src>
import jax
import jax.numpy as jnp
from jax.experimental import pallas as pl
from jax.experimental.pallas import tpu as pltpu

LN_EPS = 1e-5
BN_EPS = 1e-5
LRELU_SLOPE = 0.2


# ----------------------------------------------------------------------------
# helpers
# ----------------------------------------------------------------------------
def _pad128(n):
    return ((n + 127) // 128) * 128


def _round_up(n, m):
    return ((n + m - 1) // m) * m


def _pad_mat(w, rows_p, cols_p):
    w = jnp.asarray(w, jnp.float32)
    r, c = w.shape
    return jnp.pad(w, ((0, rows_p - r), (0, cols_p - c)))


def _pad_row(v, cols_p):
    v = jnp.asarray(v, jnp.float32).reshape(1, -1)
    return jnp.pad(v, ((0, 0), (0, cols_p - v.shape[1])))


# ----------------------------------------------------------------------------
# Fused forward kernel (whole network, one pallas_call, batch tile per grid step)
# ----------------------------------------------------------------------------
def _build_fused_kernel(hidden_dims, num_res_blocks):
    """hidden_dims: real (unpadded) hidden sizes, e.g. (128, 96, 64)."""
    n_stages = len(hidden_dims) - 1

    def _ln_lrelu(y, g, beta, d_real):
        # Padded lanes of y are exactly 0 (zero-padded weights/bias), so full-width
        # sums equal sums over the real lanes; divide by the true feature count.
        inv_d = 1.0 / float(d_real)
        mu = jnp.sum(y, axis=-1, keepdims=True) * inv_d
        ms = jnp.sum(y * y, axis=-1, keepdims=True) * inv_d
        var = jnp.maximum(ms - mu * mu, 0.0)
        yn = (y - mu) * jax.lax.rsqrt(var + LN_EPS)
        yn = yn * g + beta          # gamma/beta are 0 in padded lanes -> lanes stay 0
        return jnp.where(yn >= 0, yn, LRELU_SLOPE * yn)

    def kernel(*refs):
        it = iter(refs)
        x_ref = next(it)
        in_w = next(it); in_b = next(it); in_g = next(it); in_be = next(it)
        stages = []
        for _ in range(n_stages):
            stages.append(tuple(next(it) for _ in range(12)))
        out_w = next(it); out_b = next(it)
        o_ref = next(it)

        # input layer: Linear -> LayerNorm -> LeakyReLU (-> Dropout == identity)
        x = jnp.dot(x_ref[...], in_w[...], preferred_element_type=jnp.float32)
        x = _ln_lrelu(x + in_b[...], in_g[...], in_be[...], hidden_dims[0])

        for s in range(n_stages):
            (dc_w, dc_b, dc_g, dc_be,
             w1s, b1s, g1s, be1s, w2s, b2s, bn_sc, bn_sh) = stages[s]
            d_real = hidden_dims[s + 1]

            # dimension change: Linear -> LayerNorm -> LeakyReLU (-> Dropout)
            x = jnp.dot(x, dc_w[...], preferred_element_type=jnp.float32)
            x = _ln_lrelu(x + dc_b[...], dc_g[...], dc_be[...], d_real)

            # residual blocks (statically unrolled; params stacked on axis 0)
            for r in range(num_res_blocks):
                h = jnp.dot(x, w1s[r], preferred_element_type=jnp.float32) + b1s[r]
                h = _ln_lrelu(h, g1s[r], be1s[r], d_real)
                # Dropout: identity (eval mode)
                h2 = jnp.dot(h, w2s[r], preferred_element_type=jnp.float32) + b2s[r]
                # BatchNorm1d (running stats) folded into per-feature scale/shift
                x = x + h2 * bn_sc[r] + bn_sh[r]

        o_ref[...] = jnp.dot(x, out_w[...],
                             preferred_element_type=jnp.float32) + out_b[...]

    return kernel


def make_forward(input_dim, output_dim, hidden_dims, num_res_blocks):
    hidden_dims = tuple(int(h) for h in hidden_dims)
    in_pad = _pad128(input_dim)
    out_pad = _pad128(output_dim)
    kernel = _build_fused_kernel(hidden_dims, num_res_blocks)

    def forward(flat_params, x):
        B = x.shape[0]
        tile_b = 256 if B >= 256 else _round_up(B, 8)
        b_pad = _round_up(B, tile_b)
        x = jnp.asarray(x, jnp.float32)
        x = jnp.pad(x, ((0, b_pad - B), (0, in_pad - x.shape[1])))

        in_specs = [pl.BlockSpec((tile_b, in_pad), lambda i: (i, 0))]
        for p in flat_params:
            in_specs.append(
                pl.BlockSpec(p.shape, lambda i, nd=p.ndim: (0,) * nd))

        out = pl.pallas_call(
            kernel,
            grid=(b_pad // tile_b,),
            in_specs=in_specs,
            out_specs=pl.BlockSpec((tile_b, out_pad), lambda i: (i, 0)),
            out_shape=jax.ShapeDtypeStruct((b_pad, out_pad), jnp.float32),
            compiler_params=pltpu.CompilerParams(
                dimension_semantics=("parallel",)),
        )(x, *flat_params)
        return {"pathways_pred": out[:B, :output_dim]}

    return jax.jit(forward)


# ----------------------------------------------------------------------------
# Raw parameter construction (mirrors the PyTorch module's default init:
# nn.Linear uniform(+-1/sqrt(fan_in)); LN/BN weight=1, bias=0; BN running
# mean=0, var=1).  Weights stored as (in_features, out_features).
# ----------------------------------------------------------------------------
def _init_linear(key, din, dout):
    k1, k2 = jax.random.split(key)
    bound = 1.0 / jnp.sqrt(float(din))
    w = jax.random.uniform(k1, (din, dout), jnp.float32, -bound, bound)
    b = jax.random.uniform(k2, (dout,), jnp.float32, -bound, bound)
    return w, b


def init_params(key, input_dim, output_dim, hidden_dims, num_residual_blocks):
    params = {}
    key, k = jax.random.split(key)
    w, b = _init_linear(k, input_dim, hidden_dims[0])
    params["input_layer"] = {
        "w": w, "b": b,
        "ln_g": jnp.ones((hidden_dims[0],), jnp.float32),
        "ln_b": jnp.zeros((hidden_dims[0],), jnp.float32),
    }
    stages = []
    for i in range(len(hidden_dims) - 1):
        din, dout = hidden_dims[i], hidden_dims[i + 1]
        key, k = jax.random.split(key)
        w, b = _init_linear(k, din, dout)
        dim_change = {
            "w": w, "b": b,
            "ln_g": jnp.ones((dout,), jnp.float32),
            "ln_b": jnp.zeros((dout,), jnp.float32),
        }
        res_blocks = []
        for _ in range(num_residual_blocks):
            key, k1 = jax.random.split(key)
            key, k2 = jax.random.split(key)
            w1, b1 = _init_linear(k1, dout, dout)
            w2, b2 = _init_linear(k2, dout, dout)
            res_blocks.append({
                "w1": w1, "b1": b1,
                "ln_g": jnp.ones((dout,), jnp.float32),
                "ln_b": jnp.zeros((dout,), jnp.float32),
                "w2": w2, "b2": b2,
                "bn_g": jnp.ones((dout,), jnp.float32),
                "bn_b": jnp.zeros((dout,), jnp.float32),
                "bn_mean": jnp.zeros((dout,), jnp.float32),
                "bn_var": jnp.ones((dout,), jnp.float32),
            })
        stages.append({"dim_change": dim_change, "res_blocks": res_blocks})
    params["stages"] = stages
    key, k = jax.random.split(key)
    w, b = _init_linear(k, hidden_dims[-1], output_dim)
    params["output"] = {"w": w, "b": b}
    return params


# ----------------------------------------------------------------------------
# One-time parameter preparation: transpose-free (already (in,out)), reshape to
# (1,F), fold BN into scale/shift, zero-pad every feature dim to 128 lanes, and
# stack residual-block params on a leading axis.  Output is a flat tuple in the
# exact order the fused kernel consumes it.
# ----------------------------------------------------------------------------
def prepare_params(raw, input_dim, output_dim, hidden_dims):
    in_pad = _pad128(input_dim)
    h_pads = [_pad128(h) for h in hidden_dims]
    out_pad = _pad128(output_dim)
    flat = []

    il = raw["input_layer"]
    flat += [_pad_mat(il["w"], in_pad, h_pads[0]),
             _pad_row(il["b"], h_pads[0]),
             _pad_row(il["ln_g"], h_pads[0]),
             _pad_row(il["ln_b"], h_pads[0])]

    for s, stage in enumerate(raw["stages"]):
        din_p, dout_p = h_pads[s], h_pads[s + 1]
        dc = stage["dim_change"]
        flat += [_pad_mat(dc["w"], din_p, dout_p),
                 _pad_row(dc["b"], dout_p),
                 _pad_row(dc["ln_g"], dout_p),
                 _pad_row(dc["ln_b"], dout_p)]
        rbs = stage["res_blocks"]
        flat.append(jnp.stack([_pad_mat(rb["w1"], dout_p, dout_p) for rb in rbs]))
        flat.append(jnp.stack([_pad_row(rb["b1"], dout_p) for rb in rbs]))
        flat.append(jnp.stack([_pad_row(rb["ln_g"], dout_p) for rb in rbs]))
        flat.append(jnp.stack([_pad_row(rb["ln_b"], dout_p) for rb in rbs]))
        flat.append(jnp.stack([_pad_mat(rb["w2"], dout_p, dout_p) for rb in rbs]))
        flat.append(jnp.stack([_pad_row(rb["b2"], dout_p) for rb in rbs]))
        scales, shifts = [], []
        for rb in rbs:
            sc = rb["bn_g"] * jax.lax.rsqrt(rb["bn_var"] + BN_EPS)
            sh = rb["bn_b"] - rb["bn_mean"] * sc
            scales.append(_pad_row(sc, dout_p))
            shifts.append(_pad_row(sh, dout_p))
        flat.append(jnp.stack(scales))
        flat.append(jnp.stack(shifts))

    o = raw["output"]
    flat += [_pad_mat(o["w"], h_pads[-1], out_pad), _pad_row(o["b"], out_pad)]
    return tuple(flat)


# ----------------------------------------------------------------------------
# Pure-JAX reference (eval-mode semantics, unpadded params)
# ----------------------------------------------------------------------------
def metabolite_fcnn_reference(params, x):
    def ln(y, g, b):
        mu = jnp.mean(y, axis=-1, keepdims=True)
        var = jnp.mean((y - mu) ** 2, axis=-1, keepdims=True)
        return (y - mu) * jax.lax.rsqrt(var + LN_EPS) * g + b

    def lrelu(y):
        return jnp.where(y >= 0, y, LRELU_SLOPE * y)

    p = params["input_layer"]
    x = lrelu(ln(x @ p["w"] + p["b"], p["ln_g"], p["ln_b"]))
    for stage in params["stages"]:
        dc = stage["dim_change"]
        x = lrelu(ln(x @ dc["w"] + dc["b"], dc["ln_g"], dc["ln_b"]))
        for rb in stage["res_blocks"]:
            h = lrelu(ln(x @ rb["w1"] + rb["b1"], rb["ln_g"], rb["ln_b"]))
            h2 = h @ rb["w2"] + rb["b2"]
            bn = (h2 - rb["bn_mean"]) * jax.lax.rsqrt(rb["bn_var"] + BN_EPS)
            bn = bn * rb["bn_g"] + rb["bn_b"]
            x = x + bn
    o = params["output"]
    return {"pathways_pred": x @ o["w"] + o["b"]}


# TODO(synk): BatchNorm running-stat updates / Dropout sampling (training mode)
# are intentionally not implemented; this kernel matches eval() semantics only.

# ----------------------------------------------------------------------------
if __name__ == "__main__":
    # Small, module-consistent shapes (x is [batch, input_dim]); non-multiples of
    # 128 are chosen on purpose to exercise the lane-padding path.
    B = 8
    INPUT_DIM = 200
    OUTPUT_DIM = 98
    HIDDEN_DIMS = [128, 96, 64]
    NUM_RES_BLOCKS = 2

    key = jax.random.PRNGKey(0)
    kx, kp = jax.random.split(key)
    x = jax.random.normal(kx, (B, INPUT_DIM), dtype=jnp.float32)

    raw_params = init_params(kp, INPUT_DIM, OUTPUT_DIM, HIDDEN_DIMS, NUM_RES_BLOCKS)
    flat_params = prepare_params(raw_params, INPUT_DIM, OUTPUT_DIM, HIDDEN_DIMS)
    forward = make_forward(INPUT_DIM, OUTPUT_DIM, HIDDEN_DIMS, NUM_RES_BLOCKS)

    out = forward(flat_params, x)
    pred = jax.block_until_ready(out["pathways_pred"])

    assert pred.shape == (B, OUTPUT_DIM), pred.shape
    assert bool(jnp.all(jnp.isfinite(pred)))

    ref = metabolite_fcnn_reference(raw_params, x)["pathways_pred"]
    max_err = float(jnp.max(jnp.abs(pred - ref)))
    assert jnp.allclose(pred, ref, rtol=2e-3, atol=2e-3), max_err

    print("KERNEL_OK")
</pallas_src>

<mosaic_0001>
module attributes {stable_mosaic.version = 11 : i64} {
  func.func @kernel(%arg0: i32, %arg1: memref<8x256xf32, #tpu.memory_space<vmem>>, %arg2: memref<256x128xf32, #tpu.memory_space<vmem>>, %arg3: memref<1x128xf32, #tpu.memory_space<vmem>>, %arg4: memref<1x128xf32, #tpu.memory_space<vmem>>, %arg5: memref<1x128xf32, #tpu.memory_space<vmem>>, %arg6: memref<128x128xf32, #tpu.memory_space<vmem>>, %arg7: memref<1x128xf32, #tpu.memory_space<vmem>>, %arg8: memref<1x128xf32, #tpu.memory_space<vmem>>, %arg9: memref<1x128xf32, #tpu.memory_space<vmem>>, %arg10: memref<2x128x128xf32, #tpu.memory_space<vmem>>, %arg11: memref<2x1x128xf32, #tpu.memory_space<vmem>>, %arg12: memref<2x1x128xf32, #tpu.memory_space<vmem>>, %arg13: memref<2x1x128xf32, #tpu.memory_space<vmem>>, %arg14: memref<2x128x128xf32, #tpu.memory_space<vmem>>, %arg15: memref<2x1x128xf32, #tpu.memory_space<vmem>>, %arg16: memref<2x1x128xf32, #tpu.memory_space<vmem>>, %arg17: memref<2x1x128xf32, #tpu.memory_space<vmem>>, %arg18: memref<128x128xf32, #tpu.memory_space<vmem>>, %arg19: memref<1x128xf32, #tpu.memory_space<vmem>>, %arg20: memref<1x128xf32, #tpu.memory_space<vmem>>, %arg21: memref<1x128xf32, #tpu.memory_space<vmem>>, %arg22: memref<2x128x128xf32, #tpu.memory_space<vmem>>, %arg23: memref<2x1x128xf32, #tpu.memory_space<vmem>>, %arg24: memref<2x1x128xf32, #tpu.memory_space<vmem>>, %arg25: memref<2x1x128xf32, #tpu.memory_space<vmem>>, %arg26: memref<2x128x128xf32, #tpu.memory_space<vmem>>, %arg27: memref<2x1x128xf32, #tpu.memory_space<vmem>>, %arg28: memref<2x1x128xf32, #tpu.memory_space<vmem>>, %arg29: memref<2x1x128xf32, #tpu.memory_space<vmem>>, %arg30: memref<128x128xf32, #tpu.memory_space<vmem>>, %arg31: memref<1x128xf32, #tpu.memory_space<vmem>>, %arg32: memref<8x128xf32, #tpu.memory_space<vmem>>) attributes {dimension_semantics = [#tpu.dimension_semantics<parallel>], iteration_bounds = array<i64: 1>, scalar_prefetch = 0 : i64, scratch_operands = 0 : i64, tpu.core_type = #tpu.core_type<tc>, window_params = [{transform_indices = @transform_0, window_bounds = array<i64: 8, 256>}, {pipeline_mode = #tpu.pipeline_mode<synchronous>, transform_indices = @transform_1, window_bounds = array<i64: 256, 128>}, {pipeline_mode = #tpu.pipeline_mode<synchronous>, transform_indices = @transform_2, window_bounds = array<i64: 1, 128>}, {pipeline_mode = #tpu.pipeline_mode<synchronous>, transform_indices = @transform_3, window_bounds = array<i64: 1, 128>}, {pipeline_mode = #tpu.pipeline_mode<synchronous>, transform_indices = @transform_4, window_bounds = array<i64: 1, 128>}, {pipeline_mode = #tpu.pipeline_mode<synchronous>, transform_indices = @transform_5, window_bounds = array<i64: 128, 128>}, {pipeline_mode = #tpu.pipeline_mode<synchronous>, transform_indices = @transform_6, window_bounds = array<i64: 1, 128>}, {pipeline_mode = #tpu.pipeline_mode<synchronous>, transform_indices = @transform_7, window_bounds = array<i64: 1, 128>}, {pipeline_mode = #tpu.pipeline_mode<synchronous>, transform_indices = @transform_8, window_bounds = array<i64: 1, 128>}, {pipeline_mode = #tpu.pipeline_mode<synchronous>, transform_indices = @transform_9, window_bounds = array<i64: 2, 128, 128>}, {pipeline_mode = #tpu.pipeline_mode<synchronous>, transform_indices = @transform_10, window_bounds = array<i64: 2, 1, 128>}, {pipeline_mode = #tpu.pipeline_mode<synchronous>, transform_indices = @transform_11, window_bounds = array<i64: 2, 1, 128>}, {pipeline_mode = #tpu.pipeline_mode<synchronous>, transform_indices = @transform_12, window_bounds = array<i64: 2, 1, 128>}, {pipeline_mode = #tpu.pipeline_mode<synchronous>, transform_indices = @transform_13, window_bounds = array<i64: 2, 128, 128>}, {pipeline_mode = #tpu.pipeline_mode<synchronous>, transform_indices = @transform_14, window_bounds = array<i64: 2, 1, 128>}, {pipeline_mode = #tpu.pipeline_mode<synchronous>, transform_indices = @transform_15, window_bounds = array<i64: 2, 1, 128>}, {pipeline_mode = #tpu.pipeline_mode<synchronous>, transform_indices = @transform_16, window_bounds = array<i64: 2, 1, 128>}, {pipeline_mode = #tpu.pipeline_mode<synchronous>, transform_indices = @transform_17, window_bounds = array<i64: 128, 128>}, {pipeline_mode = #tpu.pipeline_mode<synchronous>, transform_indices = @transform_18, window_bounds = array<i64: 1, 128>}, {pipeline_mode = #tpu.pipeline_mode<synchronous>, transform_indices = @transform_19, window_bounds = array<i64: 1, 128>}, {pipeline_mode = #tpu.pipeline_mode<synchronous>, transform_indices = @transform_20, window_bounds = array<i64: 1, 128>}, {pipeline_mode = #tpu.pipeline_mode<synchronous>, transform_indices = @transform_21, window_bounds = array<i64: 2, 128, 128>}, {pipeline_mode = #tpu.pipeline_mode<synchronous>, transform_indices = @transform_22, window_bounds = array<i64: 2, 1, 128>}, {pipeline_mode = #tpu.pipeline_mode<synchronous>, transform_indices = @transform_23, window_bounds = array<i64: 2, 1, 128>}, {pipeline_mode = #tpu.pipeline_mode<synchronous>, transform_indices = @transform_24, window_bounds = array<i64: 2, 1, 128>}, {pipeline_mode = #tpu.pipeline_mode<synchronous>, transform_indices = @transform_25, window_bounds = array<i64: 2, 128, 128>}, {pipeline_mode = #tpu.pipeline_mode<synchronous>, transform_indices = @transform_26, window_bounds = array<i64: 2, 1, 128>}, {pipeline_mode = #tpu.pipeline_mode<synchronous>, transform_indices = @transform_27, window_bounds = array<i64: 2, 1, 128>}, {pipeline_mode = #tpu.pipeline_mode<synchronous>, transform_indices = @transform_28, window_bounds = array<i64: 2, 1, 128>}, {pipeline_mode = #tpu.pipeline_mode<synchronous>, transform_indices = @transform_29, window_bounds = array<i64: 128, 128>}, {pipeline_mode = #tpu.pipeline_mode<synchronous>, transform_indices = @transform_30, window_bounds = array<i64: 1, 128>}, {transform_indices = @transform_31, window_bounds = array<i64: 8, 128>}]} {
    %c0 = arith.constant 0 : index
    %c0_0 = arith.constant 0 : index
    %0 = vector.load %arg1[%c0, %c0_0] : memref<8x256xf32, #tpu.memory_space<vmem>>, vector<8x256xf32>
    %c0_1 = arith.constant 0 : index
    %c0_2 = arith.constant 0 : index
    %1 = vector.load %arg2[%c0_1, %c0_2] : memref<256x128xf32, #tpu.memory_space<vmem>>, vector<256x128xf32>
    %cst = arith.constant dense<0.000000e+00> : vector<8x128xf32>
    %2 = tpu.matmul %0, %1, %cst {dimension_numbers = #tpu.dot_dimension_numbers<[1], [0], [0], [1], [0, 0, 1, 1], [], []>} : vector<8x256xf32>, vector<256x128xf32>, vector<8x128xf32> -> vector<8x128xf32>
    %c0_3 = arith.constant 0 : index
    %c0_4 = arith.constant 0 : index
    %3 = vector.load %arg3[%c0_3, %c0_4] : memref<1x128xf32, #tpu.memory_space<vmem>>, vector<1x128xf32>
    %4 = vector.broadcast %3 : vector<1x128xf32> to vector<8x128xf32>
    %5 = arith.addf %2, %4 : vector<8x128xf32>
    %c0_5 = arith.constant 0 : index
    %c0_6 = arith.constant 0 : index
    %6 = vector.load %arg4[%c0_5, %c0_6] : memref<1x128xf32, #tpu.memory_space<vmem>>, vector<1x128xf32>
    %c0_7 = arith.constant 0 : index
    %c0_8 = arith.constant 0 : index
    %7 = vector.load %arg5[%c0_7, %c0_8] : memref<1x128xf32, #tpu.memory_space<vmem>>, vector<1x128xf32>
    %cst_9 = arith.constant dense<0.000000e+00> : vector<8xf32>
    %8 = vector.multi_reduction <add>, %5, %cst_9 [1] : vector<8x128xf32> to vector<8xf32>
    %9 = vector.shape_cast %8 : vector<8xf32> to vector<8x1xf32>
    %cst_10 = arith.constant 7.812500e-03 : f32
    %10 = vector.broadcast %cst_10 : f32 to vector<8x1xf32>
    %11 = arith.mulf %9, %10 : vector<8x1xf32>
    %12 = arith.mulf %5, %5 : vector<8x128xf32>
    %cst_11 = arith.constant dense<0.000000e+00> : vector<8xf32>
    %13 = vector.multi_reduction <add>, %12, %cst_11 [1] : vector<8x128xf32> to vector<8xf32>
    %14 = vector.shape_cast %13 : vector<8xf32> to vector<8x1xf32>
    %cst_12 = arith.constant 7.812500e-03 : f32
    %15 = vector.broadcast %cst_12 : f32 to vector<8x1xf32>
    %16 = arith.mulf %14, %15 : vector<8x1xf32>
    %17 = arith.mulf %11, %11 : vector<8x1xf32>
    %18 = arith.subf %16, %17 : vector<8x1xf32>
    %cst_13 = arith.constant 0.000000e+00 : f32
    %19 = vector.broadcast %cst_13 : f32 to vector<8x1xf32>
    %20 = arith.maximumf %18, %19 : vector<8x1xf32>
    %21 = vector.broadcast %11 : vector<8x1xf32> to vector<8x128xf32>
    %22 = arith.subf %5, %21 : vector<8x128xf32>
    %cst_14 = arith.constant 9.99999974E-6 : f32
    %23 = vector.broadcast %cst_14 : f32 to vector<8x1xf32>
    %24 = arith.addf %20, %23 : vector<8x1xf32>
    %25 = math.rsqrt %24 : vector<8x1xf32>
    %26 = vector.broadcast %25 : vector<8x1xf32> to vector<8x128xf32>
    %27 = arith.mulf %22, %26 : vector<8x128xf32>
    %28 = vector.broadcast %6 : vector<1x128xf32> to vector<8x128xf32>
    %29 = arith.mulf %27, %28 : vector<8x128xf32>
    %30 = vector.broadcast %7 : vector<1x128xf32> to vector<8x128xf32>
    %31 = arith.addf %29, %30 : vector<8x128xf32>
    %cst_15 = arith.constant 0.000000e+00 : f32
    %32 = vector.broadcast %cst_15 : f32 to vector<8x128xf32>
    %33 = arith.cmpf oge, %31, %32 : vector<8x128xf32>
    %cst_16 = arith.constant 2.000000e-01 : f32
    %34 = vector.broadcast %cst_16 : f32 to vector<8x128xf32>
    %35 = arith.mulf %34, %31 : vector<8x128xf32>
    %36 = arith.select %33, %31, %35 : vector<8x128xi1>, vector<8x128xf32>
    %c0_17 = arith.constant 0 : index
    %c0_18 = arith.constant 0 : index
    %37 = vector.load %arg6[%c0_17, %c0_18] : memref<128x128xf32, #tpu.memory_space<vmem>>, vector<128x128xf32>
    %cst_19 = arith.constant dense<0.000000e+00> : vector<8x128xf32>
    %38 = tpu.matmul %36, %37, %cst_19 {dimension_numbers = #tpu.dot_dimension_numbers<[1], [0], [0], [1], [0, 0, 1, 1], [], []>} : vector<8x128xf32>, vector<128x128xf32>, vector<8x128xf32> -> vector<8x128xf32>
    %c0_20 = arith.constant 0 : index
    %c0_21 = arith.constant 0 : index
    %39 = vector.load %arg7[%c0_20, %c0_21] : memref<1x128xf32, #tpu.memory_space<vmem>>, vector<1x128xf32>
    %40 = vector.broadcast %39 : vector<1x128xf32> to vector<8x128xf32>
    %41 = arith.addf %38, %40 : vector<8x128xf32>
    %c0_22 = arith.constant 0 : index
    %c0_23 = arith.constant 0 : index
    %42 = vector.load %arg8[%c0_22, %c0_23] : memref<1x128xf32, #tpu.memory_space<vmem>>, vector<1x128xf32>
    %c0_24 = arith.constant 0 : index
    %c0_25 = arith.constant 0 : index
    %43 = vector.load %arg9[%c0_24, %c0_25] : memref<1x128xf32, #tpu.memory_space<vmem>>, vector<1x128xf32>
    %cst_26 = arith.constant dense<0.000000e+00> : vector<8xf32>
    %44 = vector.multi_reduction <add>, %41, %cst_26 [1] : vector<8x128xf32> to vector<8xf32>
    %45 = vector.shape_cast %44 : vector<8xf32> to vector<8x1xf32>
    %cst_27 = arith.constant 0.010416667 : f32
    %46 = vector.broadcast %cst_27 : f32 to vector<8x1xf32>
    %47 = arith.mulf %45, %46 : vector<8x1xf32>
    %48 = arith.mulf %41, %41 : vector<8x128xf32>
    %cst_28 = arith.constant dense<0.000000e+00> : vector<8xf32>
    %49 = vector.multi_reduction <add>, %48, %cst_28 [1] : vector<8x128xf32> to vector<8xf32>
    %50 = vector.shape_cast %49 : vector<8xf32> to vector<8x1xf32>
    %cst_29 = arith.constant 0.010416667 : f32
    %51 = vector.broadcast %cst_29 : f32 to vector<8x1xf32>
    %52 = arith.mulf %50, %51 : vector<8x1xf32>
    %53 = arith.mulf %47, %47 : vector<8x1xf32>
    %54 = arith.subf %52, %53 : vector<8x1xf32>
    %cst_30 = arith.constant 0.000000e+00 : f32
    %55 = vector.broadcast %cst_30 : f32 to vector<8x1xf32>
    %56 = arith.maximumf %54, %55 : vector<8x1xf32>
    %57 = vector.broadcast %47 : vector<8x1xf32> to vector<8x128xf32>
    %58 = arith.subf %41, %57 : vector<8x128xf32>
    %cst_31 = arith.constant 9.99999974E-6 : f32
    %59 = vector.broadcast %cst_31 : f32 to vector<8x1xf32>
    %60 = arith.addf %56, %59 : vector<8x1xf32>
    %61 = math.rsqrt %60 : vector<8x1xf32>
    %62 = vector.broadcast %61 : vector<8x1xf32> to vector<8x128xf32>
    %63 = arith.mulf %58, %62 : vector<8x128xf32>
    %64 = vector.broadcast %42 : vector<1x128xf32> to vector<8x128xf32>
    %65 = arith.mulf %63, %64 : vector<8x128xf32>
    %66 = vector.broadcast %43 : vector<1x128xf32> to vector<8x128xf32>
    %67 = arith.addf %65, %66 : vector<8x128xf32>
    %cst_32 = arith.constant 0.000000e+00 : f32
    %68 = vector.broadcast %cst_32 : f32 to vector<8x128xf32>
    %69 = arith.cmpf oge, %67, %68 : vector<8x128xf32>
    %cst_33 = arith.constant 2.000000e-01 : f32
    %70 = vector.broadcast %cst_33 : f32 to vector<8x128xf32>
    %71 = arith.mulf %70, %67 : vector<8x128xf32>
    %72 = arith.select %69, %67, %71 : vector<8x128xi1>, vector<8x128xf32>
    %c0_34 = arith.constant 0 : index
    %c0_35 = arith.constant 0 : index
    %c0_36 = arith.constant 0 : index
    %73 = vector.load %arg10[%c0_34, %c0_35, %c0_36] : memref<2x128x128xf32, #tpu.memory_space<vmem>>, vector<1x128x128xf32>
    %74 = vector.shape_cast %73 : vector<1x128x128xf32> to vector<128x128xf32>
    %cst_37 = arith.constant dense<0.000000e+00> : vector<8x128xf32>
    %75 = tpu.matmul %72, %74, %cst_37 {dimension_numbers = #tpu.dot_dimension_numbers<[1], [0], [0], [1], [0, 0, 1, 1], [], []>} : vector<8x128xf32>, vector<128x128xf32>, vector<8x128xf32> -> vector<8x128xf32>
    %c0_38 = arith.constant 0 : index
    %c0_39 = arith.constant 0 : index
    %c0_40 = arith.constant 0 : index
    %76 = vector.load %arg11[%c0_38, %c0_39, %c0_40] : memref<2x1x128xf32, #tpu.memory_space<vmem>>, vector<1x1x128xf32>
    %77 = vector.shape_cast %76 : vector<1x1x128xf32> to vector<1x128xf32>
    %78 = vector.broadcast %77 : vector<1x128xf32> to vector<8x128xf32>
    %79 = arith.addf %75, %78 : vector<8x128xf32>
    %c0_41 = arith.constant 0 : index
    %c0_42 = arith.constant 0 : index
    %c0_43 = arith.constant 0 : index
    %80 = vector.load %arg12[%c0_41, %c0_42, %c0_43] : memref<2x1x128xf32, #tpu.memory_space<vmem>>, vector<1x1x128xf32>
    %81 = vector.shape_cast %80 : vector<1x1x128xf32> to vector<1x128xf32>
    %c0_44 = arith.constant 0 : index
    %c0_45 = arith.constant 0 : index
    %c0_46 = arith.constant 0 : index
    %82 = vector.load %arg13[%c0_44, %c0_45, %c0_46] : memref<2x1x128xf32, #tpu.memory_space<vmem>>, vector<1x1x128xf32>
    %83 = vector.shape_cast %82 : vector<1x1x128xf32> to vector<1x128xf32>
    %cst_47 = arith.constant dense<0.000000e+00> : vector<8xf32>
    %84 = vector.multi_reduction <add>, %79, %cst_47 [1] : vector<8x128xf32> to vector<8xf32>
    %85 = vector.shape_cast %84 : vector<8xf32> to vector<8x1xf32>
    %cst_48 = arith.constant 0.010416667 : f32
    %86 = vector.broadcast %cst_48 : f32 to vector<8x1xf32>
    %87 = arith.mulf %85, %86 : vector<8x1xf32>
    %88 = arith.mulf %79, %79 : vector<8x128xf32>
    %cst_49 = arith.constant dense<0.000000e+00> : vector<8xf32>
    %89 = vector.multi_reduction <add>, %88, %cst_49 [1] : vector<8x128xf32> to vector<8xf32>
    %90 = vector.shape_cast %89 : vector<8xf32> to vector<8x1xf32>
    %cst_50 = arith.constant 0.010416667 : f32
    %91 = vector.broadcast %cst_50 : f32 to vector<8x1xf32>
    %92 = arith.mulf %90, %91 : vector<8x1xf32>
    %93 = arith.mulf %87, %87 : vector<8x1xf32>
    %94 = arith.subf %92, %93 : vector<8x1xf32>
    %cst_51 = arith.constant 0.000000e+00 : f32
    %95 = vector.broadcast %cst_51 : f32 to vector<8x1xf32>
    %96 = arith.maximumf %94, %95 : vector<8x1xf32>
    %97 = vector.broadcast %87 : vector<8x1xf32> to vector<8x128xf32>
    %98 = arith.subf %79, %97 : vector<8x128xf32>
    %cst_52 = arith.constant 9.99999974E-6 : f32
    %99 = vector.broadcast %cst_52 : f32 to vector<8x1xf32>
    %100 = arith.addf %96, %99 : vector<8x1xf32>
    %101 = math.rsqrt %100 : vector<8x1xf32>
    %102 = vector.broadcast %101 : vector<8x1xf32> to vector<8x128xf32>
    %103 = arith.mulf %98, %102 : vector<8x128xf32>
    %104 = vector.broadcast %81 : vector<1x128xf32> to vector<8x128xf32>
    %105 = arith.mulf %103, %104 : vector<8x128xf32>
    %106 = vector.broadcast %83 : vector<1x128xf32> to vector<8x128xf32>
    %107 = arith.addf %105, %106 : vector<8x128xf32>
    %cst_53 = arith.constant 0.000000e+00 : f32
    %108 = vector.broadcast %cst_53 : f32 to vector<8x128xf32>
    %109 = arith.cmpf oge, %107, %108 : vector<8x128xf32>
    %cst_54 = arith.constant 2.000000e-01 : f32
    %110 = vector.broadcast %cst_54 : f32 to vector<8x128xf32>
    %111 = arith.mulf %110, %107 : vector<8x128xf32>
    %112 = arith.select %109, %107, %111 : vector<8x128xi1>, vector<8x128xf32>
    %c0_55 = arith.constant 0 : index
    %c0_56 = arith.constant 0 : index
    %c0_57 = arith.constant 0 : index
    %113 = vector.load %arg14[%c0_55, %c0_56, %c0_57] : memref<2x128x128xf32, #tpu.memory_space<vmem>>, vector<1x128x128xf32>
    %114 = vector.shape_cast %113 : vector<1x128x128xf32> to vector<128x128xf32>
    %cst_58 = arith.constant dense<0.000000e+00> : vector<8x128xf32>
    %115 = tpu.matmul %112, %114, %cst_58 {dimension_numbers = #tpu.dot_dimension_numbers<[1], [0], [0], [1], [0, 0, 1, 1], [], []>} : vector<8x128xf32>, vector<128x128xf32>, vector<8x128xf32> -> vector<8x128xf32>
    %c0_59 = arith.constant 0 : index
    %c0_60 = arith.constant 0 : index
    %c0_61 = arith.constant 0 : index
    %116 = vector.load %arg15[%c0_59, %c0_60, %c0_61] : memref<2x1x128xf32, #tpu.memory_space<vmem>>, vector<1x1x128xf32>
    %117 = vector.shape_cast %116 : vector<1x1x128xf32> to vector<1x128xf32>
    %118 = vector.broadcast %117 : vector<1x128xf32> to vector<8x128xf32>
    %119 = arith.addf %115, %118 : vector<8x128xf32>
    %c0_62 = arith.constant 0 : index
    %c0_63 = arith.constant 0 : index
    %c0_64 = arith.constant 0 : index
    %120 = vector.load %arg16[%c0_62, %c0_63, %c0_64] : memref<2x1x128xf32, #tpu.memory_space<vmem>>, vector<1x1x128xf32>
    %121 = vector.shape_cast %120 : vector<1x1x128xf32> to vector<1x128xf32>
    %122 = vector.broadcast %121 : vector<1x128xf32> to vector<8x128xf32>
    %123 = arith.mulf %119, %122 : vector<8x128xf32>
    %124 = arith.addf %72, %123 : vector<8x128xf32>
    %c0_65 = arith.constant 0 : index
    %c0_66 = arith.constant 0 : index
    %c0_67 = arith.constant 0 : index
    %125 = vector.load %arg17[%c0_65, %c0_66, %c0_67] : memref<2x1x128xf32, #tpu.memory_space<vmem>>, vector<1x1x128xf32>
    %126 = vector.shape_cast %125 : vector<1x1x128xf32> to vector<1x128xf32>
    %127 = vector.broadcast %126 : vector<1x128xf32> to vector<8x128xf32>
    %128 = arith.addf %124, %127 : vector<8x128xf32>
    %c1 = arith.constant 1 : index
    %c0_68 = arith.constant 0 : index
    %c0_69 = arith.constant 0 : index
    %129 = vector.load %arg10[%c1, %c0_68, %c0_69] : memref<2x128x128xf32, #tpu.memory_space<vmem>>, vector<1x128x128xf32>
    %130 = vector.shape_cast %129 : vector<1x128x128xf32> to vector<128x128xf32>
    %cst_70 = arith.constant dense<0.000000e+00> : vector<8x128xf32>
    %131 = tpu.matmul %128, %130, %cst_70 {dimension_numbers = #tpu.dot_dimension_numbers<[1], [0], [0], [1], [0, 0, 1, 1], [], []>} : vector<8x128xf32>, vector<128x128xf32>, vector<8x128xf32> -> vector<8x128xf32>
    %c1_71 = arith.constant 1 : index
    %c0_72 = arith.constant 0 : index
    %c0_73 = arith.constant 0 : index
    %132 = vector.load %arg11[%c1_71, %c0_72, %c0_73] : memref<2x1x128xf32, #tpu.memory_space<vmem>>, vector<1x1x128xf32>
    %133 = vector.shape_cast %132 : vector<1x1x128xf32> to vector<1x128xf32>
    %134 = vector.broadcast %133 : vector<1x128xf32> to vector<8x128xf32>
    %135 = arith.addf %131, %134 : vector<8x128xf32>
    %c1_74 = arith.constant 1 : index
    %c0_75 = arith.constant 0 : index
    %c0_76 = arith.constant 0 : index
    %136 = vector.load %arg12[%c1_74, %c0_75, %c0_76] : memref<2x1x128xf32, #tpu.memory_space<vmem>>, vector<1x1x128xf32>
    %137 = vector.shape_cast %136 : vector<1x1x128xf32> to vector<1x128xf32>
    %c1_77 = arith.constant 1 : index
    %c0_78 = arith.constant 0 : index
    %c0_79 = arith.constant 0 : index
    %138 = vector.load %arg13[%c1_77, %c0_78, %c0_79] : memref<2x1x128xf32, #tpu.memory_space<vmem>>, vector<1x1x128xf32>
    %139 = vector.shape_cast %138 : vector<1x1x128xf32> to vector<1x128xf32>
    %cst_80 = arith.constant dense<0.000000e+00> : vector<8xf32>
    %140 = vector.multi_reduction <add>, %135, %cst_80 [1] : vector<8x128xf32> to vector<8xf32>
    %141 = vector.shape_cast %140 : vector<8xf32> to vector<8x1xf32>
    %cst_81 = arith.constant 0.010416667 : f32
    %142 = vector.broadcast %cst_81 : f32 to vector<8x1xf32>
    %143 = arith.mulf %141, %142 : vector<8x1xf32>
    %144 = arith.mulf %135, %135 : vector<8x128xf32>
    %cst_82 = arith.constant dense<0.000000e+00> : vector<8xf32>
    %145 = vector.multi_reduction <add>, %144, %cst_82 [1] : vector<8x128xf32> to vector<8xf32>
    %146 = vector.shape_cast %145 : vector<8xf32> to vector<8x1xf32>
    %cst_83 = arith.constant 0.010416667 : f32
    %147 = vector.broadcast %cst_83 : f32 to vector<8x1xf32>
    %148 = arith.mulf %146, %147 : vector<8x1xf32>
    %149 = arith.mulf %143, %143 : vector<8x1xf32>
    %150 = arith.subf %148, %149 : vector<8x1xf32>
    %cst_84 = arith.constant 0.000000e+00 : f32
    %151 = vector.broadcast %cst_84 : f32 to vector<8x1xf32>
    %152 = arith.maximumf %150, %151 : vector<8x1xf32>
    %153 = vector.broadcast %143 : vector<8x1xf32> to vector<8x128xf32>
    %154 = arith.subf %135, %153 : vector<8x128xf32>
    %cst_85 = arith.constant 9.99999974E-6 : f32
    %155 = vector.broadcast %cst_85 : f32 to vector<8x1xf32>
    %156 = arith.addf %152, %155 : vector<8x1xf32>
    %157 = math.rsqrt %156 : vector<8x1xf32>
    %158 = vector.broadcast %157 : vector<8x1xf32> to vector<8x128xf32>
    %159 = arith.mulf %154, %158 : vector<8x128xf32>
    %160 = vector.broadcast %137 : vector<1x128xf32> to vector<8x128xf32>
    %161 = arith.mulf %159, %160 : vector<8x128xf32>
    %162 = vector.broadcast %139 : vector<1x128xf32> to vector<8x128xf32>
    %163 = arith.addf %161, %162 : vector<8x128xf32>
    %cst_86 = arith.constant 0.000000e+00 : f32
    %164 = vector.broadcast %cst_86 : f32 to vector<8x128xf32>
    %165 = arith.cmpf oge, %163, %164 : vector<8x128xf32>
    %cst_87 = arith.constant 2.000000e-01 : f32
    %166 = vector.broadcast %cst_87 : f32 to vector<8x128xf32>
    %167 = arith.mulf %166, %163 : vector<8x128xf32>
    %168 = arith.select %165, %163, %167 : vector<8x128xi1>, vector<8x128xf32>
    %c1_88 = arith.constant 1 : index
    %c0_89 = arith.constant 0 : index
    %c0_90 = arith.constant 0 : index
    %169 = vector.load %arg14[%c1_88, %c0_89, %c0_90] : memref<2x128x128xf32, #tpu.memory_space<vmem>>, vector<1x128x128xf32>
    %170 = vector.shape_cast %169 : vector<1x128x128xf32> to vector<128x128xf32>
    %cst_91 = arith.constant dense<0.000000e+00> : vector<8x128xf32>
    %171 = tpu.matmul %168, %170, %cst_91 {dimension_numbers = #tpu.dot_dimension_numbers<[1], [0], [0], [1], [0, 0, 1, 1], [], []>} : vector<8x128xf32>, vector<128x128xf32>, vector<8x128xf32> -> vector<8x128xf32>
    %c1_92 = arith.constant 1 : index
    %c0_93 = arith.constant 0 : index
    %c0_94 = arith.constant 0 : index
    %172 = vector.load %arg15[%c1_92, %c0_93, %c0_94] : memref<2x1x128xf32, #tpu.memory_space<vmem>>, vector<1x1x128xf32>
    %173 = vector.shape_cast %172 : vector<1x1x128xf32> to vector<1x128xf32>
    %174 = vector.broadcast %173 : vector<1x128xf32> to vector<8x128xf32>
    %175 = arith.addf %171, %174 : vector<8x128xf32>
    %c1_95 = arith.constant 1 : index
    %c0_96 = arith.constant 0 : index
    %c0_97 = arith.constant 0 : index
    %176 = vector.load %arg16[%c1_95, %c0_96, %c0_97] : memref<2x1x128xf32, #tpu.memory_space<vmem>>, vector<1x1x128xf32>
    %177 = vector.shape_cast %176 : vector<1x1x128xf32> to vector<1x128xf32>
    %178 = vector.broadcast %177 : vector<1x128xf32> to vector<8x128xf32>
    %179 = arith.mulf %175, %178 : vector<8x128xf32>
    %180 = arith.addf %128, %179 : vector<8x128xf32>
    %c1_98 = arith.constant 1 : index
    %c0_99 = arith.constant 0 : index
    %c0_100 = arith.constant 0 : index
    %181 = vector.load %arg17[%c1_98, %c0_99, %c0_100] : memref<2x1x128xf32, #tpu.memory_space<vmem>>, vector<1x1x128xf32>
    %182 = vector.shape_cast %181 : vector<1x1x128xf32> to vector<1x128xf32>
    %183 = vector.broadcast %182 : vector<1x128xf32> to vector<8x128xf32>
    %184 = arith.addf %180, %183 : vector<8x128xf32>
    %c0_101 = arith.constant 0 : index
    %c0_102 = arith.constant 0 : index
    %185 = vector.load %arg18[%c0_101, %c0_102] : memref<128x128xf32, #tpu.memory_space<vmem>>, vector<128x128xf32>
    %cst_103 = arith.constant dense<0.000000e+00> : vector<8x128xf32>
    %186 = tpu.matmul %184, %185, %cst_103 {dimension_numbers = #tpu.dot_dimension_numbers<[1], [0], [0], [1], [0, 0, 1, 1], [], []>} : vector<8x128xf32>, vector<128x128xf32>, vector<8x128xf32> -> vector<8x128xf32>
    %c0_104 = arith.constant 0 : index
    %c0_105 = arith.constant 0 : index
    %187 = vector.load %arg19[%c0_104, %c0_105] : memref<1x128xf32, #tpu.memory_space<vmem>>, vector<1x128xf32>
    %188 = vector.broadcast %187 : vector<1x128xf32> to vector<8x128xf32>
    %189 = arith.addf %186, %188 : vector<8x128xf32>
    %c0_106 = arith.constant 0 : index
    %c0_107 = arith.constant 0 : index
    %190 = vector.load %arg20[%c0_106, %c0_107] : memref<1x128xf32, #tpu.memory_space<vmem>>, vector<1x128xf32>
    %c0_108 = arith.constant 0 : index
    %c0_109 = arith.constant 0 : index
    %191 = vector.load %arg21[%c0_108, %c0_109] : memref<1x128xf32, #tpu.memory_space<vmem>>, vector<1x128xf32>
    %cst_110 = arith.constant dense<0.000000e+00> : vector<8xf32>
    %192 = vector.multi_reduction <add>, %189, %cst_110 [1] : vector<8x128xf32> to vector<8xf32>
    %193 = vector.shape_cast %192 : vector<8xf32> to vector<8x1xf32>
    %cst_111 = arith.constant 1.562500e-02 : f32
    %194 = vector.broadcast %cst_111 : f32 to vector<8x1xf32>
    %195 = arith.mulf %193, %194 : vector<8x1xf32>
    %196 = arith.mulf %189, %189 : vector<8x128xf32>
    %cst_112 = arith.constant dense<0.000000e+00> : vector<8xf32>
    %197 = vector.multi_reduction <add>, %196, %cst_112 [1] : vector<8x128xf32> to vector<8xf32>
    %198 = vector.shape_cast %197 : vector<8xf32> to vector<8x1xf32>
    %cst_113 = arith.constant 1.562500e-02 : f32
    %199 = vector.broadcast %cst_113 : f32 to vector<8x1xf32>
    %200 = arith.mulf %198, %199 : vector<8x1xf32>
    %201 = arith.mulf %195, %195 : vector<8x1xf32>
    %202 = arith.subf %200, %201 : vector<8x1xf32>
    %cst_114 = arith.constant 0.000000e+00 : f32
    %203 = vector.broadcast %cst_114 : f32 to vector<8x1xf32>
    %204 = arith.maximumf %202, %203 : vector<8x1xf32>
    %205 = vector.broadcast %195 : vector<8x1xf32> to vector<8x128xf32>
    %206 = arith.subf %189, %205 : vector<8x128xf32>
    %cst_115 = arith.constant 9.99999974E-6 : f32
    %207 = vector.broadcast %cst_115 : f32 to vector<8x1xf32>
    %208 = arith.addf %204, %207 : vector<8x1xf32>
    %209 = math.rsqrt %208 : vector<8x1xf32>
    %210 = vector.broadcast %209 : vector<8x1xf32> to vector<8x128xf32>
    %211 = arith.mulf %206, %210 : vector<8x128xf32>
    %212 = vector.broadcast %190 : vector<1x128xf32> to vector<8x128xf32>
    %213 = arith.mulf %211, %212 : vector<8x128xf32>
    %214 = vector.broadcast %191 : vector<1x128xf32> to vector<8x128xf32>
    %215 = arith.addf %213, %214 : vector<8x128xf32>
    %cst_116 = arith.constant 0.000000e+00 : f32
    %216 = vector.broadcast %cst_116 : f32 to vector<8x128xf32>
    %217 = arith.cmpf oge, %215, %216 : vector<8x128xf32>
    %cst_117 = arith.constant 2.000000e-01 : f32
    %218 = vector.broadcast %cst_117 : f32 to vector<8x128xf32>
    %219 = arith.mulf %218, %215 : vector<8x128xf32>
    %220 = arith.select %217, %215, %219 : vector<8x128xi1>, vector<8x128xf32>
    %c0_118 = arith.constant 0 : index
    %c0_119 = arith.constant 0 : index
    %c0_120 = arith.constant 0 : index
    %221 = vector.load %arg22[%c0_118, %c0_119, %c0_120] : memref<2x128x128xf32, #tpu.memory_space<vmem>>, vector<1x128x128xf32>
    %222 = vector.shape_cast %221 : vector<1x128x128xf32> to vector<128x128xf32>
    %cst_121 = arith.constant dense<0.000000e+00> : vector<8x128xf32>
    %223 = tpu.matmul %220, %222, %cst_121 {dimension_numbers = #tpu.dot_dimension_numbers<[1], [0], [0], [1], [0, 0, 1, 1], [], []>} : vector<8x128xf32>, vector<128x128xf32>, vector<8x128xf32> -> vector<8x128xf32>
    %c0_122 = arith.constant 0 : index
    %c0_123 = arith.constant 0 : index
    %c0_124 = arith.constant 0 : index
    %224 = vector.load %arg23[%c0_122, %c0_123, %c0_124] : memref<2x1x128xf32, #tpu.memory_space<vmem>>, vector<1x1x128xf32>
    %225 = vector.shape_cast %224 : vector<1x1x128xf32> to vector<1x128xf32>
    %226 = vector.broadcast %225 : vector<1x128xf32> to vector<8x128xf32>
    %227 = arith.addf %223, %226 : vector<8x128xf32>
    %c0_125 = arith.constant 0 : index
    %c0_126 = arith.constant 0 : index
    %c0_127 = arith.constant 0 : index
    %228 = vector.load %arg24[%c0_125, %c0_126, %c0_127] : memref<2x1x128xf32, #tpu.memory_space<vmem>>, vector<1x1x128xf32>
    %229 = vector.shape_cast %228 : vector<1x1x128xf32> to vector<1x128xf32>
    %c0_128 = arith.constant 0 : index
    %c0_129 = arith.constant 0 : index
    %c0_130 = arith.constant 0 : index
    %230 = vector.load %arg25[%c0_128, %c0_129, %c0_130] : memref<2x1x128xf32, #tpu.memory_space<vmem>>, vector<1x1x128xf32>
    %231 = vector.shape_cast %230 : vector<1x1x128xf32> to vector<1x128xf32>
    %cst_131 = arith.constant dense<0.000000e+00> : vector<8xf32>
    %232 = vector.multi_reduction <add>, %227, %cst_131 [1] : vector<8x128xf32> to vector<8xf32>
    %233 = vector.shape_cast %232 : vector<8xf32> to vector<8x1xf32>
    %cst_132 = arith.constant 1.562500e-02 : f32
    %234 = vector.broadcast %cst_132 : f32 to vector<8x1xf32>
    %235 = arith.mulf %233, %234 : vector<8x1xf32>
    %236 = arith.mulf %227, %227 : vector<8x128xf32>
    %cst_133 = arith.constant dense<0.000000e+00> : vector<8xf32>
    %237 = vector.multi_reduction <add>, %236, %cst_133 [1] : vector<8x128xf32> to vector<8xf32>
    %238 = vector.shape_cast %237 : vector<8xf32> to vector<8x1xf32>
    %cst_134 = arith.constant 1.562500e-02 : f32
    %239 = vector.broadcast %cst_134 : f32 to vector<8x1xf32>
    %240 = arith.mulf %238, %239 : vector<8x1xf32>
    %241 = arith.mulf %235, %235 : vector<8x1xf32>
    %242 = arith.subf %240, %241 : vector<8x1xf32>
    %cst_135 = arith.constant 0.000000e+00 : f32
    %243 = vector.broadcast %cst_135 : f32 to vector<8x1xf32>
    %244 = arith.maximumf %242, %243 : vector<8x1xf32>
    %245 = vector.broadcast %235 : vector<8x1xf32> to vector<8x128xf32>
    %246 = arith.subf %227, %245 : vector<8x128xf32>
    %cst_136 = arith.constant 9.99999974E-6 : f32
    %247 = vector.broadcast %cst_136 : f32 to vector<8x1xf32>
    %248 = arith.addf %244, %247 : vector<8x1xf32>
    %249 = math.rsqrt %248 : vector<8x1xf32>
    %250 = vector.broadcast %249 : vector<8x1xf32> to vector<8x128xf32>
    %251 = arith.mulf %246, %250 : vector<8x128xf32>
    %252 = vector.broadcast %229 : vector<1x128xf32> to vector<8x128xf32>
    %253 = arith.mulf %251, %252 : vector<8x128xf32>
    %254 = vector.broadcast %231 : vector<1x128xf32> to vector<8x128xf32>
    %255 = arith.addf %253, %254 : vector<8x128xf32>
    %cst_137 = arith.constant 0.000000e+00 : f32
    %256 = vector.broadcast %cst_137 : f32 to vector<8x128xf32>
    %257 = arith.cmpf oge, %255, %256 : vector<8x128xf32>
    %cst_138 = arith.constant 2.000000e-01 : f32
    %258 = vector.broadcast %cst_138 : f32 to vector<8x128xf32>
    %259 = arith.mulf %258, %255 : vector<8x128xf32>
    %260 = arith.select %257, %255, %259 : vector<8x128xi1>, vector<8x128xf32>
    %c0_139 = arith.constant 0 : index
    %c0_140 = arith.constant 0 : index
    %c0_141 = arith.constant 0 : index
    %261 = vector.load %arg26[%c0_139, %c0_140, %c0_141] : memref<2x128x128xf32, #tpu.memory_space<vmem>>, vector<1x128x128xf32>
    %262 = vector.shape_cast %261 : vector<1x128x128xf32> to vector<128x128xf32>
    %cst_142 = arith.constant dense<0.000000e+00> : vector<8x128xf32>
    %263 = tpu.matmul %260, %262, %cst_142 {dimension_numbers = #tpu.dot_dimension_numbers<[1], [0], [0], [1], [0, 0, 1, 1], [], []>} : vector<8x128xf32>, vector<128x128xf32>, vector<8x128xf32> -> vector<8x128xf32>
    %c0_143 = arith.constant 0 : index
    %c0_144 = arith.constant 0 : index
    %c0_145 = arith.constant 0 : index
    %264 = vector.load %arg27[%c0_143, %c0_144, %c0_145] : memref<2x1x128xf32, #tpu.memory_space<vmem>>, vector<1x1x128xf32>
    %265 = vector.shape_cast %264 : vector<1x1x128xf32> to vector<1x128xf32>
    %266 = vector.broadcast %265 : vector<1x128xf32> to vector<8x128xf32>
    %267 = arith.addf %263, %266 : vector<8x128xf32>
    %c0_146 = arith.constant 0 : index
    %c0_147 = arith.constant 0 : index
    %c0_148 = arith.constant 0 : index
    %268 = vector.load %arg28[%c0_146, %c0_147, %c0_148] : memref<2x1x128xf32, #tpu.memory_space<vmem>>, vector<1x1x128xf32>
    %269 = vector.shape_cast %268 : vector<1x1x128xf32> to vector<1x128xf32>
    %270 = vector.broadcast %269 : vector<1x128xf32> to vector<8x128xf32>
    %271 = arith.mulf %267, %270 : vector<8x128xf32>
    %272 = arith.addf %220, %271 : vector<8x128xf32>
    %c0_149 = arith.constant 0 : index
    %c0_150 = arith.constant 0 : index
    %c0_151 = arith.constant 0 : index
    %273 = vector.load %arg29[%c0_149, %c0_150, %c0_151] : memref<2x1x128xf32, #tpu.memory_space<vmem>>, vector<1x1x128xf32>
    %274 = vector.shape_cast %273 : vector<1x1x128xf32> to vector<1x128xf32>
    %275 = vector.broadcast %274 : vector<1x128xf32> to vector<8x128xf32>
    %276 = arith.addf %272, %275 : vector<8x128xf32>
    %c1_152 = arith.constant 1 : index
    %c0_153 = arith.constant 0 : index
    %c0_154 = arith.constant 0 : index
    %277 = vector.load %arg22[%c1_152, %c0_153, %c0_154] : memref<2x128x128xf32, #tpu.memory_space<vmem>>, vector<1x128x128xf32>
    %278 = vector.shape_cast %277 : vector<1x128x128xf32> to vector<128x128xf32>
    %cst_155 = arith.constant dense<0.000000e+00> : vector<8x128xf32>
    %279 = tpu.matmul %276, %278, %cst_155 {dimension_numbers = #tpu.dot_dimension_numbers<[1], [0], [0], [1], [0, 0, 1, 1], [], []>} : vector<8x128xf32>, vector<128x128xf32>, vector<8x128xf32> -> vector<8x128xf32>
    %c1_156 = arith.constant 1 : index
    %c0_157 = arith.constant 0 : index
    %c0_158 = arith.constant 0 : index
    %280 = vector.load %arg23[%c1_156, %c0_157, %c0_158] : memref<2x1x128xf32, #tpu.memory_space<vmem>>, vector<1x1x128xf32>
    %281 = vector.shape_cast %280 : vector<1x1x128xf32> to vector<1x128xf32>
    %282 = vector.broadcast %281 : vector<1x128xf32> to vector<8x128xf32>
    %283 = arith.addf %279, %282 : vector<8x128xf32>
    %c1_159 = arith.constant 1 : index
    %c0_160 = arith.constant 0 : index
    %c0_161 = arith.constant 0 : index
    %284 = vector.load %arg24[%c1_159, %c0_160, %c0_161] : memref<2x1x128xf32, #tpu.memory_space<vmem>>, vector<1x1x128xf32>
    %285 = vector.shape_cast %284 : vector<1x1x128xf32> to vector<1x128xf32>
    %c1_162 = arith.constant 1 : index
    %c0_163 = arith.constant 0 : index
    %c0_164 = arith.constant 0 : index
    %286 = vector.load %arg25[%c1_162, %c0_163, %c0_164] : memref<2x1x128xf32, #tpu.memory_space<vmem>>, vector<1x1x128xf32>
    %287 = vector.shape_cast %286 : vector<1x1x128xf32> to vector<1x128xf32>
    %cst_165 = arith.constant dense<0.000000e+00> : vector<8xf32>
    %288 = vector.multi_reduction <add>, %283, %cst_165 [1] : vector<8x128xf32> to vector<8xf32>
    %289 = vector.shape_cast %288 : vector<8xf32> to vector<8x1xf32>
    %cst_166 = arith.constant 1.562500e-02 : f32
    %290 = vector.broadcast %cst_166 : f32 to vector<8x1xf32>
    %291 = arith.mulf %289, %290 : vector<8x1xf32>
    %292 = arith.mulf %283, %283 : vector<8x128xf32>
    %cst_167 = arith.constant dense<0.000000e+00> : vector<8xf32>
    %293 = vector.multi_reduction <add>, %292, %cst_167 [1] : vector<8x128xf32> to vector<8xf32>
    %294 = vector.shape_cast %293 : vector<8xf32> to vector<8x1xf32>
    %cst_168 = arith.constant 1.562500e-02 : f32
    %295 = vector.broadcast %cst_168 : f32 to vector<8x1xf32>
    %296 = arith.mulf %294, %295 : vector<8x1xf32>
    %297 = arith.mulf %291, %291 : vector<8x1xf32>
    %298 = arith.subf %296, %297 : vector<8x1xf32>
    %cst_169 = arith.constant 0.000000e+00 : f32
    %299 = vector.broadcast %cst_169 : f32 to vector<8x1xf32>
    %300 = arith.maximumf %298, %299 : vector<8x1xf32>
    %301 = vector.broadcast %291 : vector<8x1xf32> to vector<8x128xf32>
    %302 = arith.subf %283, %301 : vector<8x128xf32>
    %cst_170 = arith.constant 9.99999974E-6 : f32
    %303 = vector.broadcast %cst_170 : f32 to vector<8x1xf32>
    %304 = arith.addf %300, %303 : vector<8x1xf32>
    %305 = math.rsqrt %304 : vector<8x1xf32>
    %306 = vector.broadcast %305 : vector<8x1xf32> to vector<8x128xf32>
    %307 = arith.mulf %302, %306 : vector<8x128xf32>
    %308 = vector.broadcast %285 : vector<1x128xf32> to vector<8x128xf32>
    %309 = arith.mulf %307, %308 : vector<8x128xf32>
    %310 = vector.broadcast %287 : vector<1x128xf32> to vector<8x128xf32>
    %311 = arith.addf %309, %310 : vector<8x128xf32>
    %cst_171 = arith.constant 0.000000e+00 : f32
    %312 = vector.broadcast %cst_171 : f32 to vector<8x128xf32>
    %313 = arith.cmpf oge, %311, %312 : vector<8x128xf32>
    %cst_172 = arith.constant 2.000000e-01 : f32
    %314 = vector.broadcast %cst_172 : f32 to vector<8x128xf32>
    %315 = arith.mulf %314, %311 : vector<8x128xf32>
    %316 = arith.select %313, %311, %315 : vector<8x128xi1>, vector<8x128xf32>
    %c1_173 = arith.constant 1 : index
    %c0_174 = arith.constant 0 : index
    %c0_175 = arith.constant 0 : index
    %317 = vector.load %arg26[%c1_173, %c0_174, %c0_175] : memref<2x128x128xf32, #tpu.memory_space<vmem>>, vector<1x128x128xf32>
    %318 = vector.shape_cast %317 : vector<1x128x128xf32> to vector<128x128xf32>
    %cst_176 = arith.constant dense<0.000000e+00> : vector<8x128xf32>
    %319 = tpu.matmul %316, %318, %cst_176 {dimension_numbers = #tpu.dot_dimension_numbers<[1], [0], [0], [1], [0, 0, 1, 1], [], []>} : vector<8x128xf32>, vector<128x128xf32>, vector<8x128xf32> -> vector<8x128xf32>
    %c1_177 = arith.constant 1 : index
    %c0_178 = arith.constant 0 : index
    %c0_179 = arith.constant 0 : index
    %320 = vector.load %arg27[%c1_177, %c0_178, %c0_179] : memref<2x1x128xf32, #tpu.memory_space<vmem>>, vector<1x1x128xf32>
    %321 = vector.shape_cast %320 : vector<1x1x128xf32> to vector<1x128xf32>
    %322 = vector.broadcast %321 : vector<1x128xf32> to vector<8x128xf32>
    %323 = arith.addf %319, %322 : vector<8x128xf32>
    %c1_180 = arith.constant 1 : index
    %c0_181 = arith.constant 0 : index
    %c0_182 = arith.constant 0 : index
    %324 = vector.load %arg28[%c1_180, %c0_181, %c0_182] : memref<2x1x128xf32, #tpu.memory_space<vmem>>, vector<1x1x128xf32>
    %325 = vector.shape_cast %324 : vector<1x1x128xf32> to vector<1x128xf32>
    %326 = vector.broadcast %325 : vector<1x128xf32> to vector<8x128xf32>
    %327 = arith.mulf %323, %326 : vector<8x128xf32>
    %328 = arith.addf %276, %327 : vector<8x128xf32>
    %c1_183 = arith.constant 1 : index
    %c0_184 = arith.constant 0 : index
    %c0_185 = arith.constant 0 : index
    %329 = vector.load %arg29[%c1_183, %c0_184, %c0_185] : memref<2x1x128xf32, #tpu.memory_space<vmem>>, vector<1x1x128xf32>
    %330 = vector.shape_cast %329 : vector<1x1x128xf32> to vector<1x128xf32>
    %331 = vector.broadcast %330 : vector<1x128xf32> to vector<8x128xf32>
    %332 = arith.addf %328, %331 : vector<8x128xf32>
    %c0_186 = arith.constant 0 : index
    %c0_187 = arith.constant 0 : index
    %333 = vector.load %arg30[%c0_186, %c0_187] : memref<128x128xf32, #tpu.memory_space<vmem>>, vector<128x128xf32>
    %cst_188 = arith.constant dense<0.000000e+00> : vector<8x128xf32>
    %334 = tpu.matmul %332, %333, %cst_188 {dimension_numbers = #tpu.dot_dimension_numbers<[1], [0], [0], [1], [0, 0, 1, 1], [], []>} : vector<8x128xf32>, vector<128x128xf32>, vector<8x128xf32> -> vector<8x128xf32>
    %c0_189 = arith.constant 0 : index
    %c0_190 = arith.constant 0 : index
    %335 = vector.load %arg31[%c0_189, %c0_190] : memref<1x128xf32, #tpu.memory_space<vmem>>, vector<1x128xf32>
    %336 = vector.broadcast %335 : vector<1x128xf32> to vector<8x128xf32>
    %337 = arith.addf %334, %336 : vector<8x128xf32>
    %c0_191 = arith.constant 0 : index
    %c0_192 = arith.constant 0 : index
    %338 = vector.load %arg32[%c0_191, %c0_192] : memref<8x128xf32, #tpu.memory_space<vmem>>, vector<8x128xf32>
    tpu.vector_store %arg32[%c0_191, %c0_192], %337 {strides = array<i32>} : memref<8x128xf32, #tpu.memory_space<vmem>>, vector<8x128xf32>,
    return
  }
  func.func @transform_0(%arg0: i32) -> (i32, i32) {
    %c0_i32 = arith.constant 0 : i32
    %c0_i32_0 = arith.constant 0 : i32
    return %arg0, %c0_i32 : i32, i32
  }
  func.func @transform_1(%arg0: i32) -> (i32, i32) {
    %c0_i32 = arith.constant 0 : i32
    %c0_i32_0 = arith.constant 0 : i32
    %c0_i32_1 = arith.constant 0 : i32
    return %c0_i32, %c0_i32_0 : i32, i32
  }
  func.func @transform_2(%arg0: i32) -> (i32, i32) {
    %c0_i32 = arith.constant 0 : i32
    %c0_i32_0 = arith.constant 0 : i32
    %c0_i32_1 = arith.constant 0 : i32
    return %c0_i32, %c0_i32_0 : i32, i32
  }
  func.func @transform_3(%arg0: i32) -> (i32, i32) {
    %c0_i32 = arith.constant 0 : i32
    %c0_i32_0 = arith.constant 0 : i32
    %c0_i32_1 = arith.constant 0 : i32
    return %c0_i32, %c0_i32_0 : i32, i32
  }
  func.func @transform_4(%arg0: i32) -> (i32, i32) {
    %c0_i32 = arith.constant 0 : i32
    %c0_i32_0 = arith.constant 0 : i32
    %c0_i32_1 = arith.constant 0 : i32
    return %c0_i32, %c0_i32_0 : i32, i32
  }
  func.func @transform_5(%arg0: i32) -> (i32, i32) {
    %c0_i32 = arith.constant 0 : i32
    %c0_i32_0 = arith.constant 0 : i32
    %c0_i32_1 = arith.constant 0 : i32
    return %c0_i32, %c0_i32_0 : i32, i32
  }
  func.func @transform_6(%arg0: i32) -> (i32, i32) {
    %c0_i32 = arith.constant 0 : i32
    %c0_i32_0 = arith.constant 0 : i32
    %c0_i32_1 = arith.constant 0 : i32
    return %c0_i32, %c0_i32_0 : i32, i32
  }
  func.func @transform_7(%arg0: i32) -> (i32, i32) {
    %c0_i32 = arith.constant 0 : i32
    %c0_i32_0 = arith.constant 0 : i32
    %c0_i32_1 = arith.constant 0 : i32
    return %c0_i32, %c0_i32_0 : i32, i32
  }
  func.func @transform_8(%arg0: i32) -> (i32, i32) {
    %c0_i32 = arith.constant 0 : i32
    %c0_i32_0 = arith.constant 0 : i32
    %c0_i32_1 = arith.constant 0 : i32
    return %c0_i32, %c0_i32_0 : i32, i32
  }
  func.func @transform_9(%arg0: i32) -> (i32, i32, i32) {
    %c0_i32 = arith.constant 0 : i32
    %c0_i32_0 = arith.constant 0 : i32
    %c0_i32_1 = arith.constant 0 : i32
    %c0_i32_2 = arith.constant 0 : i32
    return %c0_i32, %c0_i32_0, %c0_i32_1 : i32, i32, i32
  }
  func.func @transform_10(%arg0: i32) -> (i32, i32, i32) {
    %c0_i32 = arith.constant 0 : i32
    %c0_i32_0 = arith.constant 0 : i32
    %c0_i32_1 = arith.constant 0 : i32
    %c0_i32_2 = arith.constant 0 : i32
    return %c0_i32, %c0_i32_0, %c0_i32_1 : i32, i32, i32
  }
  func.func @transform_11(%arg0: i32) -> (i32, i32, i32) {
    %c0_i32 = arith.constant 0 : i32
    %c0_i32_0 = arith.constant 0 : i32
    %c0_i32_1 = arith.constant 0 : i32
    %c0_i32_2 = arith.constant 0 : i32
    return %c0_i32, %c0_i32_0, %c0_i32_1 : i32, i32, i32
  }
  func.func @transform_12(%arg0: i32) -> (i32, i32, i32) {
    %c0_i32 = arith.constant 0 : i32
    %c0_i32_0 = arith.constant 0 : i32
    %c0_i32_1 = arith.constant 0 : i32
    %c0_i32_2 = arith.constant 0 : i32
    return %c0_i32, %c0_i32_0, %c0_i32_1 : i32, i32, i32
  }
  func.func @transform_13(%arg0: i32) -> (i32, i32, i32) {
    %c0_i32 = arith.constant 0 : i32
    %c0_i32_0 = arith.constant 0 : i32
    %c0_i32_1 = arith.constant 0 : i32
    %c0_i32_2 = arith.constant 0 : i32
    return %c0_i32, %c0_i32_0, %c0_i32_1 : i32, i32, i32
  }
  func.func @transform_14(%arg0: i32) -> (i32, i32, i32) {
    %c0_i32 = arith.constant 0 : i32
    %c0_i32_0 = arith.constant 0 : i32
    %c0_i32_1 = arith.constant 0 : i32
    %c0_i32_2 = arith.constant 0 : i32
    return %c0_i32, %c0_i32_0, %c0_i32_1 : i32, i32, i32
  }
  func.func @transform_15(%arg0: i32) -> (i32, i32, i32) {
    %c0_i32 = arith.constant 0 : i32
    %c0_i32_0 = arith.constant 0 : i32
    %c0_i32_1 = arith.constant 0 : i32
    %c0_i32_2 = arith.constant 0 : i32
    return %c0_i32, %c0_i32_0, %c0_i32_1 : i32, i32, i32
  }
  func.func @transform_16(%arg0: i32) -> (i32, i32, i32) {
    %c0_i32 = arith.constant 0 : i32
    %c0_i32_0 = arith.constant 0 : i32
    %c0_i32_1 = arith.constant 0 : i32
    %c0_i32_2 = arith.constant 0 : i32
    return %c0_i32, %c0_i32_0, %c0_i32_1 : i32, i32, i32
  }
  func.func @transform_17(%arg0: i32) -> (i32, i32) {
    %c0_i32 = arith.constant 0 : i32
    %c0_i32_0 = arith.constant 0 : i32
    %c0_i32_1 = arith.constant 0 : i32
    return %c0_i32, %c0_i32_0 : i32, i32
  }
  func.func @transform_18(%arg0: i32) -> (i32, i32) {
    %c0_i32 = arith.constant 0 : i32
    %c0_i32_0 = arith.constant 0 : i32
    %c0_i32_1 = arith.constant 0 : i32
    return %c0_i32, %c0_i32_0 : i32, i32
  }
  func.func @transform_19(%arg0: i32) -> (i32, i32) {
    %c0_i32 = arith.constant 0 : i32
    %c0_i32_0 = arith.constant 0 : i32
    %c0_i32_1 = arith.constant 0 : i32
    return %c0_i32, %c0_i32_0 : i32, i32
  }
  func.func @transform_20(%arg0: i32) -> (i32, i32) {
    %c0_i32 = arith.constant 0 : i32
    %c0_i32_0 = arith.constant 0 : i32
    %c0_i32_1 = arith.constant 0 : i32
    return %c0_i32, %c0_i32_0 : i32, i32
  }
  func.func @transform_21(%arg0: i32) -> (i32, i32, i32) {
    %c0_i32 = arith.constant 0 : i32
    %c0_i32_0 = arith.constant 0 : i32
    %c0_i32_1 = arith.constant 0 : i32
    %c0_i32_2 = arith.constant 0 : i32
    return %c0_i32, %c0_i32_0, %c0_i32_1 : i32, i32, i32
  }
  func.func @transform_22(%arg0: i32) -> (i32, i32, i32) {
    %c0_i32 = arith.constant 0 : i32
    %c0_i32_0 = arith.constant 0 : i32
    %c0_i32_1 = arith.constant 0 : i32
    %c0_i32_2 = arith.constant 0 : i32
    return %c0_i32, %c0_i32_0, %c0_i32_1 : i32, i32, i32
  }
  func.func @transform_23(%arg0: i32) -> (i32, i32, i32) {
    %c0_i32 = arith.constant 0 : i32
    %c0_i32_0 = arith.constant 0 : i32
    %c0_i32_1 = arith.constant 0 : i32
    %c0_i32_2 = arith.constant 0 : i32
    return %c0_i32, %c0_i32_0, %c0_i32_1 : i32, i32, i32
  }
  func.func @transform_24(%arg0: i32) -> (i32, i32, i32) {
    %c0_i32 = arith.constant 0 : i32
    %c0_i32_0 = arith.constant 0 : i32
    %c0_i32_1 = arith.constant 0 : i32
    %c0_i32_2 = arith.constant 0 : i32
    return %c0_i32, %c0_i32_0, %c0_i32_1 : i32, i32, i32
  }
  func.func @transform_25(%arg0: i32) -> (i32, i32, i32) {
    %c0_i32 = arith.constant 0 : i32
    %c0_i32_0 = arith.constant 0 : i32
    %c0_i32_1 = arith.constant 0 : i32
    %c0_i32_2 = arith.constant 0 : i32
    return %c0_i32, %c0_i32_0, %c0_i32_1 : i32, i32, i32
  }
  func.func @transform_26(%arg0: i32) -> (i32, i32, i32) {
    %c0_i32 = arith.constant 0 : i32
    %c0_i32_0 = arith.constant 0 : i32
    %c0_i32_1 = arith.constant 0 : i32
    %c0_i32_2 = arith.constant 0 : i32
    return %c0_i32, %c0_i32_0, %c0_i32_1 : i32, i32, i32
  }
  func.func @transform_27(%arg0: i32) -> (i32, i32, i32) {
    %c0_i32 = arith.constant 0 : i32
    %c0_i32_0 = arith.constant 0 : i32
    %c0_i32_1 = arith.constant 0 : i32
    %c0_i32_2 = arith.constant 0 : i32
    return %c0_i32, %c0_i32_0, %c0_i32_1 : i32, i32, i32
  }
  func.func @transform_28(%arg0: i32) -> (i32, i32, i32) {
    %c0_i32 = arith.constant 0 : i32
    %c0_i32_0 = arith.constant 0 : i32
    %c0_i32_1 = arith.constant 0 : i32
    %c0_i32_2 = arith.constant 0 : i32
    return %c0_i32, %c0_i32_0, %c0_i32_1 : i32, i32, i32
  }
  func.func @transform_29(%arg0: i32) -> (i32, i32) {
    %c0_i32 = arith.constant 0 : i32
    %c0_i32_0 = arith.constant 0 : i32
    %c0_i32_1 = arith.constant 0 : i32
    return %c0_i32, %c0_i32_0 : i32, i32
  }
  func.func @transform_30(%arg0: i32) -> (i32, i32) {
    %c0_i32 = arith.constant 0 : i32
    %c0_i32_0 = arith.constant 0 : i32
    %c0_i32_1 = arith.constant 0 : i32
    return %c0_i32, %c0_i32_0 : i32, i32
  }
  func.func @transform_31(%arg0: i32) -> (i32, i32) {
    %c0_i32 = arith.constant 0 : i32
    %c0_i32_0 = arith.constant 0 : i32
    return %arg0, %c0_i32 : i32, i32
  }
}

</mosaic_0001>

<llo_original>
// kernel: forward.1
$region0: #{forward.1}
  #allocation0 [shape = 'u32[]', space=smem, size = 0x4, offset = 0x4, fixed_abs, tag = 'smem constant byte address 0x4 - core index']
  #allocation1 [shape = 'u32[144,128]{1,0:T(1,128)}', space=vmem, size = 0x12000, scoped, tag = 'internal scratch']
  %s0 = inlined_call_operand.smem [shape: u32[32], index: -1, kind: input, shape index: {}]
  %s1 = sld [smem:[%s0]]
  %s2 = scalar_lea.smem %s0, 1
  %s3 = sld [smem:[%s2]]
  %s4 = scalar_lea.smem %s0, 2
  %s5 = sld [smem:[%s4]]
  %s6 = scalar_lea.smem %s0, 3
  %s7 = sld [smem:[%s6]]
  %s8 = scalar_lea.smem %s0, 4
  %s9 = sld [smem:[%s8]]
  %s10 = scalar_lea.smem %s0, 5
  %s11 = sld [smem:[%s10]]
  %s12 = scalar_lea.smem %s0, 6
  %s13 = sld [smem:[%s12]]
  %s14 = scalar_lea.smem %s0, 7
  %s15 = sld [smem:[%s14]]
  %s16 = scalar_lea.smem %s0, 8
  %s17 = sld [smem:[%s16]]
  %s18 = scalar_lea.smem %s0, 9
  %s19 = sld [smem:[%s18]]
  %s20 = scalar_lea.smem %s0, 10
  %s21 = sld [smem:[%s20]]
  %s22 = scalar_lea.smem %s0, 11
  %s23 = sld [smem:[%s22]]
  %s24 = scalar_lea.smem %s0, 12
  %s25 = sld [smem:[%s24]]
  %s26 = scalar_lea.smem %s0, 13
  %s27 = sld [smem:[%s26]]
  %s28 = scalar_lea.smem %s0, 14
  %s29 = sld [smem:[%s28]]
  %s30 = scalar_lea.smem %s0, 15
  %s31 = sld [smem:[%s30]]
  %s32 = scalar_lea.smem %s0, 16
  %s33 = sld [smem:[%s32]]
  %s34 = scalar_lea.smem %s0, 17
  %s35 = sld [smem:[%s34]]
  %s36 = scalar_lea.smem %s0, 18
  %s37 = sld [smem:[%s36]]
  %s38 = scalar_lea.smem %s0, 19
  %s39 = sld [smem:[%s38]]
  %s40 = scalar_lea.smem %s0, 20
  %s41 = sld [smem:[%s40]]
  %s42 = scalar_lea.smem %s0, 21
  %s43 = sld [smem:[%s42]]
  %s44 = scalar_lea.smem %s0, 22
  %s45 = sld [smem:[%s44]]
  %s46 = scalar_lea.smem %s0, 23
  %s47 = sld [smem:[%s46]]
  %s48 = scalar_lea.smem %s0, 24
  %s49 = sld [smem:[%s48]]
  %s50 = scalar_lea.smem %s0, 25
  %s51 = sld [smem:[%s50]]
  %s52 = scalar_lea.smem %s0, 26
  %s53 = sld [smem:[%s52]]
  %s54 = scalar_lea.smem %s0, 27
  %s55 = sld [smem:[%s54]]
  %s56 = scalar_lea.smem %s0, 28
  %s57 = sld [smem:[%s56]]
  %s58 = scalar_lea.smem %s0, 29
  %s59 = sld [smem:[%s58]]
  %s60 = scalar_lea.smem %s0, 30
  %s61 = sld [smem:[%s60]]
  %s62 = scalar_lea.smem %s0, 31
  %s63 = sld [smem:[%s62]]
  %s64 = sld [smem:[#allocation0]]
  $region246: #{forward.1} parent=0
    _
  %s66 = ssub.s32 1, %s64
  %s67 = scalar_select 0, %s66, %s64
  $region1: #{forward.1} parent=0
    #allocation2 [shape = 'u8[131072]{0}', space=vmem, size = 0x20000, scoped, tag = 'input window, operand 1, single buffered']
    #allocation3 [shape = 's32[1]{0}', space=sflag, size = 0x4, scoped, tag = 'scoped memory for forward.1']
    #allocation4 [shape = 's32[1]{0}', space=sflag, size = 0x4, scoped, tag = 'scoped memory for forward.1']
    #allocation5 [shape = 'u8[512]{0}', space=vmem, size = 0x400, scoped, tag = 'input window, operand 2, single buffered']
    #allocation6 [shape = 's32[1]{0}', space=sflag, size = 0x4, scoped, tag = 'scoped memory for forward.1']
    #allocation7 [shape = 'u8[512]{0}', space=vmem, size = 0x400, scoped, tag = 'input window, operand 3, single buffered']
    #allocation8 [shape = 'u8[512]{0}', space=vmem, size = 0x400, scoped, tag = 'input window, operand 4, single buffered']
    #allocation9 [shape = 's32[1]{0}', space=sflag, size = 0x4, scoped, tag = 'scoped memory for forward.1']
    #allocation10 [shape = 'u8[65536]{0}', space=vmem, size = 0x10000, scoped, tag = 'input window, operand 5, single buffered']
    #allocation11 [shape = 'u8[512]{0}', space=vmem, size = 0x400, scoped, tag = 'input window, operand 6, single buffered']
    #allocation12 [shape = 's32[1]{0}', space=sflag, size = 0x4, scoped, tag = 'scoped memory for forward.1']
    #allocation13 [shape = 'u8[512]{0}', space=vmem, size = 0x400, scoped, tag = 'input window, operand 7, single buffered']
    #allocation14 [shape = 'u8[512]{0}', space=vmem, size = 0x400, scoped, tag = 'input window, operand 8, single buffered']
    #allocation15 [shape = 's32[1]{0}', space=sflag, size = 0x4, scoped, tag = 'scoped memory for forward.1']
    #allocation16 [shape = 'u8[131072]{0}', space=vmem, size = 0x20000, scoped, tag = 'input window, operand 9, single buffered']
    #allocation17 [shape = 'u8[1024]{0}', space=vmem, size = 0x400, scoped, tag = 'input window, operand 11, single buffered']
    #allocation18 [shape = 's32[1]{0}', space=sflag, size = 0x4, scoped, tag = 'scoped memory for forward.1']
    #allocation19 [shape = 'u8[1024]{0}', space=vmem, size = 0x400, scoped, tag = 'input window, operand 12, single buffered']
    #allocation20 [shape = 'u8[131072]{0}', space=vmem, size = 0x20000, scoped, tag = 'input window, operand 13, single buffered']
    #allocation21 [shape = 's32[1]{0}', space=sflag, size = 0x4, scoped, tag = 'scoped memory for forward.1']
    #allocation22 [shape = 'u8[1024]{0}', space=vmem, size = 0x400, scoped, tag = 'input window, operand 14, single buffered']
    #allocation23 [shape = 'u8[1024]{0}', space=vmem, size = 0x400, scoped, tag = 'input window, operand 15, single buffered']
    #allocation24 [shape = 's32[1]{0}', space=sflag, size = 0x4, scoped, tag = 'scoped memory for forward.1']
    #allocation25 [shape = 'u8[1024]{0}', space=vmem, size = 0x400, scoped, tag = 'input window, operand 16, single buffered']
    #allocation26 [shape = 'u8[65536]{0}', space=vmem, size = 0x10000, scoped, tag = 'input window, operand 17, single buffered']
    #allocation27 [shape = 's32[1]{0}', space=sflag, size = 0x4, scoped, tag = 'scoped memory for forward.1']
    #allocation28 [shape = 'u8[512]{0}', space=vmem, size = 0x400, scoped, tag = 'input window, operand 18, single buffered']
    #allocation29 [shape = 'u8[512]{0}', space=vmem, size = 0x400, scoped, tag = 'input window, operand 19, single buffered']
    #allocation30 [shape = 's32[1]{0}', space=sflag, size = 0x4, scoped, tag = 'scoped memory for forward.1']
    #allocation31 [shape = 'u8[512]{0}', space=vmem, size = 0x400, scoped, tag = 'input window, operand 20, single buffered']
    #allocation32 [shape = 'u8[131072]{0}', space=vmem, size = 0x20000, scoped, tag = 'input window, operand 21, single buffered']
    #allocation33 [shape = 's32[1]{0}', space=sflag, size = 0x4, scoped, tag = 'scoped memory for forward.1']
    #allocation34 [shape = 'u8[1024]{0}', space=vmem, size = 0x400, scoped, tag = 'input window, operand 22, single buffered']
    #allocation35 [shape = 'u8[1024]{0}', space=vmem, size = 0x400, scoped, tag = 'input window, operand 23, single buffered']
    #allocation36 [shape = 's32[1]{0}', space=sflag, size = 0x4, scoped, tag = 'scoped memory for forward.1']
    #allocation37 [shape = 'u8[1024]{0}', space=vmem, size = 0x400, scoped, tag = 'input window, operand 24, single buffered']
    #allocation38 [shape = 'u8[131072]{0}', space=vmem, size = 0x20000, scoped, tag = 'input window, operand 25, single buffered']
    #allocation39 [shape = 's32[1]{0}', space=sflag, size = 0x4, scoped, tag = 'scoped memory for forward.1']
    #allocation40 [shape = 'u8[1024]{0}', space=vmem, size = 0x400, scoped, tag = 'input window, operand 26, single buffered']
    #allocation41 [shape = 'u8[1024]{0}', space=vmem, size = 0x400, scoped, tag = 'input window, operand 27, single buffered']
    #allocation42 [shape = 's32[1]{0}', space=sflag, size = 0x4, scoped, tag = 'scoped memory for forward.1']
    #allocation43 [shape = 'u8[1024]{0}', space=vmem, size = 0x400, scoped, tag = 'input window, operand 28, single buffered']
    #allocation44 [shape = 'u8[512]{0}', space=vmem, size = 0x400, scoped, tag = 'input window, operand 30, single buffered']
    #allocation45 [shape = 's32[1]{0}', space=sflag, size = 0x4, scoped, tag = 'scoped memory for forward.1']
    #allocation46 [shape = 'u8[4096]{0}', space=vmem, size = 0x1000, scoped, tag = 'output window, operand 0, single buffered']
    %68 = vsyncpa [#allocation3], 0
    %69 = vsyncpa [#allocation6], 0
    %70 = vsyncpa [#allocation9], 0
    %71 = vsyncpa [#allocation12], 0
    %72 = vsyncpa [#allocation15], 0
    %73 = vsyncpa [#allocation18], 0
    %74 = vsyncpa [#allocation21], 0
    %75 = vsyncpa [#allocation24], 0
    %76 = vsyncpa [#allocation27], 0
    %77 = vsyncpa [#allocation30], 0
    %78 = vsyncpa [#allocation33], 0
    %79 = vsyncpa [#allocation36], 0
    %80 = vsyncpa [#allocation39], 0
    %81 = vsyncpa [#allocation42], 0
    %82 = vsyncpa [#allocation45], 0
    %83 = vsyncpa [#allocation4], 0
    // Predicated region
    $region2: #{forward.1} parent=1 // pred_check
      _
    $region3: #{forward.1} parent=1 // pred_check_branch
      %85 = sbr.rel (0) target = $region5
    $region4: #{forward.1} parent=1 // pred_region
      _
    $region5: #{forward.1} parent=1 // pred_fallthru
      _
    // Predicated region
    $region6: #{forward.1} parent=1 // pred_check
      _
    $region7: #{forward.1} parent=1 // pred_check_branch
      %87 = sbr.rel (0) target = $region9
    $region8: #{forward.1} parent=1 // pred_region
      %s89 = ssub.s32 4096, 4096
      %90 = vsyncadd [#allocation3], %s89
      %s91 = sshll.u32 [#allocation2], 4
      %s92 = int_to_ptr.vmem [resolvable:$true] %s91
      %97 = dma.hbm_to_vmem [thread:$0]  %s3, 4096, %s92, [#allocation3], 128, 128, 8
    $region9: #{forward.1} parent=1 // pred_fallthru
      _
    // Predicated region
    $region10: #{forward.1} parent=1 // pred_check
      _
    $region11: #{forward.1} parent=1 // pred_check_branch
      %99 = sbr.rel (0) target = $region13
    $region12: #{forward.1} parent=1 // pred_region
      %s101 = ssub.s32 16, 16
      %102 = vsyncadd [#allocation6], %s101
      %s104 = sshll.u32 [#allocation5], 4
      %s105 = int_to_ptr.vmem [resolvable:$true] %s104
      %107 = dma.hbm_to_vmem [thread:$0]  %s5, 16, %s105, [#allocation6]
    $region13: #{forward.1} parent=1 // pred_fallthru
      _
    // Predicated region
    $region14: #{forward.1} parent=1 // pred_check
      _
    $region15: #{forward.1} parent=1 // pred_check_branch
      %109 = sbr.rel (0) target = $region17
    $region16: #{forward.1} parent=1 // pred_region
      %s111 = ssub.s32 16, 16
      %112 = vsyncadd [#allocation6], %s111
      %s114 = sshll.u32 [#allocation7], 4
      %s115 = int_to_ptr.vmem [resolvable:$true] %s114
      %117 = dma.hbm_to_vmem [thread:$0]  %s7, 16, %s115, [#allocation6]
    $region17: #{forward.1} parent=1 // pred_fallthru
      _
    // Predicated region
    $region18: #{forward.1} parent=1 // pred_check
      _
    $region19: #{forward.1} parent=1 // pred_check_branch
      %119 = sbr.rel (0) target = $region21
    $region20: #{forward.1} parent=1 // pred_region
      %s121 = ssub.s32 16, 16
      %122 = vsyncadd [#allocation9], %s121
      %s124 = sshll.u32 [#allocation8], 4
      %s125 = int_to_ptr.vmem [resolvable:$true] %s124
      %127 = dma.hbm_to_vmem [thread:$0]  %s9, 16, %s125, [#allocation9]
    $region21: #{forward.1} parent=1 // pred_fallthru
      _
    // Predicated region
    $region22: #{forward.1} parent=1 // pred_check
      _
    $region23: #{forward.1} parent=1 // pred_check_branch
      %129 = sbr.rel (0) target = $region25
    $region24: #{forward.1} parent=1 // pred_region
      %s131 = ssub.s32 2048, 2048
      %132 = vsyncadd [#allocation9], %s131
      %s133 = sshll.u32 [#allocation10], 4
      %s134 = int_to_ptr.vmem [resolvable:$true] %s133
      %139 = dma.hbm_to_vmem [thread:$0]  %s11, 2048, %s134, [#allocation9], 128, 128, 8
    $region25: #{forward.1} parent=1 // pred_fallthru
      _
    // Predicated region
    $region26: #{forward.1} parent=1 // pred_check
      _
    $region27: #{forward.1} parent=1 // pred_check_branch
      %141 = sbr.rel (0) target = $region29
    $region28: #{forward.1} parent=1 // pred_region
      %s143 = ssub.s32 16, 16
      %144 = vsyncadd [#allocation12], %s143
      %s146 = sshll.u32 [#allocation11], 4
      %s147 = int_to_ptr.vmem [resolvable:$true] %s146
      %149 = dma.hbm_to_vmem [thread:$0]  %s13, 16, %s147, [#allocation12]
    $region29: #{forward.1} parent=1 // pred_fallthru
      _
    // Predicated region
    $region30: #{forward.1} parent=1 // pred_check
      _
    $region31: #{forward.1} parent=1 // pred_check_branch
      %151 = sbr.rel (0) target = $region33
    $region32: #{forward.1} parent=1 // pred_region
      %s153 = ssub.s32 16, 16
      %154 = vsyncadd [#allocation12], %s153
      %s156 = sshll.u32 [#allocation13], 4
      %s157 = int_to_ptr.vmem [resolvable:$true] %s156
      %159 = dma.hbm_to_vmem [thread:$0]  %s15, 16, %s157, [#allocation12]
    $region33: #{forward.1} parent=1 // pred_fallthru
      _
    // Predicated region
    $region34: #{forward.1} parent=1 // pred_check
      _
    $region35: #{forward.1} parent=1 // pred_check_branch
      %161 = sbr.rel (0) target = $region37
    $region36: #{forward.1} parent=1 // pred_region
      %s163 = ssub.s32 16, 16
      %164 = vsyncadd [#allocation15], %s163
      %s166 = sshll.u32 [#allocation14], 4
      %s167 = int_to_ptr.vmem [resolvable:$true] %s166
      %169 = dma.hbm_to_vmem [thread:$0]  %s17, 16, %s167, [#allocation15]
    $region37: #{forward.1} parent=1 // pred_fallthru
      _
    // Predicated region
    $region38: #{forward.1} parent=1 // pred_check
      _
    $region39: #{forward.1} parent=1 // pred_check_branch
      %171 = sbr.rel (0) target = $region41
    $region40: #{forward.1} parent=1 // pred_region
      %s173 = ssub.s32 4096, 4096
      %174 = vsyncadd [#allocation15], %s173
      %s175 = sshll.u32 [#allocation16], 4
      %s176 = int_to_ptr.vmem [resolvable:$true] %s175
      %181 = dma.hbm_to_vmem [thread:$0]  %s19, 4096, %s176, [#allocation15], 128, 128, 8
    $region41: #{forward.1} parent=1 // pred_fallthru
      _
    // Predicated region
    $region42: #{forward.1} parent=1 // pred_check
      _
    $region43: #{forward.1} parent=1 // pred_check_branch
      %183 = sbr.rel (0) target = $region45
    $region44: #{forward.1} parent=1 // pred_region
      _
    $region45: #{forward.1} parent=1 // pred_fallthru
      _
    // Predicated region
    $region46: #{forward.1} parent=1 // pred_check
      _
    $region47: #{forward.1} parent=1 // pred_check_branch
      %185 = sbr.rel (0) target = $region49
    $region48: #{forward.1} parent=1 // pred_region
      %s187 = ssub.s32 32, 32
      %188 = vsyncadd [#allocation18], %s187
      %s189 = sshll.u32 [#allocation17], 4
      %s190 = int_to_ptr.vmem [resolvable:$true] %s189
      %195 = dma.hbm_to_vmem [thread:$0]  %s23, 32, %s190, [#allocation18], 16, 16, 1
    $region49: #{forward.1} parent=1 // pred_fallthru
      _
    // Predicated region
    $region50: #{forward.1} parent=1 // pred_check
      _
    $region51: #{forward.1} parent=1 // pred_check_branch
      %197 = sbr.rel (0) target = $region53
    $region52: #{forward.1} parent=1 // pred_region
      %s199 = ssub.s32 32, 32
      %200 = vsyncadd [#allocation18], %s199
      %s201 = sshll.u32 [#allocation19], 4
      %s202 = int_to_ptr.vmem [resolvable:$true] %s201
      %207 = dma.hbm_to_vmem [thread:$0]  %s25, 32, %s202, [#allocation18], 16, 16, 1
    $region53: #{forward.1} parent=1 // pred_fallthru
      _
    // Predicated region
    $region54: #{forward.1} parent=1 // pred_check
      _
    $region55: #{forward.1} parent=1 // pred_check_branch
      %209 = sbr.rel (0) target = $region57
    $region56: #{forward.1} parent=1 // pred_region
      %s211 = ssub.s32 4096, 4096
      %212 = vsyncadd [#allocation21], %s211
      %s213 = sshll.u32 [#allocation20], 4
      %s214 = int_to_ptr.vmem [resolvable:$true] %s213
      %219 = dma.hbm_to_vmem [thread:$0]  %s27, 4096, %s214, [#allocation21], 128, 128, 8
    $region57: #{forward.1} parent=1 // pred_fallthru
      _
    // Predicated region
    $region58: #{forward.1} parent=1 // pred_check
      _
    $region59: #{forward.1} parent=1 // pred_check_branch
      %221 = sbr.rel (0) target = $region61
    $region60: #{forward.1} parent=1 // pred_region
      %s223 = ssub.s32 32, 32
      %224 = vsyncadd [#allocation21], %s223
      %s225 = sshll.u32 [#allocation22], 4
      %s226 = int_to_ptr.vmem [resolvable:$true] %s225
      %231 = dma.hbm_to_vmem [thread:$0]  %s29, 32, %s226, [#allocation21], 16, 16, 1
    $region61: #{forward.1} parent=1 // pred_fallthru
      _
    // Predicated region
    $region62: #{forward.1} parent=1 // pred_check
      _
    $region63: #{forward.1} parent=1 // pred_check_branch
      %233 = sbr.rel (0) target = $region65
    $region64: #{forward.1} parent=1 // pred_region
      %s235 = ssub.s32 32, 32
      %236 = vsyncadd [#allocation24], %s235
      %s237 = sshll.u32 [#allocation23], 4
      %s238 = int_to_ptr.vmem [resolvable:$true] %s237
      %243 = dma.hbm_to_vmem [thread:$0]  %s31, 32, %s238, [#allocation24], 16, 16, 1
    $region65: #{forward.1} parent=1 // pred_fallthru
      _
    // Predicated region
    $region66: #{forward.1} parent=1 // pred_check
      _
    $region67: #{forward.1} parent=1 // pred_check_branch
      %245 = sbr.rel (0) target = $region69
    $region68: #{forward.1} parent=1 // pred_region
      %s247 = ssub.s32 32, 32
      %248 = vsyncadd [#allocation24], %s247
      %s249 = sshll.u32 [#allocation25], 4
      %s250 = int_to_ptr.vmem [resolvable:$true] %s249
      %255 = dma.hbm_to_vmem [thread:$0]  %s33, 32, %s250, [#allocation24], 16, 16, 1
    $region69: #{forward.1} parent=1 // pred_fallthru
      _
    // Predicated region
    $region70: #{forward.1} parent=1 // pred_check
      _
    $region71: #{forward.1} parent=1 // pred_check_branch
      %257 = sbr.rel (0) target = $region73
    $region72: #{forward.1} parent=1 // pred_region
      %s259 = ssub.s32 2048, 2048
      %260 = vsyncadd [#allocation27], %s259
      %s261 = sshll.u32 [#allocation26], 4
      %s262 = int_to_ptr.vmem [resolvable:$true] %s261
      %267 = dma.hbm_to_vmem [thread:$0]  %s35, 2048, %s262, [#allocation27], 128, 128, 8
    $region73: #{forward.1} parent=1 // pred_fallthru
      _
    // Predicated region
    $region74: #{forward.1} parent=1 // pred_check
      _
    $region75: #{forward.1} parent=1 // pred_check_branch
      %269 = sbr.rel (0) target = $region77
    $region76: #{forward.1} parent=1 // pred_region
      %s271 = ssub.s32 16, 16
      %272 = vsyncadd [#allocation27], %s271
      %s274 = sshll.u32 [#allocation28], 4
      %s275 = int_to_ptr.vmem [resolvable:$true] %s274
      %277 = dma.hbm_to_vmem [thread:$0]  %s37, 16, %s275, [#allocation27]
    $region77: #{forward.1} parent=1 // pred_fallthru
      _
    // Predicated region
    $region78: #{forward.1} parent=1 // pred_check
      _
    $region79: #{forward.1} parent=1 // pred_check_branch
      %279 = sbr.rel (0) target = $region81
    $region80: #{forward.1} parent=1 // pred_region
      %s281 = ssub.s32 16, 16
      %282 = vsyncadd [#allocation30], %s281
      %s284 = sshll.u32 [#allocation29], 4
      %s285 = int_to_ptr.vmem [resolvable:$true] %s284
      %287 = dma.hbm_to_vmem [thread:$0]  %s39, 16, %s285, [#allocation30]
    $region81: #{forward.1} parent=1 // pred_fallthru
      _
    // Predicated region
    $region82: #{forward.1} parent=1 // pred_check
      _
    $region83: #{forward.1} parent=1 // pred_check_branch
      %289 = sbr.rel (0) target = $region85
    $region84: #{forward.1} parent=1 // pred_region
      %s291 = ssub.s32 16, 16
      %292 = vsyncadd [#allocation30], %s291
      %s294 = sshll.u32 [#allocation31], 4
      %s295 = int_to_ptr.vmem [resolvable:$true] %s294
      %297 = dma.hbm_to_vmem [thread:$0]  %s41, 16, %s295, [#allocation30]
    $region85: #{forward.1} parent=1 // pred_fallthru
      _
    // Predicated region
    $region86: #{forward.1} parent=1 // pred_check
      _
    $region87: #{forward.1} parent=1 // pred_check_branch
      %299 = sbr.rel (0) target = $region89
    $region88: #{forward.1} parent=1 // pred_region
      %s301 = ssub.s32 4096, 4096
      %302 = vsyncadd [#allocation33], %s301
      %s303 = sshll.u32 [#allocation32], 4
      %s304 = int_to_ptr.vmem [resolvable:$true] %s303
      %309 = dma.hbm_to_vmem [thread:$0]  %s43, 4096, %s304, [#allocation33], 128, 128, 8
    $region89: #{forward.1} parent=1 // pred_fallthru
      _
    // Predicated region
    $region90: #{forward.1} parent=1 // pred_check
      _
    $region91: #{forward.1} parent=1 // pred_check_branch
      %311 = sbr.rel (0) target = $region93
    $region92: #{forward.1} parent=1 // pred_region
      %s313 = ssub.s32 32, 32
      %314 = vsyncadd [#allocation33], %s313
      %s315 = sshll.u32 [#allocation34], 4
      %s316 = int_to_ptr.vmem [resolvable:$true] %s315
      %321 = dma.hbm_to_vmem [thread:$0]  %s45, 32, %s316, [#allocation33], 16, 16, 1
    $region93: #{forward.1} parent=1 // pred_fallthru
      _
    // Predicated region
    $region94: #{forward.1} parent=1 // pred_check
      _
    $region95: #{forward.1} parent=1 // pred_check_branch
      %323 = sbr.rel (0) target = $region97
    $region96: #{forward.1} parent=1 // pred_region
      %s325 = ssub.s32 32, 32
      %326 = vsyncadd [#allocation36], %s325
      %s327 = sshll.u32 [#allocation35], 4
      %s328 = int_to_ptr.vmem [resolvable:$true] %s327
      %333 = dma.hbm_to_vmem [thread:$0]  %s47, 32, %s328, [#allocation36], 16, 16, 1
    $region97: #{forward.1} parent=1 // pred_fallthru
      _
    // Predicated region
    $region98: #{forward.1} parent=1 // pred_check
      _
    $region99: #{forward.1} parent=1 // pred_check_branch
      %335 = sbr.rel (0) target = $region101
    $region100: #{forward.1} parent=1 // pred_region
      %s337 = ssub.s32 32, 32
      %338 = vsyncadd [#allocation36], %s337
      %s339 = sshll.u32 [#allocation37], 4
      %s340 = int_to_ptr.vmem [resolvable:$true] %s339
      %345 = dma.hbm_to_vmem [thread:$0]  %s49, 32, %s340, [#allocation36], 16, 16, 1
    $region101: #{forward.1} parent=1 // pred_fallthru
      _
    // Predicated region
    $region102: #{forward.1} parent=1 // pred_check
      _
    $region103: #{forward.1} parent=1 // pred_check_branch
      %347 = sbr.rel (0) target = $region105
    $region104: #{forward.1} parent=1 // pred_region
      %s349 = ssub.s32 4096, 4096
      %350 = vsyncadd [#allocation39], %s349
      %s351 = sshll.u32 [#allocation38], 4
      %s352 = int_to_ptr.vmem [resolvable:$true] %s351
      %357 = dma.hbm_to_vmem [thread:$0]  %s51, 4096, %s352, [#allocation39], 128, 128, 8
    $region105: #{forward.1} parent=1 // pred_fallthru
      _
    // Predicated region
    $region106: #{forward.1} parent=1 // pred_check
      _
    $region107: #{forward.1} parent=1 // pred_check_branch
      %359 = sbr.rel (0) target = $region109
    $region108: #{forward.1} parent=1 // pred_region
      %s361 = ssub.s32 32, 32
      %362 = vsyncadd [#allocation39], %s361
      %s363 = sshll.u32 [#allocation40], 4
      %s364 = int_to_ptr.vmem [resolvable:$true] %s363
      %369 = dma.hbm_to_vmem [thread:$0]  %s53, 32, %s364, [#allocation39], 16, 16, 1
    $region109: #{forward.1} parent=1 // pred_fallthru
      _
    // Predicated region
    $region110: #{forward.1} parent=1 // pred_check
      _
    $region111: #{forward.1} parent=1 // pred_check_branch
      %371 = sbr.rel (0) target = $region113
    $region112: #{forward.1} parent=1 // pred_region
      %s373 = ssub.s32 32, 32
      %374 = vsyncadd [#allocation42], %s373
      %s375 = sshll.u32 [#allocation41], 4
      %s376 = int_to_ptr.vmem [resolvable:$true] %s375
      %381 = dma.hbm_to_vmem [thread:$0]  %s55, 32, %s376, [#allocation42], 16, 16, 1
    $region113: #{forward.1} parent=1 // pred_fallthru
      _
    // Predicated region
    $region114: #{forward.1} parent=1 // pred_check
      _
    $region115: #{forward.1} parent=1 // pred_check_branch
      %383 = sbr.rel (0) target = $region117
    $region116: #{forward.1} parent=1 // pred_region
      %s385 = ssub.s32 32, 32
      %386 = vsyncadd [#allocation42], %s385
      %s387 = sshll.u32 [#allocation43], 4
      %s388 = int_to_ptr.vmem [resolvable:$true] %s387
      %393 = dma.hbm_to_vmem [thread:$0]  %s57, 32, %s388, [#allocation42], 16, 16, 1
    $region117: #{forward.1} parent=1 // pred_fallthru
      _
    // Predicated region
    $region118: #{forward.1} parent=1 // pred_check
      _
    $region119: #{forward.1} parent=1 // pred_check_branch
      %395 = sbr.rel (0) target = $region121
    $region120: #{forward.1} parent=1 // pred_region
      _
    $region121: #{forward.1} parent=1 // pred_fallthru
      _
    // Predicated region
    $region122: #{forward.1} parent=1 // pred_check
      _
    $region123: #{forward.1} parent=1 // pred_check_branch
      %397 = sbr.rel (0) target = $region125
    $region124: #{forward.1} parent=1 // pred_region
      %s399 = ssub.s32 16, 16
      %400 = vsyncadd [#allocation45], %s399
      %s402 = sshll.u32 [#allocation44], 4
      %s403 = int_to_ptr.vmem [resolvable:$true] %s402
      %405 = dma.hbm_to_vmem [thread:$0]  %s61, 16, %s403, [#allocation45]
    $region125: #{forward.1} parent=1 // pred_fallthru
      _
    // Predicated region
    $region126: #{forward.1} parent=1 // pred_check
      _
    $region127: #{forward.1} parent=1 // pred_check_branch
      %407 = sbr.rel (0) target = $region129
    $region128: #{forward.1} parent=1 // pred_region
      %408 = dma.done [#allocation3], 4096
    $region129: #{forward.1} parent=1 // pred_fallthru
      _
    // Predicated region
    $region130: #{forward.1} parent=1 // pred_check
      _
    $region131: #{forward.1} parent=1 // pred_check_branch
      %410 = sbr.rel (0) target = $region133
    $region132: #{forward.1} parent=1 // pred_region
      %411 = dma.done [#allocation6], 16
    $region133: #{forward.1} parent=1 // pred_fallthru
      _
    // Predicated region
    $region134: #{forward.1} parent=1 // pred_check
      _
    $region135: #{forward.1} parent=1 // pred_check_branch
      %413 = sbr.rel (0) target = $region137
    $region136: #{forward.1} parent=1 // pred_region
      %414 = dma.done [#allocation6], 16
    $region137: #{forward.1} parent=1 // pred_fallthru
      _
    // Predicated region
    $region138: #{forward.1} parent=1 // pred_check
      _
    $region139: #{forward.1} parent=1 // pred_check_branch
      %416 = sbr.rel (0) target = $region141
    $region140: #{forward.1} parent=1 // pred_region
      %417 = dma.done [#allocation9], 16
    $region141: #{forward.1} parent=1 // pred_fallthru
      _
    // Predicated region
    $region142: #{forward.1} parent=1 // pred_check
      _
    $region143: #{forward.1} parent=1 // pred_check_branch
      %419 = sbr.rel (0) target = $region145
    $region144: #{forward.1} parent=1 // pred_region
      %420 = dma.done [#allocation9], 2048
    $region145: #{forward.1} parent=1 // pred_fallthru
      _
    // Predicated region
    $region146: #{forward.1} parent=1 // pred_check
      _
    $region147: #{forward.1} parent=1 // pred_check_branch
      %422 = sbr.rel (0) target = $region149
    $region148: #{forward.1} parent=1 // pred_region
      %423 = dma.done [#allocation12], 16
    $region149: #{forward.1} parent=1 // pred_fallthru
      _
    // Predicated region
    $region150: #{forward.1} parent=1 // pred_check
      _
    $region151: #{forward.1} parent=1 // pred_check_branch
      %425 = sbr.rel (0) target = $region153
    $region152: #{forward.1} parent=1 // pred_region
      %426 = dma.done [#allocation12], 16
    $region153: #{forward.1} parent=1 // pred_fallthru
      _
    // Predicated region
    $region154: #{forward.1} parent=1 // pred_check
      _
    $region155: #{forward.1} parent=1 // pred_check_branch
      %428 = sbr.rel (0) target = $region157
    $region156: #{forward.1} parent=1 // pred_region
      %429 = dma.done [#allocation15], 16
    $region157: #{forward.1} parent=1 // pred_fallthru
      _
    // Predicated region
    $region158: #{forward.1} parent=1 // pred_check
      _
    $region159: #{forward.1} parent=1 // pred_check_branch
      %431 = sbr.rel (0) target = $region161
    $region160: #{forward.1} parent=1 // pred_region
      %432 = dma.done [#allocation15], 4096
    $region161: #{forward.1} parent=1 // pred_fallthru
      _
    // Predicated region
    $region162: #{forward.1} parent=1 // pred_check
      _
    $region163: #{forward.1} parent=1 // pred_check_branch
      %434 = sbr.rel (0) target = $region165
    $region164: #{forward.1} parent=1 // pred_region
      %435 = dma.done [#allocation18], 32
    $region165: #{forward.1} parent=1 // pred_fallthru
      _
    // Predicated region
    $region166: #{forward.1} parent=1 // pred_check
      _
    $region167: #{forward.1} parent=1 // pred_check_branch
      %437 = sbr.rel (0) target = $region169
    $region168: #{forward.1} parent=1 // pred_region
      %438 = dma.done [#allocation18], 32
    $region169: #{forward.1} parent=1 // pred_fallthru
      _
    // Predicated region
    $region170: #{forward.1} parent=1 // pred_check
      _
    $region171: #{forward.1} parent=1 // pred_check_branch
      %440 = sbr.rel (0) target = $region173
    $region172: #{forward.1} parent=1 // pred_region
      %441 = dma.done [#allocation21], 4096
    $region173: #{forward.1} parent=1 // pred_fallthru
      _
    // Predicated region
    $region174: #{forward.1} parent=1 // pred_check
      _
    $region175: #{forward.1} parent=1 // pred_check_branch
      %443 = sbr.rel (0) target = $region177
    $region176: #{forward.1} parent=1 // pred_region
      %444 = dma.done [#allocation21], 32
    $region177: #{forward.1} parent=1 // pred_fallthru
      _
    // Predicated region
    $region178: #{forward.1} parent=1 // pred_check
      _
    $region179: #{forward.1} parent=1 // pred_check_branch
      %446 = sbr.rel (0) target = $region181
    $region180: #{forward.1} parent=1 // pred_region
      %447 = dma.done [#allocation24], 32
    $region181: #{forward.1} parent=1 // pred_fallthru
      _
    // Predicated region
    $region182: #{forward.1} parent=1 // pred_check
      _
    $region183: #{forward.1} parent=1 // pred_check_branch
      %449 = sbr.rel (0) target = $region185
    $region184: #{forward.1} parent=1 // pred_region
      %450 = dma.done [#allocation24], 32
    $region185: #{forward.1} parent=1 // pred_fallthru
      _
    // Predicated region
    $region186: #{forward.1} parent=1 // pred_check
      _
    $region187: #{forward.1} parent=1 // pred_check_branch
      %452 = sbr.rel (0) target = $region189
    $region188: #{forward.1} parent=1 // pred_region
      %453 = dma.done [#allocation27], 2048
    $region189: #{forward.1} parent=1 // pred_fallthru
      _
    // Predicated region
    $region190: #{forward.1} parent=1 // pred_check
      _
    $region191: #{forward.1} parent=1 // pred_check_branch
      %455 = sbr.rel (0) target = $region193
    $region192: #{forward.1} parent=1 // pred_region
      %456 = dma.done [#allocation27], 16
    $region193: #{forward.1} parent=1 // pred_fallthru
      _
    // Predicated region
    $region194: #{forward.1} parent=1 // pred_check
      _
    $region195: #{forward.1} parent=1 // pred_check_branch
      %458 = sbr.rel (0) target = $region197
    $region196: #{forward.1} parent=1 // pred_region
      %459 = dma.done [#allocation30], 16
    $region197: #{forward.1} parent=1 // pred_fallthru
      _
    // Predicated region
    $region198: #{forward.1} parent=1 // pred_check
      _
    $region199: #{forward.1} parent=1 // pred_check_branch
      %461 = sbr.rel (0) target = $region201
    $region200: #{forward.1} parent=1 // pred_region
      %462 = dma.done [#allocation30], 16
    $region201: #{forward.1} parent=1 // pred_fallthru
      _
    // Predicated region
    $region202: #{forward.1} parent=1 // pred_check
      _
    $region203: #{forward.1} parent=1 // pred_check_branch
      %464 = sbr.rel (0) target = $region205
    $region204: #{forward.1} parent=1 // pred_region
      %465 = dma.done [#allocation33], 4096
    $region205: #{forward.1} parent=1 // pred_fallthru
      _
    // Predicated region
    $region206: #{forward.1} parent=1 // pred_check
      _
    $region207: #{forward.1} parent=1 // pred_check_branch
      %467 = sbr.rel (0) target = $region209
    $region208: #{forward.1} parent=1 // pred_region
      %468 = dma.done [#allocation33], 32
    $region209: #{forward.1} parent=1 // pred_fallthru
      _
    // Predicated region
    $region210: #{forward.1} parent=1 // pred_check
      _
    $region211: #{forward.1} parent=1 // pred_check_branch
      %470 = sbr.rel (0) target = $region213
    $region212: #{forward.1} parent=1 // pred_region
      %471 = dma.done [#allocation36], 32
    $region213: #{forward.1} parent=1 // pred_fallthru
      _
    // Predicated region
    $region214: #{forward.1} parent=1 // pred_check
      _
    $region215: #{forward.1} parent=1 // pred_check_branch
      %473 = sbr.rel (0) target = $region217
    $region216: #{forward.1} parent=1 // pred_region
      %474 = dma.done [#allocation36], 32
    $region217: #{forward.1} parent=1 // pred_fallthru
      _
    // Predicated region
    $region218: #{forward.1} parent=1 // pred_check
      _
    $region219: #{forward.1} parent=1 // pred_check_branch
      %476 = sbr.rel (0) target = $region221
    $region220: #{forward.1} parent=1 // pred_region
      %477 = dma.done [#allocation39], 4096
    $region221: #{forward.1} parent=1 // pred_fallthru
      _
    // Predicated region
    $region222: #{forward.1} parent=1 // pred_check
      _
    $region223: #{forward.1} parent=1 // pred_check_branch
      %479 = sbr.rel (0) target = $region225
    $region224: #{forward.1} parent=1 // pred_region
      %480 = dma.done [#allocation39], 32
    $region225: #{forward.1} parent=1 // pred_fallthru
      _
    // Predicated region
    $region226: #{forward.1} parent=1 // pred_check
      _
    $region227: #{forward.1} parent=1 // pred_check_branch
      %482 = sbr.rel (0) target = $region229
    $region228: #{forward.1} parent=1 // pred_region
      %483 = dma.done [#allocation42], 32
    $region229: #{forward.1} parent=1 // pred_fallthru
      _
    // Predicated region
    $region230: #{forward.1} parent=1 // pred_check
      _
    $region231: #{forward.1} parent=1 // pred_check_branch
      %485 = sbr.rel (0) target = $region233
    $region232: #{forward.1} parent=1 // pred_region
      %486 = dma.done [#allocation42], 32
    $region233: #{forward.1} parent=1 // pred_fallthru
      _
    // Predicated region
    $region234: #{forward.1} parent=1 // pred_check
      _
    $region235: #{forward.1} parent=1 // pred_check_branch
      %488 = sbr.rel (0) target = $region237
    $region236: #{forward.1} parent=1 // pred_region
      %489 = dma.done [#allocation45], 16
    $region237: #{forward.1} parent=1 // pred_fallthru
      _
    %v490 = vld [vmem:[%s1] sm:$0xff]
    %v491 = vld [vmem:[%s1 + $0x8] sm:$0xff]
    %v492 = vld [vmem:[#allocation2] sm:$0xff]
    %v493 = vld [vmem:[#allocation2 + $0x8] sm:$0xff]
    %v494 = vld [vmem:[#allocation2 + $0x10] sm:$0xff]
    %v495 = vld [vmem:[#allocation2 + $0x18] sm:$0xff]
    %v496 = vld [vmem:[#allocation2 + $0x20] sm:$0xff]
    %v497 = vld [vmem:[#allocation2 + $0x28] sm:$0xff]
    %v498 = vld [vmem:[#allocation2 + $0x30] sm:$0xff]
    %v499 = vld [vmem:[#allocation2 + $0x38] sm:$0xff]
    %v500 = vld [vmem:[#allocation2 + $0x40] sm:$0xff]
    %v501 = vld [vmem:[#allocation2 + $0x48] sm:$0xff]
    %v502 = vld [vmem:[#allocation2 + $0x50] sm:$0xff]
    %v503 = vld [vmem:[#allocation2 + $0x58] sm:$0xff]
    %v504 = vld [vmem:[#allocation2 + $0x60] sm:$0xff]
    %v505 = vld [vmem:[#allocation2 + $0x68] sm:$0xff]
    %v506 = vld [vmem:[#allocation2 + $0x70] sm:$0xff]
    %v507 = vld [vmem:[#allocation2 + $0x78] sm:$0xff]
    %v508 = vld [vmem:[#allocation2 + $0x80] sm:$0xff]
    %v509 = vld [vmem:[#allocation2 + $0x88] sm:$0xff]
    %v510 = vld [vmem:[#allocation2 + $0x90] sm:$0xff]
    %v511 = vld [vmem:[#allocation2 + $0x98] sm:$0xff]
    %v512 = vld [vmem:[#allocation2 + $0xa0] sm:$0xff]
    %v513 = vld [vmem:[#allocation2 + $0xa8] sm:$0xff]
    %v514 = vld [vmem:[#allocation2 + $0xb0] sm:$0xff]
    %v515 = vld [vmem:[#allocation2 + $0xb8] sm:$0xff]
    %v516 = vld [vmem:[#allocation2 + $0xc0] sm:$0xff]
    %v517 = vld [vmem:[#allocation2 + $0xc8] sm:$0xff]
    %v518 = vld [vmem:[#allocation2 + $0xd0] sm:$0xff]
    %v519 = vld [vmem:[#allocation2 + $0xd8] sm:$0xff]
    %v520 = vld [vmem:[#allocation2 + $0xe0] sm:$0xff]
    %v521 = vld [vmem:[#allocation2 + $0xe8] sm:$0xff]
    %v522 = vld [vmem:[#allocation2 + $0xf0] sm:$0xff]
    %v523 = vld [vmem:[#allocation2 + $0xf8] sm:$0xff]
    %v524 = vld [vmem:[#allocation5] sm:$0x1]
    %v526 = vlaneseq
    %v527 = vshrl.u32 %v526, 7
    %v528 = vsub.s32 0, %v527
    %v529 = vrot.slane %v524, %v528
    %531 = vmatprep.subr.mxu0 0.0
    %532 = vmatpush1.msra.mxu0 %v492
    %533 = vmatprep.subr.mxu0 0.0
    %534 = vmatpush1.msra.mxu0 %v493
    %535 = vmatprep.subr.mxu0 0.0
    %536 = vmatpush1.msra.mxu0 %v494
    %537 = vmatprep.subr.mxu0 0.0
    %538 = vmatpush1.msra.mxu0 %v495
    %539 = vmatprep.subr.mxu0 0.0
    %540 = vmatpush1.msra.mxu0 %v496
    %541 = vmatprep.subr.mxu0 0.0
    %542 = vmatpush1.msra.mxu0 %v497
    %543 = vmatprep.subr.mxu0 0.0
    %544 = vmatpush1.msra.mxu0 %v498
    %545 = vmatprep.subr.mxu0 0.0
    %546 = vmatpush1.msra.mxu0 %v499
    %547 = vmatprep.subr.mxu0 0.0
    %548 = vmatpush1.msra.mxu0 %v500
    %549 = vmatprep.subr.mxu0 0.0
    %550 = vmatpush1.msra.mxu0 %v501
    %551 = vmatprep.subr.mxu0 0.0
    %552 = vmatpush1.msra.mxu0 %v502
    %553 = vmatprep.subr.mxu0 0.0
    %554 = vmatpush1.msra.mxu0 %v503
    %555 = vmatprep.subr.mxu0 0.0
    %556 = vmatpush1.msra.mxu0 %v504
    %557 = vmatprep.subr.mxu0 0.0
    %558 = vmatpush1.msra.mxu0 %v505
    %559 = vmatprep.subr.mxu0 0.0
    %560 = vmatpush1.msra.mxu0 %v506
    %561 = vmatprep.subr.mxu0 0.0
    %562 = vmatpush1.msra.mxu0 %v507
    %563 = vmatprep.subr.mxu0 0.0
    %564 = vmatpush1.msra.mxu0 %v508
    %565 = vmatprep.subr.mxu0 0.0
    %566 = vmatpush1.msra.mxu0 %v509
    %567 = vmatprep.subr.mxu0 0.0
    %568 = vmatpush1.msra.mxu0 %v510
    %569 = vmatprep.subr.mxu0 0.0
    %570 = vmatpush1.msra.mxu0 %v511
    %571 = vmatprep.subr.mxu0 0.0
    %572 = vmatpush1.msra.mxu0 %v512
    %573 = vmatprep.subr.mxu0 0.0
    %574 = vmatpush1.msra.mxu0 %v513
    %575 = vmatprep.subr.mxu0 0.0
    %576 = vmatpush1.msra.mxu0 %v514
    %577 = vmatprep.subr.mxu0 0.0
    %578 = vmatpush1.msra.mxu0 %v515
    %579 = vmatprep.subr.mxu0 0.0
    %580 = vmatpush1.msra.mxu0 %v516
    %581 = vmatprep.subr.mxu0 0.0
    %582 = vmatpush1.msra.mxu0 %v517
    %583 = vmatprep.subr.mxu0 0.0
    %584 = vmatpush1.msra.mxu0 %v518
    %585 = vmatprep.subr.mxu0 0.0
    %586 = vmatpush1.msra.mxu0 %v519
    %587 = vmatprep.subr.mxu0 0.0
    %588 = vmatpush1.msra.mxu0 %v520
    %589 = vmatprep.subr.mxu0 0.0
    %590 = vmatpush1.msra.mxu0 %v521
    %591 = vmatprep.subr.mxu0 0.0
    %592 = vmatpush1.msra.mxu0 %v522
    %593 = vmatprep.subr.mxu0 0.0
    %594 = vmatpush1.msra.mxu0 %v523
    %595 = vmatprep.mubr.f32.mxu0 %v491
    %596 = vmatmul.mubr.f32.gmra.mrb[0].mxu0 %v490
    %v597 = vpop.f32.mrb[0].mxu0
    %v598 = vadd.f32 %v529, %v597
    %v599 = vpop.f32.mrb[0].mxu0
    %600 = vdwg.mxu0
    %v601 = vld [vmem:[#allocation7] sm:$0x1]
    %v602 = vld [vmem:[#allocation8] sm:$0x1]
    %603 = vadd.xlane.f32.xlu0 %v598
    %v604 = vpop.xlane.xlu0 %603
    %v605 = vmul.f32 %v604, 0.0078125
    %v606 = vmul.f32 %v598, %v598
    %607 = vadd.xlane.f32.xlu0 %v606
    %v608 = vpop.xlane.xlu0 %607
    %v609 = vmul.f32 %v608, 0.0078125
    %v610 = vmul.f32 %v605, %v605
    %v611 = vsub.f32 %v609, %v610
    %v612 = vmax.f32 %v611, 0.0
    %v613 = vsub.f32 %v598, %v605
    %v614 = vadd.f32 %v612, 1e-05
    %v615 = vrsqrt.pop %v614
    %v616 = vmul.f32 %v613, %v615
    %v618 = vlaneseq
    %v619 = vshrl.u32 %v618, 7
    %v620 = vsub.s32 0, %v619
    %v621 = vrot.slane %v601, %v620
    %v623 = vmul.f32 %v616, %v621
    %v625 = vlaneseq
    %v626 = vshrl.u32 %v625, 7
    %v627 = vsub.s32 0, %v626
    %v628 = vrot.slane %v602, %v627
    %v630 = vadd.f32 %v623, %v628
    %vm631 = vcmp.ge.f32.partialorder %v630, 0.0
    %v632 = vmul.f32 %v630, 0.2
    %v633 = vsel %vm631, %v630, %v632
    %v634 = vld [vmem:[#allocation10] sm:$0xff]
    %v635 = vld [vmem:[#allocation10 + $0x8] sm:$0xff]
    %v636 = vld [vmem:[#allocation10 + $0x10] sm:$0xff]
    %v637 = vld [vmem:[#allocation10 + $0x18] sm:$0xff]
    %v638 = vld [vmem:[#allocation10 + $0x20] sm:$0xff]
    %v639 = vld [vmem:[#allocation10 + $0x28] sm:$0xff]
    %v640 = vld [vmem:[#allocation10 + $0x30] sm:$0xff]
    %v641 = vld [vmem:[#allocation10 + $0x38] sm:$0xff]
    %v642 = vld [vmem:[#allocation10 + $0x40] sm:$0xff]
    %v643 = vld [vmem:[#allocation10 + $0x48] sm:$0xff]
    %v644 = vld [vmem:[#allocation10 + $0x50] sm:$0xff]
    %v645 = vld [vmem:[#allocation10 + $0x58] sm:$0xff]
    %v646 = vld [vmem:[#allocation10 + $0x60] sm:$0xff]
    %v647 = vld [vmem:[#allocation10 + $0x68] sm:$0xff]
    %v648 = vld [vmem:[#allocation10 + $0x70] sm:$0xff]
    %v649 = vld [vmem:[#allocation10 + $0x78] sm:$0xff]
    %v650 = vld [vmem:[#allocation11] sm:$0x1]
    %v652 = vlaneseq
    %v653 = vshrl.u32 %v652, 7
    %v654 = vsub.s32 0, %v653
    %v655 = vrot.slane %v650, %v654
    %657 = vmatprep.subr.mxu0 0.0
    %658 = vmatpush1.msra.mxu0 %v634
    %659 = vmatprep.subr.mxu0 0.0
    %660 = vmatpush1.msra.mxu0 %v635
    %661 = vmatprep.subr.mxu0 0.0
    %662 = vmatpush1.msra.mxu0 %v636
    %663 = vmatprep.subr.mxu0 0.0
    %664 = vmatpush1.msra.mxu0 %v637
    %665 = vmatprep.subr.mxu0 0.0
    %666 = vmatpush1.msra.mxu0 %v638
    %667 = vmatprep.subr.mxu0 0.0
    %668 = vmatpush1.msra.mxu0 %v639
    %669 = vmatprep.subr.mxu0 0.0
    %670 = vmatpush1.msra.mxu0 %v640
    %671 = vmatprep.subr.mxu0 0.0
    %672 = vmatpush1.msra.mxu0 %v641
    %673 = vmatprep.subr.mxu0 0.0
    %674 = vmatpush1.msra.mxu0 %v642
    %675 = vmatprep.subr.mxu0 0.0
    %676 = vmatpush1.msra.mxu0 %v643
    %677 = vmatprep.subr.mxu0 0.0
    %678 = vmatpush1.msra.mxu0 %v644
    %679 = vmatprep.subr.mxu0 0.0
    %680 = vmatpush1.msra.mxu0 %v645
    %681 = vmatprep.subr.mxu0 0.0
    %682 = vmatpush1.msra.mxu0 %v646
    %683 = vmatprep.subr.mxu0 0.0
    %684 = vmatpush1.msra.mxu0 %v647
    %685 = vmatprep.subr.mxu0 0.0
    %686 = vmatpush1.msra.mxu0 %v648
    %687 = vmatprep.subr.mxu0 0.0
    %688 = vmatpush1.msra.mxu0 %v649
    %689 = vmatprep.subr.mxu0 0.0
    %690 = vmatpush1.msra.mxu0 0.0
    %691 = vmatprep.subr.mxu0 0.0
    %692 = vmatpush1.msra.mxu0 0.0
    %693 = vmatprep.subr.mxu0 0.0
    %694 = vmatpush1.msra.mxu0 0.0
    %695 = vmatprep.subr.mxu0 0.0
    %696 = vmatpush1.msra.mxu0 0.0
    %697 = vmatprep.subr.mxu0 0.0
    %698 = vmatpush1.msra.mxu0 0.0
    %699 = vmatprep.subr.mxu0 0.0
    %700 = vmatpush1.msra.mxu0 0.0
    %701 = vmatprep.subr.mxu0 0.0
    %702 = vmatpush1.msra.mxu0 0.0
    %703 = vmatprep.subr.mxu0 0.0
    %704 = vmatpush1.msra.mxu0 0.0
    %705 = vmatprep.subr.mxu0 0.0
    %706 = vmatpush1.msra.mxu0 0.0
    %707 = vmatprep.subr.mxu0 0.0
    %708 = vmatpush1.msra.mxu0 0.0
    %709 = vmatprep.subr.mxu0 0.0
    %710 = vmatpush1.msra.mxu0 0.0
    %711 = vmatprep.subr.mxu0 0.0
    %712 = vmatpush1.msra.mxu0 0.0
    %713 = vmatprep.subr.mxu0 0.0
    %714 = vmatpush1.msra.mxu0 0.0
    %715 = vmatprep.subr.mxu0 0.0
    %716 = vmatpush1.msra.mxu0 0.0
    %717 = vmatprep.subr.mxu0 0.0
    %718 = vmatpush1.msra.mxu0 0.0
    %719 = vmatprep.subr.mxu0 0.0
    %720 = vmatpush1.msra.mxu0 0.0
    %721 = vmatprep.mubr.f32.mxu0 0.0
    %722 = vmatmul.mubr.f32.gmra.mrb[0].mxu0 %v633
    %v723 = vpop.f32.mrb[0].mxu0
    %v724 = vadd.f32 %v655, %v723
    %v725 = vpop.f32.mrb[0].mxu0
    %726 = vdwg.mxu0
    %v727 = vld [vmem:[#allocation13] sm:$0x1]
    %v728 = vld [vmem:[#allocation14] sm:$0x1]
    %729 = vadd.xlane.f32.xlu0 %v724
    %v730 = vpop.xlane.xlu0 %729
    %v731 = vmul.f32 %v730, 0.010416667
    %v732 = vmul.f32 %v724, %v724
    %733 = vadd.xlane.f32.xlu0 %v732
    %v734 = vpop.xlane.xlu0 %733
    %v735 = vmul.f32 %v734, 0.010416667
    %v736 = vmul.f32 %v731, %v731
    %v737 = vsub.f32 %v735, %v736
    %v738 = vmax.f32 %v737, 0.0
    %v739 = vsub.f32 %v724, %v731
    %v740 = vadd.f32 %v738, 1e-05
    %v741 = vrsqrt.pop %v740
    %v742 = vmul.f32 %v739, %v741
    %v744 = vlaneseq
    %v745 = vshrl.u32 %v744, 7
    %v746 = vsub.s32 0, %v745
    %v747 = vrot.slane %v727, %v746
    %v749 = vmul.f32 %v742, %v747
    %v751 = vlaneseq
    %v752 = vshrl.u32 %v751, 7
    %v753 = vsub.s32 0, %v752
    %v754 = vrot.slane %v728, %v753
    %v756 = vadd.f32 %v749, %v754
    %vm757 = vcmp.ge.f32.partialorder %v756, 0.0
    %v758 = vmul.f32 %v756, 0.2
    %v759 = vsel %vm757, %v756, %v758
    %v760 = vld [vmem:[#allocation16] sm:$0xff]
    %v761 = vld [vmem:[#allocation16 + $0x8] sm:$0xff]
    %v762 = vld [vmem:[#allocation16 + $0x10] sm:$0xff]
    %v763 = vld [vmem:[#allocation16 + $0x18] sm:$0xff]
    %v764 = vld [vmem:[#allocation16 + $0x20] sm:$0xff]
    %v765 = vld [vmem:[#allocation16 + $0x28] sm:$0xff]
    %v766 = vld [vmem:[#allocation16 + $0x30] sm:$0xff]
    %v767 = vld [vmem:[#allocation16 + $0x38] sm:$0xff]
    %v768 = vld [vmem:[#allocation16 + $0x40] sm:$0xff]
    %v769 = vld [vmem:[#allocation16 + $0x48] sm:$0xff]
    %v770 = vld [vmem:[#allocation16 + $0x50] sm:$0xff]
    %v771 = vld [vmem:[#allocation16 + $0x58] sm:$0xff]
    %v772 = vld [vmem:[#allocation16 + $0x60] sm:$0xff]
    %v773 = vld [vmem:[#allocation16 + $0x68] sm:$0xff]
    %v774 = vld [vmem:[#allocation16 + $0x70] sm:$0xff]
    %v775 = vld [vmem:[#allocation16 + $0x78] sm:$0xff]
    %v776 = vld [vmem:[%s21] sm:$0x1]
    %v778 = vlaneseq
    %v779 = vshrl.u32 %v778, 7
    %v780 = vsub.s32 0, %v779
    %v781 = vrot.slane %v776, %v780
    %783 = vmatprep.subr.mxu0 0.0
    %784 = vmatpush1.msra.mxu0 %v760
    %785 = vmatprep.subr.mxu0 0.0
    %786 = vmatpush1.msra.mxu0 %v761
    %787 = vmatprep.subr.mxu0 0.0
    %788 = vmatpush1.msra.mxu0 %v762
    %789 = vmatprep.subr.mxu0 0.0
    %790 = vmatpush1.msra.mxu0 %v763
    %791 = vmatprep.subr.mxu0 0.0
    %792 = vmatpush1.msra.mxu0 %v764
    %793 = vmatprep.subr.mxu0 0.0
    %794 = vmatpush1.msra.mxu0 %v765
    %795 = vmatprep.subr.mxu0 0.0
    %796 = vmatpush1.msra.mxu0 %v766
    %797 = vmatprep.subr.mxu0 0.0
    %798 = vmatpush1.msra.mxu0 %v767
    %799 = vmatprep.subr.mxu0 0.0
    %800 = vmatpush1.msra.mxu0 %v768
    %801 = vmatprep.subr.mxu0 0.0
    %802 = vmatpush1.msra.mxu0 %v769
    %803 = vmatprep.subr.mxu0 0.0
    %804 = vmatpush1.msra.mxu0 %v770
    %805 = vmatprep.subr.mxu0 0.0
    %806 = vmatpush1.msra.mxu0 %v771
    %807 = vmatprep.subr.mxu0 0.0
    %808 = vmatpush1.msra.mxu0 %v772
    %809 = vmatprep.subr.mxu0 0.0
    %810 = vmatpush1.msra.mxu0 %v773
    %811 = vmatprep.subr.mxu0 0.0
    %812 = vmatpush1.msra.mxu0 %v774
    %813 = vmatprep.subr.mxu0 0.0
    %814 = vmatpush1.msra.mxu0 %v775
    %815 = vmatprep.subr.mxu0 0.0
    %816 = vmatpush1.msra.mxu0 0.0
    %817 = vmatprep.subr.mxu0 0.0
    %818 = vmatpush1.msra.mxu0 0.0
    %819 = vmatprep.subr.mxu0 0.0
    %820 = vmatpush1.msra.mxu0 0.0
    %821 = vmatprep.subr.mxu0 0.0
    %822 = vmatpush1.msra.mxu0 0.0
    %823 = vmatprep.subr.mxu0 0.0
    %824 = vmatpush1.msra.mxu0 0.0
    %825 = vmatprep.subr.mxu0 0.0
    %826 = vmatpush1.msra.mxu0 0.0
    %827 = vmatprep.subr.mxu0 0.0
    %828 = vmatpush1.msra.mxu0 0.0
    %829 = vmatprep.subr.mxu0 0.0
    %830 = vmatpush1.msra.mxu0 0.0
    %831 = vmatprep.subr.mxu0 0.0
    %832 = vmatpush1.msra.mxu0 0.0
    %833 = vmatprep.subr.mxu0 0.0
    %834 = vmatpush1.msra.mxu0 0.0
    %835 = vmatprep.subr.mxu0 0.0
    %836 = vmatpush1.msra.mxu0 0.0
    %837 = vmatprep.subr.mxu0 0.0
    %838 = vmatpush1.msra.mxu0 0.0
    %839 = vmatprep.subr.mxu0 0.0
    %840 = vmatpush1.msra.mxu0 0.0
    %841 = vmatprep.subr.mxu0 0.0
    %842 = vmatpush1.msra.mxu0 0.0
    %843 = vmatprep.subr.mxu0 0.0
    %844 = vmatpush1.msra.mxu0 0.0
    %845 = vmatprep.subr.mxu0 0.0
    %846 = vmatpush1.msra.mxu0 0.0
    %847 = vmatprep.mubr.f32.mxu0 0.0
    %848 = vmatmul.mubr.f32.gmra.mrb[0].mxu0 %v759
    %v849 = vpop.f32.mrb[0].mxu0
    %v850 = vadd.f32 %v781, %v849
    %v851 = vpop.f32.mrb[0].mxu0
    %852 = vdwg.mxu0
    %v853 = vld [vmem:[#allocation17] sm:$0x1]
    %v854 = vld [vmem:[#allocation19] sm:$0x1]
    %855 = vadd.xlane.f32.xlu0 %v850
    %v856 = vpop.xlane.xlu0 %855
    %v857 = vmul.f32 %v856, 0.010416667
    %v858 = vmul.f32 %v850, %v850
    %859 = vadd.xlane.f32.xlu0 %v858
    %v860 = vpop.xlane.xlu0 %859
    %v861 = vmul.f32 %v860, 0.010416667
    %v862 = vmul.f32 %v857, %v857
    %v863 = vsub.f32 %v861, %v862
    %v864 = vmax.f32 %v863, 0.0
    %v865 = vsub.f32 %v850, %v857
    %v866 = vadd.f32 %v864, 1e-05
    %v867 = vrsqrt.pop %v866
    %v868 = vmul.f32 %v865, %v867
    %v870 = vlaneseq
    %v871 = vshrl.u32 %v870, 7
    %v872 = vsub.s32 0, %v871
    %v873 = vrot.slane %v853, %v872
    %v875 = vmul.f32 %v868, %v873
    %v877 = vlaneseq
    %v878 = vshrl.u32 %v877, 7
    %v879 = vsub.s32 0, %v878
    %v880 = vrot.slane %v854, %v879
    %v882 = vadd.f32 %v875, %v880
    %vm883 = vcmp.ge.f32.partialorder %v882, 0.0
    %v884 = vmul.f32 %v882, 0.2
    %v885 = vsel %vm883, %v882, %v884
    %v886 = vld [vmem:[#allocation20] sm:$0xff]
    %v887 = vld [vmem:[#allocation20 + $0x8] sm:$0xff]
    %v888 = vld [vmem:[#allocation20 + $0x10] sm:$0xff]
    %v889 = vld [vmem:[#allocation20 + $0x18] sm:$0xff]
    %v890 = vld [vmem:[#allocation20 + $0x20] sm:$0xff]
    %v891 = vld [vmem:[#allocation20 + $0x28] sm:$0xff]
    %v892 = vld [vmem:[#allocation20 + $0x30] sm:$0xff]
    %v893 = vld [vmem:[#allocation20 + $0x38] sm:$0xff]
    %v894 = vld [vmem:[#allocation20 + $0x40] sm:$0xff]
    %v895 = vld [vmem:[#allocation20 + $0x48] sm:$0xff]
    %v896 = vld [vmem:[#allocation20 + $0x50] sm:$0xff]
    %v897 = vld [vmem:[#allocation20 + $0x58] sm:$0xff]
    %v898 = vld [vmem:[#allocation20 + $0x60] sm:$0xff]
    %v899 = vld [vmem:[#allocation20 + $0x68] sm:$0xff]
    %v900 = vld [vmem:[#allocation20 + $0x70] sm:$0xff]
    %v901 = vld [vmem:[#allocation20 + $0x78] sm:$0xff]
    %v902 = vld [vmem:[#allocation22] sm:$0x1]
    %v904 = vlaneseq
    %v905 = vshrl.u32 %v904, 7
    %v906 = vsub.s32 0, %v905
    %v907 = vrot.slane %v902, %v906
    %909 = vmatprep.subr.mxu0 0.0
    %910 = vmatpush1.msra.mxu0 %v886
    %911 = vmatprep.subr.mxu0 0.0
    %912 = vmatpush1.msra.mxu0 %v887
    %913 = vmatprep.subr.mxu0 0.0
    %914 = vmatpush1.msra.mxu0 %v888
    %915 = vmatprep.subr.mxu0 0.0
    %916 = vmatpush1.msra.mxu0 %v889
    %917 = vmatprep.subr.mxu0 0.0
    %918 = vmatpush1.msra.mxu0 %v890
    %919 = vmatprep.subr.mxu0 0.0
    %920 = vmatpush1.msra.mxu0 %v891
    %921 = vmatprep.subr.mxu0 0.0
    %922 = vmatpush1.msra.mxu0 %v892
    %923 = vmatprep.subr.mxu0 0.0
    %924 = vmatpush1.msra.mxu0 %v893
    %925 = vmatprep.subr.mxu0 0.0
    %926 = vmatpush1.msra.mxu0 %v894
    %927 = vmatprep.subr.mxu0 0.0
    %928 = vmatpush1.msra.mxu0 %v895
    %929 = vmatprep.subr.mxu0 0.0
    %930 = vmatpush1.msra.mxu0 %v896
    %931 = vmatprep.subr.mxu0 0.0
    %932 = vmatpush1.msra.mxu0 %v897
    %933 = vmatprep.subr.mxu0 0.0
    %934 = vmatpush1.msra.mxu0 %v898
    %935 = vmatprep.subr.mxu0 0.0
    %936 = vmatpush1.msra.mxu0 %v899
    %937 = vmatprep.subr.mxu0 0.0
    %938 = vmatpush1.msra.mxu0 %v900
    %939 = vmatprep.subr.mxu0 0.0
    %940 = vmatpush1.msra.mxu0 %v901
    %941 = vmatprep.subr.mxu0 0.0
    %942 = vmatpush1.msra.mxu0 0.0
    %943 = vmatprep.subr.mxu0 0.0
    %944 = vmatpush1.msra.mxu0 0.0
    %945 = vmatprep.subr.mxu0 0.0
    %946 = vmatpush1.msra.mxu0 0.0
    %947 = vmatprep.subr.mxu0 0.0
    %948 = vmatpush1.msra.mxu0 0.0
    %949 = vmatprep.subr.mxu0 0.0
    %950 = vmatpush1.msra.mxu0 0.0
    %951 = vmatprep.subr.mxu0 0.0
    %952 = vmatpush1.msra.mxu0 0.0
    %953 = vmatprep.subr.mxu0 0.0
    %954 = vmatpush1.msra.mxu0 0.0
    %955 = vmatprep.subr.mxu0 0.0
    %956 = vmatpush1.msra.mxu0 0.0
    %957 = vmatprep.subr.mxu0 0.0
    %958 = vmatpush1.msra.mxu0 0.0
    %959 = vmatprep.subr.mxu0 0.0
    %960 = vmatpush1.msra.mxu0 0.0
    %961 = vmatprep.subr.mxu0 0.0
    %962 = vmatpush1.msra.mxu0 0.0
    %963 = vmatprep.subr.mxu0 0.0
    %964 = vmatpush1.msra.mxu0 0.0
    %965 = vmatprep.subr.mxu0 0.0
    %966 = vmatpush1.msra.mxu0 0.0
    %967 = vmatprep.subr.mxu0 0.0
    %968 = vmatpush1.msra.mxu0 0.0
    %969 = vmatprep.subr.mxu0 0.0
    %970 = vmatpush1.msra.mxu0 0.0
    %971 = vmatprep.subr.mxu0 0.0
    %972 = vmatpush1.msra.mxu0 0.0
    %973 = vmatprep.mubr.f32.mxu0 0.0
    %974 = vmatmul.mubr.f32.gmra.mrb[0].mxu0 %v885
    %v975 = vpop.f32.mrb[0].mxu0
    %v976 = vadd.f32 %v907, %v975
    %v977 = vpop.f32.mrb[0].mxu0
    %978 = vdwg.mxu0
    %v979 = vld [vmem:[#allocation23] sm:$0x1]
    %v981 = vlaneseq
    %v982 = vshrl.u32 %v981, 7
    %v983 = vsub.s32 0, %v982
    %v984 = vrot.slane %v979, %v983
    %v986 = vmul.f32 %v976, %v984
    %v987 = vadd.f32 %v759, %v986
    %v988 = vld [vmem:[#allocation25] sm:$0x1]
    %v990 = vlaneseq
    %v991 = vshrl.u32 %v990, 7
    %v992 = vsub.s32 0, %v991
    %v993 = vrot.slane %v988, %v992
    %v995 = vadd.f32 %v987, %v993
    %s996 = scalar_lea.vmem [#allocation16], 128
    %v997 = vld [vmem:[%s996] sm:$0xff]
    %v998 = vld [vmem:[%s996 + $0x8] sm:$0xff]
    %v999 = vld [vmem:[%s996 + $0x10] sm:$0xff]
    %v1000 = vld [vmem:[%s996 + $0x18] sm:$0xff]
    %v1001 = vld [vmem:[%s996 + $0x20] sm:$0xff]
    %v1002 = vld [vmem:[%s996 + $0x28] sm:$0xff]
    %v1003 = vld [vmem:[%s996 + $0x30] sm:$0xff]
    %v1004 = vld [vmem:[%s996 + $0x38] sm:$0xff]
    %v1005 = vld [vmem:[%s996 + $0x40] sm:$0xff]
    %v1006 = vld [vmem:[%s996 + $0x48] sm:$0xff]
    %v1007 = vld [vmem:[%s996 + $0x50] sm:$0xff]
    %v1008 = vld [vmem:[%s996 + $0x58] sm:$0xff]
    %v1009 = vld [vmem:[%s996 + $0x60] sm:$0xff]
    %v1010 = vld [vmem:[%s996 + $0x68] sm:$0xff]
    %v1011 = vld [vmem:[%s996 + $0x70] sm:$0xff]
    %v1012 = vld [vmem:[%s996 + $0x78] sm:$0xff]
    %s1013 = scalar_lea.vmem %s21, 1
    %v1014 = vld [vmem:[%s1013] sm:$0x1]
    %v1016 = vlaneseq
    %v1017 = vshrl.u32 %v1016, 7
    %v1018 = vsub.s32 0, %v1017
    %v1019 = vrot.slane %v1014, %v1018
    %1021 = vmatprep.subr.mxu0 0.0
    %1022 = vmatpush1.msra.mxu0 %v997
    %1023 = vmatprep.subr.mxu0 0.0
    %1024 = vmatpush1.msra.mxu0 %v998
    %1025 = vmatprep.subr.mxu0 0.0
    %1026 = vmatpush1.msra.mxu0 %v999
    %1027 = vmatprep.subr.mxu0 0.0
    %1028 = vmatpush1.msra.mxu0 %v1000
    %1029 = vmatprep.subr.mxu0 0.0
    %1030 = vmatpush1.msra.mxu0 %v1001
    %1031 = vmatprep.subr.mxu0 0.0
    %1032 = vmatpush1.msra.mxu0 %v1002
    %1033 = vmatprep.subr.mxu0 0.0
    %1034 = vmatpush1.msra.mxu0 %v1003
    %1035 = vmatprep.subr.mxu0 0.0
    %1036 = vmatpush1.msra.mxu0 %v1004
    %1037 = vmatprep.subr.mxu0 0.0
    %1038 = vmatpush1.msra.mxu0 %v1005
    %1039 = vmatprep.subr.mxu0 0.0
    %1040 = vmatpush1.msra.mxu0 %v1006
    %1041 = vmatprep.subr.mxu0 0.0
    %1042 = vmatpush1.msra.mxu0 %v1007
    %1043 = vmatprep.subr.mxu0 0.0
    %1044 = vmatpush1.msra.mxu0 %v1008
    %1045 = vmatprep.subr.mxu0 0.0
    %1046 = vmatpush1.msra.mxu0 %v1009
    %1047 = vmatprep.subr.mxu0 0.0
    %1048 = vmatpush1.msra.mxu0 %v1010
    %1049 = vmatprep.subr.mxu0 0.0
    %1050 = vmatpush1.msra.mxu0 %v1011
    %1051 = vmatprep.subr.mxu0 0.0
    %1052 = vmatpush1.msra.mxu0 %v1012
    %1053 = vmatprep.subr.mxu0 0.0
    %1054 = vmatpush1.msra.mxu0 0.0
    %1055 = vmatprep.subr.mxu0 0.0
    %1056 = vmatpush1.msra.mxu0 0.0
    %1057 = vmatprep.subr.mxu0 0.0
    %1058 = vmatpush1.msra.mxu0 0.0
    %1059 = vmatprep.subr.mxu0 0.0
    %1060 = vmatpush1.msra.mxu0 0.0
    %1061 = vmatprep.subr.mxu0 0.0
    %1062 = vmatpush1.msra.mxu0 0.0
    %1063 = vmatprep.subr.mxu0 0.0
    %1064 = vmatpush1.msra.mxu0 0.0
    %1065 = vmatprep.subr.mxu0 0.0
    %1066 = vmatpush1.msra.mxu0 0.0
    %1067 = vmatprep.subr.mxu0 0.0
    %1068 = vmatpush1.msra.mxu0 0.0
    %1069 = vmatprep.subr.mxu0 0.0
    %1070 = vmatpush1.msra.mxu0 0.0
    %1071 = vmatprep.subr.mxu0 0.0
    %1072 = vmatpush1.msra.mxu0 0.0
    %1073 = vmatprep.subr.mxu0 0.0
    %1074 = vmatpush1.msra.mxu0 0.0
    %1075 = vmatprep.subr.mxu0 0.0
    %1076 = vmatpush1.msra.mxu0 0.0
    %1077 = vmatprep.subr.mxu0 0.0
    %1078 = vmatpush1.msra.mxu0 0.0
    %1079 = vmatprep.subr.mxu0 0.0
    %1080 = vmatpush1.msra.mxu0 0.0
    %1081 = vmatprep.subr.mxu0 0.0
    %1082 = vmatpush1.msra.mxu0 0.0
    %1083 = vmatprep.subr.mxu0 0.0
    %1084 = vmatpush1.msra.mxu0 0.0
    %1085 = vmatprep.mubr.f32.mxu0 0.0
    %1086 = vmatmul.mubr.f32.gmra.mrb[0].mxu0 %v995
    %v1087 = vpop.f32.mrb[0].mxu0
    %v1088 = vadd.f32 %v1019, %v1087
    %v1089 = vpop.f32.mrb[0].mxu0
    %1090 = vdwg.mxu0
    %s1091 = scalar_lea.vmem [#allocation17], 1
    %v1092 = vld [vmem:[%s1091] sm:$0x1]
    %s1093 = scalar_lea.vmem [#allocation19], 1
    %v1094 = vld [vmem:[%s1093] sm:$0x1]
    %1095 = vadd.xlane.f32.xlu0 %v1088
    %v1096 = vpop.xlane.xlu0 %1095
    %v1097 = vmul.f32 %v1096, 0.010416667
    %v1098 = vmul.f32 %v1088, %v1088
    %1099 = vadd.xlane.f32.xlu0 %v1098
    %v1100 = vpop.xlane.xlu0 %1099
    %v1101 = vmul.f32 %v1100, 0.010416667
    %v1102 = vmul.f32 %v1097, %v1097
    %v1103 = vsub.f32 %v1101, %v1102
    %v1104 = vmax.f32 %v1103, 0.0
    %v1105 = vsub.f32 %v1088, %v1097
    %v1106 = vadd.f32 %v1104, 1e-05
    %v1107 = vrsqrt.pop %v1106
    %v1108 = vmul.f32 %v1105, %v1107
    %v1110 = vlaneseq
    %v1111 = vshrl.u32 %v1110, 7
    %v1112 = vsub.s32 0, %v1111
    %v1113 = vrot.slane %v1092, %v1112
    %v1115 = vmul.f32 %v1108, %v1113
    %v1117 = vlaneseq
    %v1118 = vshrl.u32 %v1117, 7
    %v1119 = vsub.s32 0, %v1118
    %v1120 = vrot.slane %v1094, %v1119
    %v1122 = vadd.f32 %v1115, %v1120
    %vm1123 = vcmp.ge.f32.partialorder %v1122, 0.0
    %v1124 = vmul.f32 %v1122, 0.2
    %v1125 = vsel %vm1123, %v1122, %v1124
    %s1126 = scalar_lea.vmem [#allocation20], 128
    %v1127 = vld [vmem:[%s1126] sm:$0xff]
    %v1128 = vld [vmem:[%s1126 + $0x8] sm:$0xff]
    %v1129 = vld [vmem:[%s1126 + $0x10] sm:$0xff]
    %v1130 = vld [vmem:[%s1126 + $0x18] sm:$0xff]
    %v1131 = vld [vmem:[%s1126 + $0x20] sm:$0xff]
    %v1132 = vld [vmem:[%s1126 + $0x28] sm:$0xff]
    %v1133 = vld [vmem:[%s1126 + $0x30] sm:$0xff]
    %v1134 = vld [vmem:[%s1126 + $0x38] sm:$0xff]
    %v1135 = vld [vmem:[%s1126 + $0x40] sm:$0xff]
    %v1136 = vld [vmem:[%s1126 + $0x48] sm:$0xff]
    %v1137 = vld [vmem:[%s1126 + $0x50] sm:$0xff]
    %v1138 = vld [vmem:[%s1126 + $0x58] sm:$0xff]
    %v1139 = vld [vmem:[%s1126 + $0x60] sm:$0xff]
    %v1140 = vld [vmem:[%s1126 + $0x68] sm:$0xff]
    %v1141 = vld [vmem:[%s1126 + $0x70] sm:$0xff]
    %v1142 = vld [vmem:[%s1126 + $0x78] sm:$0xff]
    %s1143 = scalar_lea.vmem [#allocation22], 1
    %v1144 = vld [vmem:[%s1143] sm:$0x1]
    %v1146 = vlaneseq
    %v1147 = vshrl.u32 %v1146, 7
    %v1148 = vsub.s32 0, %v1147
    %v1149 = vrot.slane %v1144, %v1148
    %1151 = vmatprep.subr.mxu0 0.0
    %1152 = vmatpush1.msra.mxu0 %v1127
    %1153 = vmatprep.subr.mxu0 0.0
    %1154 = vmatpush1.msra.mxu0 %v1128
    %1155 = vmatprep.subr.mxu0 0.0
    %1156 = vmatpush1.msra.mxu0 %v1129
    %1157 = vmatprep.subr.mxu0 0.0
    %1158 = vmatpush1.msra.mxu0 %v1130
    %1159 = vmatprep.subr.mxu0 0.0
    %1160 = vmatpush1.msra.mxu0 %v1131
    %1161 = vmatprep.subr.mxu0 0.0
    %1162 = vmatpush1.msra.mxu0 %v1132
    %1163 = vmatprep.subr.mxu0 0.0
    %1164 = vmatpush1.msra.mxu0 %v1133
    %1165 = vmatprep.subr.mxu0 0.0
    %1166 = vmatpush1.msra.mxu0 %v1134
    %1167 = vmatprep.subr.mxu0 0.0
    %1168 = vmatpush1.msra.mxu0 %v1135
    %1169 = vmatprep.subr.mxu0 0.0
    %1170 = vmatpush1.msra.mxu0 %v1136
    %1171 = vmatprep.subr.mxu0 0.0
    %1172 = vmatpush1.msra.mxu0 %v1137
    %1173 = vmatprep.subr.mxu0 0.0
    %1174 = vmatpush1.msra.mxu0 %v1138
    %1175 = vmatprep.subr.mxu0 0.0
    %1176 = vmatpush1.msra.mxu0 %v1139
    %1177 = vmatprep.subr.mxu0 0.0
    %1178 = vmatpush1.msra.mxu0 %v1140
    %1179 = vmatprep.subr.mxu0 0.0
    %1180 = vmatpush1.msra.mxu0 %v1141
    %1181 = vmatprep.subr.mxu0 0.0
    %1182 = vmatpush1.msra.mxu0 %v1142
    %1183 = vmatprep.subr.mxu0 0.0
    %1184 = vmatpush1.msra.mxu0 0.0
    %1185 = vmatprep.subr.mxu0 0.0
    %1186 = vmatpush1.msra.mxu0 0.0
    %1187 = vmatprep.subr.mxu0 0.0
    %1188 = vmatpush1.msra.mxu0 0.0
    %1189 = vmatprep.subr.mxu0 0.0
    %1190 = vmatpush1.msra.mxu0 0.0
    %1191 = vmatprep.subr.mxu0 0.0
    %1192 = vmatpush1.msra.mxu0 0.0
    %1193 = vmatprep.subr.mxu0 0.0
    %1194 = vmatpush1.msra.mxu0 0.0
    %1195 = vmatprep.subr.mxu0 0.0
    %1196 = vmatpush1.msra.mxu0 0.0
    %1197 = vmatprep.subr.mxu0 0.0
    %1198 = vmatpush1.msra.mxu0 0.0
    %1199 = vmatprep.subr.mxu0 0.0
    %1200 = vmatpush1.msra.mxu0 0.0
    %1201 = vmatprep.subr.mxu0 0.0
    %1202 = vmatpush1.msra.mxu0 0.0
    %1203 = vmatprep.subr.mxu0 0.0
    %1204 = vmatpush1.msra.mxu0 0.0
    %1205 = vmatprep.subr.mxu0 0.0
    %1206 = vmatpush1.msra.mxu0 0.0
    %1207 = vmatprep.subr.mxu0 0.0
    %1208 = vmatpush1.msra.mxu0 0.0
    %1209 = vmatprep.subr.mxu0 0.0
    %1210 = vmatpush1.msra.mxu0 0.0
    %1211 = vmatprep.subr.mxu0 0.0
    %1212 = vmatpush1.msra.mxu0 0.0
    %1213 = vmatprep.subr.mxu0 0.0
    %1214 = vmatpush1.msra.mxu0 0.0
    %1215 = vmatprep.mubr.f32.mxu0 0.0
    %1216 = vmatmul.mubr.f32.gmra.mrb[0].mxu0 %v1125
    %v1217 = vpop.f32.mrb[0].mxu0
    %v1218 = vadd.f32 %v1149, %v1217
    %v1219 = vpop.f32.mrb[0].mxu0
    %1220 = vdwg.mxu0
    %s1221 = scalar_lea.vmem [#allocation23], 1
    %v1222 = vld [vmem:[%s1221] sm:$0x1]
    %v1224 = vlaneseq
    %v1225 = vshrl.u32 %v1224, 7
    %v1226 = vsub.s32 0, %v1225
    %v1227 = vrot.slane %v1222, %v1226
    %v1229 = vmul.f32 %v1218, %v1227
    %v1230 = vadd.f32 %v995, %v1229
    %s1231 = scalar_lea.vmem [#allocation25], 1
    %v1232 = vld [vmem:[%s1231] sm:$0x1]
    %v1234 = vlaneseq
    %v1235 = vshrl.u32 %v1234, 7
    %v1236 = vsub.s32 0, %v1235
    %v1237 = vrot.slane %v1232, %v1236
    %v1239 = vadd.f32 %v1230, %v1237
    %v1240 = vld [vmem:[#allocation26] sm:$0xff]
    %v1241 = vld [vmem:[#allocation26 + $0x8] sm:$0xff]
    %v1242 = vld [vmem:[#allocation26 + $0x10] sm:$0xff]
    %v1243 = vld [vmem:[#allocation26 + $0x18] sm:$0xff]
    %v1244 = vld [vmem:[#allocation26 + $0x20] sm:$0xff]
    %v1245 = vld [vmem:[#allocation26 + $0x28] sm:$0xff]
    %v1246 = vld [vmem:[#allocation26 + $0x30] sm:$0xff]
    %v1247 = vld [vmem:[#allocation26 + $0x38] sm:$0xff]
    %v1248 = vld [vmem:[#allocation26 + $0x40] sm:$0xff]
    %v1249 = vld [vmem:[#allocation26 + $0x48] sm:$0xff]
    %v1250 = vld [vmem:[#allocation26 + $0x50] sm:$0xff]
    %v1251 = vld [vmem:[#allocation26 + $0x58] sm:$0xff]
    %v1252 = vld [vmem:[#allocation26 + $0x60] sm:$0xff]
    %v1253 = vld [vmem:[#allocation26 + $0x68] sm:$0xff]
    %v1254 = vld [vmem:[#allocation26 + $0x70] sm:$0xff]
    %v1255 = vld [vmem:[#allocation26 + $0x78] sm:$0xff]
    %v1256 = vld [vmem:[#allocation28] sm:$0x1]
    %v1258 = vlaneseq
    %v1259 = vshrl.u32 %v1258, 7
    %v1260 = vsub.s32 0, %v1259
    %v1261 = vrot.slane %v1256, %v1260
    %1263 = vmatprep.subr.mxu0 0.0
    %1264 = vmatpush1.msra.mxu0 %v1240
    %1265 = vmatprep.subr.mxu0 0.0
    %1266 = vmatpush1.msra.mxu0 %v1241
    %1267 = vmatprep.subr.mxu0 0.0
    %1268 = vmatpush1.msra.mxu0 %v1242
    %1269 = vmatprep.subr.mxu0 0.0
    %1270 = vmatpush1.msra.mxu0 %v1243
    %1271 = vmatprep.subr.mxu0 0.0
    %1272 = vmatpush1.msra.mxu0 %v1244
    %1273 = vmatprep.subr.mxu0 0.0
    %1274 = vmatpush1.msra.mxu0 %v1245
    %1275 = vmatprep.subr.mxu0 0.0
    %1276 = vmatpush1.msra.mxu0 %v1246
    %1277 = vmatprep.subr.mxu0 0.0
    %1278 = vmatpush1.msra.mxu0 %v1247
    %1279 = vmatprep.subr.mxu0 0.0
    %1280 = vmatpush1.msra.mxu0 %v1248
    %1281 = vmatprep.subr.mxu0 0.0
    %1282 = vmatpush1.msra.mxu0 %v1249
    %1283 = vmatprep.subr.mxu0 0.0
    %1284 = vmatpush1.msra.mxu0 %v1250
    %1285 = vmatprep.subr.mxu0 0.0
    %1286 = vmatpush1.msra.mxu0 %v1251
    %1287 = vmatprep.subr.mxu0 0.0
    %1288 = vmatpush1.msra.mxu0 %v1252
    %1289 = vmatprep.subr.mxu0 0.0
    %1290 = vmatpush1.msra.mxu0 %v1253
    %1291 = vmatprep.subr.mxu0 0.0
    %1292 = vmatpush1.msra.mxu0 %v1254
    %1293 = vmatprep.subr.mxu0 0.0
    %1294 = vmatpush1.msra.mxu0 %v1255
    %1295 = vmatprep.subr.mxu0 0.0
    %1296 = vmatpush1.msra.mxu0 0.0
    %1297 = vmatprep.subr.mxu0 0.0
    %1298 = vmatpush1.msra.mxu0 0.0
    %1299 = vmatprep.subr.mxu0 0.0
    %1300 = vmatpush1.msra.mxu0 0.0
    %1301 = vmatprep.subr.mxu0 0.0
    %1302 = vmatpush1.msra.mxu0 0.0
    %1303 = vmatprep.subr.mxu0 0.0
    %1304 = vmatpush1.msra.mxu0 0.0
    %1305 = vmatprep.subr.mxu0 0.0
    %1306 = vmatpush1.msra.mxu0 0.0
    %1307 = vmatprep.subr.mxu0 0.0
    %1308 = vmatpush1.msra.mxu0 0.0
    %1309 = vmatprep.subr.mxu0 0.0
    %1310 = vmatpush1.msra.mxu0 0.0
    %1311 = vmatprep.subr.mxu0 0.0
    %1312 = vmatpush1.msra.mxu0 0.0
    %1313 = vmatprep.subr.mxu0 0.0
    %1314 = vmatpush1.msra.mxu0 0.0
    %1315 = vmatprep.subr.mxu0 0.0
    %1316 = vmatpush1.msra.mxu0 0.0
    %1317 = vmatprep.subr.mxu0 0.0
    %1318 = vmatpush1.msra.mxu0 0.0
    %1319 = vmatprep.subr.mxu0 0.0
    %1320 = vmatpush1.msra.mxu0 0.0
    %1321 = vmatprep.subr.mxu0 0.0
    %1322 = vmatpush1.msra.mxu0 0.0
    %1323 = vmatprep.subr.mxu0 0.0
    %1324 = vmatpush1.msra.mxu0 0.0
    %1325 = vmatprep.subr.mxu0 0.0
    %1326 = vmatpush1.msra.mxu0 0.0
    %1327 = vmatprep.mubr.f32.mxu0 0.0
    %1328 = vmatmul.mubr.f32.gmra.mrb[0].mxu0 %v1239
    %v1329 = vpop.f32.mrb[0].mxu0
    %v1330 = vadd.f32 %v1261, %v1329
    %v1331 = vpop.f32.mrb[0].mxu0
    %1332 = vdwg.mxu0
    %v1333 = vld [vmem:[#allocation29] sm:$0x1]
    %v1334 = vld [vmem:[#allocation31] sm:$0x1]
    %1335 = vadd.xlane.f32.xlu0 %v1330
    %v1336 = vpop.xlane.xlu0 %1335
    %v1337 = vmul.f32 %v1336, 0.015625
    %v1338 = vmul.f32 %v1330, %v1330
    %1339 = vadd.xlane.f32.xlu0 %v1338
    %v1340 = vpop.xlane.xlu0 %1339
    %v1341 = vmul.f32 %v1340, 0.015625
    %v1342 = vmul.f32 %v1337, %v1337
    %v1343 = vsub.f32 %v1341, %v1342
    %v1344 = vmax.f32 %v1343, 0.0
    %v1345 = vsub.f32 %v1330, %v1337
    %v1346 = vadd.f32 %v1344, 1e-05
    %v1347 = vrsqrt.pop %v1346
    %v1348 = vmul.f32 %v1345, %v1347
    %v1350 = vlaneseq
    %v1351 = vshrl.u32 %v1350, 7
    %v1352 = vsub.s32 0, %v1351
    %v1353 = vrot.slane %v1333, %v1352
    %v1355 = vmul.f32 %v1348, %v1353
    %v1357 = vlaneseq
    %v1358 = vshrl.u32 %v1357, 7
    %v1359 = vsub.s32 0, %v1358
    %v1360 = vrot.slane %v1334, %v1359
    %v1362 = vadd.f32 %v1355, %v1360
    %vm1363 = vcmp.ge.f32.partialorder %v1362, 0.0
    %v1364 = vmul.f32 %v1362, 0.2
    %v1365 = vsel %vm1363, %v1362, %v1364
    %v1366 = vld [vmem:[#allocation32] sm:$0xff]
    %v1367 = vld [vmem:[#allocation32 + $0x8] sm:$0xff]
    %v1368 = vld [vmem:[#allocation32 + $0x10] sm:$0xff]
    %v1369 = vld [vmem:[#allocation32 + $0x18] sm:$0xff]
    %v1370 = vld [vmem:[#allocation32 + $0x20] sm:$0xff]
    %v1371 = vld [vmem:[#allocation32 + $0x28] sm:$0xff]
    %v1372 = vld [vmem:[#allocation32 + $0x30] sm:$0xff]
    %v1373 = vld [vmem:[#allocation32 + $0x38] sm:$0xff]
    %v1374 = vld [vmem:[#allocation32 + $0x40] sm:$0xff]
    %v1375 = vld [vmem:[#allocation32 + $0x48] sm:$0xff]
    %v1376 = vld [vmem:[#allocation32 + $0x50] sm:$0xff]
    %v1377 = vld [vmem:[#allocation32 + $0x58] sm:$0xff]
    %v1378 = vld [vmem:[#allocation32 + $0x60] sm:$0xff]
    %v1379 = vld [vmem:[#allocation32 + $0x68] sm:$0xff]
    %v1380 = vld [vmem:[#allocation32 + $0x70] sm:$0xff]
    %v1381 = vld [vmem:[#allocation32 + $0x78] sm:$0xff]
    %v1382 = vld [vmem:[#allocation34] sm:$0x1]
    %v1384 = vlaneseq
    %v1385 = vshrl.u32 %v1384, 7
    %v1386 = vsub.s32 0, %v1385
    %v1387 = vrot.slane %v1382, %v1386
    %1389 = vmatprep.subr.mxu0 0.0
    %1390 = vmatpush1.msra.mxu0 %v1366
    %1391 = vmatprep.subr.mxu0 0.0
    %1392 = vmatpush1.msra.mxu0 %v1367
    %1393 = vmatprep.subr.mxu0 0.0
    %1394 = vmatpush1.msra.mxu0 %v1368
    %1395 = vmatprep.subr.mxu0 0.0
    %1396 = vmatpush1.msra.mxu0 %v1369
    %1397 = vmatprep.subr.mxu0 0.0
    %1398 = vmatpush1.msra.mxu0 %v1370
    %1399 = vmatprep.subr.mxu0 0.0
    %1400 = vmatpush1.msra.mxu0 %v1371
    %1401 = vmatprep.subr.mxu0 0.0
    %1402 = vmatpush1.msra.mxu0 %v1372
    %1403 = vmatprep.subr.mxu0 0.0
    %1404 = vmatpush1.msra.mxu0 %v1373
    %1405 = vmatprep.subr.mxu0 0.0
    %1406 = vmatpush1.msra.mxu0 %v1374
    %1407 = vmatprep.subr.mxu0 0.0
    %1408 = vmatpush1.msra.mxu0 %v1375
    %1409 = vmatprep.subr.mxu0 0.0
    %1410 = vmatpush1.msra.mxu0 %v1376
    %1411 = vmatprep.subr.mxu0 0.0
    %1412 = vmatpush1.msra.mxu0 %v1377
    %1413 = vmatprep.subr.mxu0 0.0
    %1414 = vmatpush1.msra.mxu0 %v1378
    %1415 = vmatprep.subr.mxu0 0.0
    %1416 = vmatpush1.msra.mxu0 %v1379
    %1417 = vmatprep.subr.mxu0 0.0
    %1418 = vmatpush1.msra.mxu0 %v1380
    %1419 = vmatprep.subr.mxu0 0.0
    %1420 = vmatpush1.msra.mxu0 %v1381
    %1421 = vmatprep.subr.mxu0 0.0
    %1422 = vmatpush1.msra.mxu0 0.0
    %1423 = vmatprep.subr.mxu0 0.0
    %1424 = vmatpush1.msra.mxu0 0.0
    %1425 = vmatprep.subr.mxu0 0.0
    %1426 = vmatpush1.msra.mxu0 0.0
    %1427 = vmatprep.subr.mxu0 0.0
    %1428 = vmatpush1.msra.mxu0 0.0
    %1429 = vmatprep.subr.mxu0 0.0
    %1430 = vmatpush1.msra.mxu0 0.0
    %1431 = vmatprep.subr.mxu0 0.0
    %1432 = vmatpush1.msra.mxu0 0.0
    %1433 = vmatprep.subr.mxu0 0.0
    %1434 = vmatpush1.msra.mxu0 0.0
    %1435 = vmatprep.subr.mxu0 0.0
    %1436 = vmatpush1.msra.mxu0 0.0
    %1437 = vmatprep.subr.mxu0 0.0
    %1438 = vmatpush1.msra.mxu0 0.0
    %1439 = vmatprep.subr.mxu0 0.0
    %1440 = vmatpush1.msra.mxu0 0.0
    %1441 = vmatprep.subr.mxu0 0.0
    %1442 = vmatpush1.msra.mxu0 0.0
    %1443 = vmatprep.subr.mxu0 0.0
    %1444 = vmatpush1.msra.mxu0 0.0
    %1445 = vmatprep.subr.mxu0 0.0
    %1446 = vmatpush1.msra.mxu0 0.0
    %1447 = vmatprep.subr.mxu0 0.0
    %1448 = vmatpush1.msra.mxu0 0.0
    %1449 = vmatprep.subr.mxu0 0.0
    %1450 = vmatpush1.msra.mxu0 0.0
    %1451 = vmatprep.subr.mxu0 0.0
    %1452 = vmatpush1.msra.mxu0 0.0
    %1453 = vmatprep.mubr.f32.mxu0 0.0
    %1454 = vmatmul.mubr.f32.gmra.mrb[0].mxu0 %v1365
    %v1455 = vpop.f32.mrb[0].mxu0
    %v1456 = vadd.f32 %v1387, %v1455
    %v1457 = vpop.f32.mrb[0].mxu0
    %1458 = vdwg.mxu0
    %v1459 = vld [vmem:[#allocation35] sm:$0x1]
    %v1460 = vld [vmem:[#allocation37] sm:$0x1]
    %1461 = vadd.xlane.f32.xlu0 %v1456
    %v1462 = vpop.xlane.xlu0 %1461
    %v1463 = vmul.f32 %v1462, 0.015625
    %v1464 = vmul.f32 %v1456, %v1456
    %1465 = vadd.xlane.f32.xlu0 %v1464
    %v1466 = vpop.xlane.xlu0 %1465
    %v1467 = vmul.f32 %v1466, 0.015625
    %v1468 = vmul.f32 %v1463, %v1463
    %v1469 = vsub.f32 %v1467, %v1468
    %v1470 = vmax.f32 %v1469, 0.0
    %v1471 = vsub.f32 %v1456, %v1463
    %v1472 = vadd.f32 %v1470, 1e-05
    %v1473 = vrsqrt.pop %v1472
    %v1474 = vmul.f32 %v1471, %v1473
    %v1476 = vlaneseq
    %v1477 = vshrl.u32 %v1476, 7
    %v1478 = vsub.s32 0, %v1477
    %v1479 = vrot.slane %v1459, %v1478
    %v1481 = vmul.f32 %v1474, %v1479
    %v1483 = vlaneseq
    %v1484 = vshrl.u32 %v1483, 7
    %v1485 = vsub.s32 0, %v1484
    %v1486 = vrot.slane %v1460, %v1485
    %v1488 = vadd.f32 %v1481, %v1486
    %vm1489 = vcmp.ge.f32.partialorder %v1488, 0.0
    %v1490 = vmul.f32 %v1488, 0.2
    %v1491 = vsel %vm1489, %v1488, %v1490
    %v1492 = vld [vmem:[#allocation38] sm:$0xff]
    %v1493 = vld [vmem:[#allocation38 + $0x8] sm:$0xff]
    %v1494 = vld [vmem:[#allocation38 + $0x10] sm:$0xff]
    %v1495 = vld [vmem:[#allocation38 + $0x18] sm:$0xff]
    %v1496 = vld [vmem:[#allocation38 + $0x20] sm:$0xff]
    %v1497 = vld [vmem:[#allocation38 + $0x28] sm:$0xff]
    %v1498 = vld [vmem:[#allocation38 + $0x30] sm:$0xff]
    %v1499 = vld [vmem:[#allocation38 + $0x38] sm:$0xff]
    %v1500 = vld [vmem:[#allocation38 + $0x40] sm:$0xff]
    %v1501 = vld [vmem:[#allocation38 + $0x48] sm:$0xff]
    %v1502 = vld [vmem:[#allocation38 + $0x50] sm:$0xff]
    %v1503 = vld [vmem:[#allocation38 + $0x58] sm:$0xff]
    %v1504 = vld [vmem:[#allocation38 + $0x60] sm:$0xff]
    %v1505 = vld [vmem:[#allocation38 + $0x68] sm:$0xff]
    %v1506 = vld [vmem:[#allocation38 + $0x70] sm:$0xff]
    %v1507 = vld [vmem:[#allocation38 + $0x78] sm:$0xff]
    %v1508 = vld [vmem:[#allocation40] sm:$0x1]
    %v1510 = vlaneseq
    %v1511 = vshrl.u32 %v1510, 7
    %v1512 = vsub.s32 0, %v1511
    %v1513 = vrot.slane %v1508, %v1512
    %1515 = vmatprep.subr.mxu0 0.0
    %1516 = vmatpush1.msra.mxu0 %v1492
    %1517 = vmatprep.subr.mxu0 0.0
    %1518 = vmatpush1.msra.mxu0 %v1493
    %1519 = vmatprep.subr.mxu0 0.0
    %1520 = vmatpush1.msra.mxu0 %v1494
    %1521 = vmatprep.subr.mxu0 0.0
    %1522 = vmatpush1.msra.mxu0 %v1495
    %1523 = vmatprep.subr.mxu0 0.0
    %1524 = vmatpush1.msra.mxu0 %v1496
    %1525 = vmatprep.subr.mxu0 0.0
    %1526 = vmatpush1.msra.mxu0 %v1497
    %1527 = vmatprep.subr.mxu0 0.0
    %1528 = vmatpush1.msra.mxu0 %v1498
    %1529 = vmatprep.subr.mxu0 0.0
    %1530 = vmatpush1.msra.mxu0 %v1499
    %1531 = vmatprep.subr.mxu0 0.0
    %1532 = vmatpush1.msra.mxu0 %v1500
    %1533 = vmatprep.subr.mxu0 0.0
    %1534 = vmatpush1.msra.mxu0 %v1501
    %1535 = vmatprep.subr.mxu0 0.0
    %1536 = vmatpush1.msra.mxu0 %v1502
    %1537 = vmatprep.subr.mxu0 0.0
    %1538 = vmatpush1.msra.mxu0 %v1503
    %1539 = vmatprep.subr.mxu0 0.0
    %1540 = vmatpush1.msra.mxu0 %v1504
    %1541 = vmatprep.subr.mxu0 0.0
    %1542 = vmatpush1.msra.mxu0 %v1505
    %1543 = vmatprep.subr.mxu0 0.0
    %1544 = vmatpush1.msra.mxu0 %v1506
    %1545 = vmatprep.subr.mxu0 0.0
    %1546 = vmatpush1.msra.mxu0 %v1507
    %1547 = vmatprep.subr.mxu0 0.0
    %1548 = vmatpush1.msra.mxu0 0.0
    %1549 = vmatprep.subr.mxu0 0.0
    %1550 = vmatpush1.msra.mxu0 0.0
    %1551 = vmatprep.subr.mxu0 0.0
    %1552 = vmatpush1.msra.mxu0 0.0
    %1553 = vmatprep.subr.mxu0 0.0
    %1554 = vmatpush1.msra.mxu0 0.0
    %1555 = vmatprep.subr.mxu0 0.0
    %1556 = vmatpush1.msra.mxu0 0.0
    %1557 = vmatprep.subr.mxu0 0.0
    %1558 = vmatpush1.msra.mxu0 0.0
    %1559 = vmatprep.subr.mxu0 0.0
    %1560 = vmatpush1.msra.mxu0 0.0
    %1561 = vmatprep.subr.mxu0 0.0
    %1562 = vmatpush1.msra.mxu0 0.0
    %1563 = vmatprep.subr.mxu0 0.0
    %1564 = vmatpush1.msra.mxu0 0.0
    %1565 = vmatprep.subr.mxu0 0.0
    %1566 = vmatpush1.msra.mxu0 0.0
    %1567 = vmatprep.subr.mxu0 0.0
    %1568 = vmatpush1.msra.mxu0 0.0
    %1569 = vmatprep.subr.mxu0 0.0
    %1570 = vmatpush1.msra.mxu0 0.0
    %1571 = vmatprep.subr.mxu0 0.0
    %1572 = vmatpush1.msra.mxu0 0.0
    %1573 = vmatprep.subr.mxu0 0.0
    %1574 = vmatpush1.msra.mxu0 0.0
    %1575 = vmatprep.subr.mxu0 0.0
    %1576 = vmatpush1.msra.mxu0 0.0
    %1577 = vmatprep.subr.mxu0 0.0
    %1578 = vmatpush1.msra.mxu0 0.0
    %1579 = vmatprep.mubr.f32.mxu0 0.0
    %1580 = vmatmul.mubr.f32.gmra.mrb[0].mxu0 %v1491
    %v1581 = vpop.f32.mrb[0].mxu0
    %v1582 = vadd.f32 %v1513, %v1581
    %v1583 = vpop.f32.mrb[0].mxu0
    %1584 = vdwg.mxu0
    %v1585 = vld [vmem:[#allocation41] sm:$0x1]
    %v1587 = vlaneseq
    %v1588 = vshrl.u32 %v1587, 7
    %v1589 = vsub.s32 0, %v1588
    %v1590 = vrot.slane %v1585, %v1589
    %v1592 = vmul.f32 %v1582, %v1590
    %v1593 = vadd.f32 %v1365, %v1592
    %v1594 = vld [vmem:[#allocation43] sm:$0x1]
    %v1596 = vlaneseq
    %v1597 = vshrl.u32 %v1596, 7
    %v1598 = vsub.s32 0, %v1597
    %v1599 = vrot.slane %v1594, %v1598
    %v1601 = vadd.f32 %v1593, %v1599
    %s1602 = scalar_lea.vmem [#allocation32], 128
    %v1603 = vld [vmem:[%s1602] sm:$0xff]
    %v1604 = vld [vmem:[%s1602 + $0x8] sm:$0xff]
    %v1605 = vld [vmem:[%s1602 + $0x10] sm:$0xff]
    %v1606 = vld [vmem:[%s1602 + $0x18] sm:$0xff]
    %v1607 = vld [vmem:[%s1602 + $0x20] sm:$0xff]
    %v1608 = vld [vmem:[%s1602 + $0x28] sm:$0xff]
    %v1609 = vld [vmem:[%s1602 + $0x30] sm:$0xff]
    %v1610 = vld [vmem:[%s1602 + $0x38] sm:$0xff]
    %v1611 = vld [vmem:[%s1602 + $0x40] sm:$0xff]
    %v1612 = vld [vmem:[%s1602 + $0x48] sm:$0xff]
    %v1613 = vld [vmem:[%s1602 + $0x50] sm:$0xff]
    %v1614 = vld [vmem:[%s1602 + $0x58] sm:$0xff]
    %v1615 = vld [vmem:[%s1602 + $0x60] sm:$0xff]
    %v1616 = vld [vmem:[%s1602 + $0x68] sm:$0xff]
    %v1617 = vld [vmem:[%s1602 + $0x70] sm:$0xff]
    %v1618 = vld [vmem:[%s1602 + $0x78] sm:$0xff]
    %s1619 = scalar_lea.vmem [#allocation34], 1
    %v1620 = vld [vmem:[%s1619] sm:$0x1]
    %v1622 = vlaneseq
    %v1623 = vshrl.u32 %v1622, 7
    %v1624 = vsub.s32 0, %v1623
    %v1625 = vrot.slane %v1620, %v1624
    %1627 = vmatprep.subr.mxu0 0.0
    %1628 = vmatpush1.msra.mxu0 %v1603
    %1629 = vmatprep.subr.mxu0 0.0
    %1630 = vmatpush1.msra.mxu0 %v1604
    %1631 = vmatprep.subr.mxu0 0.0
    %1632 = vmatpush1.msra.mxu0 %v1605
    %1633 = vmatprep.subr.mxu0 0.0
    %1634 = vmatpush1.msra.mxu0 %v1606
    %1635 = vmatprep.subr.mxu0 0.0
    %1636 = vmatpush1.msra.mxu0 %v1607
    %1637 = vmatprep.subr.mxu0 0.0
    %1638 = vmatpush1.msra.mxu0 %v1608
    %1639 = vmatprep.subr.mxu0 0.0
    %1640 = vmatpush1.msra.mxu0 %v1609
    %1641 = vmatprep.subr.mxu0 0.0
    %1642 = vmatpush1.msra.mxu0 %v1610
    %1643 = vmatprep.subr.mxu0 0.0
    %1644 = vmatpush1.msra.mxu0 %v1611
    %1645 = vmatprep.subr.mxu0 0.0
    %1646 = vmatpush1.msra.mxu0 %v1612
    %1647 = vmatprep.subr.mxu0 0.0
    %1648 = vmatpush1.msra.mxu0 %v1613
    %1649 = vmatprep.subr.mxu0 0.0
    %1650 = vmatpush1.msra.mxu0 %v1614
    %1651 = vmatprep.subr.mxu0 0.0
    %1652 = vmatpush1.msra.mxu0 %v1615
    %1653 = vmatprep.subr.mxu0 0.0
    %1654 = vmatpush1.msra.mxu0 %v1616
    %1655 = vmatprep.subr.mxu0 0.0
    %1656 = vmatpush1.msra.mxu0 %v1617
    %1657 = vmatprep.subr.mxu0 0.0
    %1658 = vmatpush1.msra.mxu0 %v1618
    %1659 = vmatprep.subr.mxu0 0.0
    %1660 = vmatpush1.msra.mxu0 0.0
    %1661 = vmatprep.subr.mxu0 0.0
    %1662 = vmatpush1.msra.mxu0 0.0
    %1663 = vmatprep.subr.mxu0 0.0
    %1664 = vmatpush1.msra.mxu0 0.0
    %1665 = vmatprep.subr.mxu0 0.0
    %1666 = vmatpush1.msra.mxu0 0.0
    %1667 = vmatprep.subr.mxu0 0.0
    %1668 = vmatpush1.msra.mxu0 0.0
    %1669 = vmatprep.subr.mxu0 0.0
    %1670 = vmatpush1.msra.mxu0 0.0
    %1671 = vmatprep.subr.mxu0 0.0
    %1672 = vmatpush1.msra.mxu0 0.0
    %1673 = vmatprep.subr.mxu0 0.0
    %1674 = vmatpush1.msra.mxu0 0.0
    %1675 = vmatprep.subr.mxu0 0.0
    %1676 = vmatpush1.msra.mxu0 0.0
    %1677 = vmatprep.subr.mxu0 0.0
    %1678 = vmatpush1.msra.mxu0 0.0
    %1679 = vmatprep.subr.mxu0 0.0
    %1680 = vmatpush1.msra.mxu0 0.0
    %1681 = vmatprep.subr.mxu0 0.0
    %1682 = vmatpush1.msra.mxu0 0.0
    %1683 = vmatprep.subr.mxu0 0.0
    %1684 = vmatpush1.msra.mxu0 0.0
    %1685 = vmatprep.subr.mxu0 0.0
    %1686 = vmatpush1.msra.mxu0 0.0
    %1687 = vmatprep.subr.mxu0 0.0
    %1688 = vmatpush1.msra.mxu0 0.0
    %1689 = vmatprep.subr.mxu0 0.0
    %1690 = vmatpush1.msra.mxu0 0.0
    %1691 = vmatprep.mubr.f32.mxu0 0.0
    %1692 = vmatmul.mubr.f32.gmra.mrb[0].mxu0 %v1601
    %v1693 = vpop.f32.mrb[0].mxu0
    %v1694 = vadd.f32 %v1625, %v1693
    %v1695 = vpop.f32.mrb[0].mxu0
    %1696 = vdwg.mxu0
    %s1697 = scalar_lea.vmem [#allocation35], 1
    %v1698 = vld [vmem:[%s1697] sm:$0x1]
    %s1699 = scalar_lea.vmem [#allocation37], 1
    %v1700 = vld [vmem:[%s1699] sm:$0x1]
    %1701 = vadd.xlane.f32.xlu0 %v1694
    %v1702 = vpop.xlane.xlu0 %1701
    %v1703 = vmul.f32 %v1702, 0.015625
    %v1704 = vmul.f32 %v1694, %v1694
    %1705 = vadd.xlane.f32.xlu0 %v1704
    %v1706 = vpop.xlane.xlu0 %1705
    %v1707 = vmul.f32 %v1706, 0.015625
    %v1708 = vmul.f32 %v1703, %v1703
    %v1709 = vsub.f32 %v1707, %v1708
    %v1710 = vmax.f32 %v1709, 0.0
    %v1711 = vsub.f32 %v1694, %v1703
    %v1712 = vadd.f32 %v1710, 1e-05
    %v1713 = vrsqrt.pop %v1712
    %v1714 = vmul.f32 %v1711, %v1713
    %v1716 = vlaneseq
    %v1717 = vshrl.u32 %v1716, 7
    %v1718 = vsub.s32 0, %v1717
    %v1719 = vrot.slane %v1698, %v1718
    %v1721 = vmul.f32 %v1714, %v1719
    %v1723 = vlaneseq
    %v1724 = vshrl.u32 %v1723, 7
    %v1725 = vsub.s32 0, %v1724
    %v1726 = vrot.slane %v1700, %v1725
    %v1728 = vadd.f32 %v1721, %v1726
    %vm1729 = vcmp.ge.f32.partialorder %v1728, 0.0
    %v1730 = vmul.f32 %v1728, 0.2
    %v1731 = vsel %vm1729, %v1728, %v1730
    %s1732 = scalar_lea.vmem [#allocation38], 128
    %v1733 = vld [vmem:[%s1732] sm:$0xff]
    %v1734 = vld [vmem:[%s1732 + $0x8] sm:$0xff]
    %v1735 = vld [vmem:[%s1732 + $0x10] sm:$0xff]
    %v1736 = vld [vmem:[%s1732 + $0x18] sm:$0xff]
    %v1737 = vld [vmem:[%s1732 + $0x20] sm:$0xff]
    %v1738 = vld [vmem:[%s1732 + $0x28] sm:$0xff]
    %v1739 = vld [vmem:[%s1732 + $0x30] sm:$0xff]
    %v1740 = vld [vmem:[%s1732 + $0x38] sm:$0xff]
    %v1741 = vld [vmem:[%s1732 + $0x40] sm:$0xff]
    %v1742 = vld [vmem:[%s1732 + $0x48] sm:$0xff]
    %v1743 = vld [vmem:[%s1732 + $0x50] sm:$0xff]
    %v1744 = vld [vmem:[%s1732 + $0x58] sm:$0xff]
    %v1745 = vld [vmem:[%s1732 + $0x60] sm:$0xff]
    %v1746 = vld [vmem:[%s1732 + $0x68] sm:$0xff]
    %v1747 = vld [vmem:[%s1732 + $0x70] sm:$0xff]
    %v1748 = vld [vmem:[%s1732 + $0x78] sm:$0xff]
    %s1749 = scalar_lea.vmem [#allocation40], 1
    %v1750 = vld [vmem:[%s1749] sm:$0x1]
    %v1752 = vlaneseq
    %v1753 = vshrl.u32 %v1752, 7
    %v1754 = vsub.s32 0, %v1753
    %v1755 = vrot.slane %v1750, %v1754
    %1757 = vmatprep.subr.mxu0 0.0
    %1758 = vmatpush1.msra.mxu0 %v1733
    %1759 = vmatprep.subr.mxu0 0.0
    %1760 = vmatpush1.msra.mxu0 %v1734
    %1761 = vmatprep.subr.mxu0 0.0
    %1762 = vmatpush1.msra.mxu0 %v1735
    %1763 = vmatprep.subr.mxu0 0.0
    %1764 = vmatpush1.msra.mxu0 %v1736
    %1765 = vmatprep.subr.mxu0 0.0
    %1766 = vmatpush1.msra.mxu0 %v1737
    %1767 = vmatprep.subr.mxu0 0.0
    %1768 = vmatpush1.msra.mxu0 %v1738
    %1769 = vmatprep.subr.mxu0 0.0
    %1770 = vmatpush1.msra.mxu0 %v1739
    %1771 = vmatprep.subr.mxu0 0.0
    %1772 = vmatpush1.msra.mxu0 %v1740
    %1773 = vmatprep.subr.mxu0 0.0
    %1774 = vmatpush1.msra.mxu0 %v1741
    %1775 = vmatprep.subr.mxu0 0.0
    %1776 = vmatpush1.msra.mxu0 %v1742
    %1777 = vmatprep.subr.mxu0 0.0
    %1778 = vmatpush1.msra.mxu0 %v1743
    %1779 = vmatprep.subr.mxu0 0.0
    %1780 = vmatpush1.msra.mxu0 %v1744
    %1781 = vmatprep.subr.mxu0 0.0
    %1782 = vmatpush1.msra.mxu0 %v1745
    %1783 = vmatprep.subr.mxu0 0.0
    %1784 = vmatpush1.msra.mxu0 %v1746
    %1785 = vmatprep.subr.mxu0 0.0
    %1786 = vmatpush1.msra.mxu0 %v1747
    %1787 = vmatprep.subr.mxu0 0.0
    %1788 = vmatpush1.msra.mxu0 %v1748
    %1789 = vmatprep.subr.mxu0 0.0
    %1790 = vmatpush1.msra.mxu0 0.0
    %1791 = vmatprep.subr.mxu0 0.0
    %1792 = vmatpush1.msra.mxu0 0.0
    %1793 = vmatprep.subr.mxu0 0.0
    %1794 = vmatpush1.msra.mxu0 0.0
    %1795 = vmatprep.subr.mxu0 0.0
    %1796 = vmatpush1.msra.mxu0 0.0
    %1797 = vmatprep.subr.mxu0 0.0
    %1798 = vmatpush1.msra.mxu0 0.0
    %1799 = vmatprep.subr.mxu0 0.0
    %1800 = vmatpush1.msra.mxu0 0.0
    %1801 = vmatprep.subr.mxu0 0.0
    %1802 = vmatpush1.msra.mxu0 0.0
    %1803 = vmatprep.subr.mxu0 0.0
    %1804 = vmatpush1.msra.mxu0 0.0
    %1805 = vmatprep.subr.mxu0 0.0
    %1806 = vmatpush1.msra.mxu0 0.0
    %1807 = vmatprep.subr.mxu0 0.0
    %1808 = vmatpush1.msra.mxu0 0.0
    %1809 = vmatprep.subr.mxu0 0.0
    %1810 = vmatpush1.msra.mxu0 0.0
    %1811 = vmatprep.subr.mxu0 0.0
    %1812 = vmatpush1.msra.mxu0 0.0
    %1813 = vmatprep.subr.mxu0 0.0
    %1814 = vmatpush1.msra.mxu0 0.0
    %1815 = vmatprep.subr.mxu0 0.0
    %1816 = vmatpush1.msra.mxu0 0.0
    %1817 = vmatprep.subr.mxu0 0.0
    %1818 = vmatpush1.msra.mxu0 0.0
    %1819 = vmatprep.subr.mxu0 0.0
    %1820 = vmatpush1.msra.mxu0 0.0
    %1821 = vmatprep.mubr.f32.mxu0 0.0
    %1822 = vmatmul.mubr.f32.gmra.mrb[0].mxu0 %v1731
    %v1823 = vpop.f32.mrb[0].mxu0
    %v1824 = vadd.f32 %v1755, %v1823
    %v1825 = vpop.f32.mrb[0].mxu0
    %1826 = vdwg.mxu0
    %s1827 = scalar_lea.vmem [#allocation41], 1
    %v1828 = vld [vmem:[%s1827] sm:$0x1]
    %v1830 = vlaneseq
    %v1831 = vshrl.u32 %v1830, 7
    %v1832 = vsub.s32 0, %v1831
    %v1833 = vrot.slane %v1828, %v1832
    %v1835 = vmul.f32 %v1824, %v1833
    %v1836 = vadd.f32 %v1601, %v1835
    %s1837 = scalar_lea.vmem [#allocation43], 1
    %v1838 = vld [vmem:[%s1837] sm:$0x1]
    %v1840 = vlaneseq
    %v1841 = vshrl.u32 %v1840, 7
    %v1842 = vsub.s32 0, %v1841
    %v1843 = vrot.slane %v1838, %v1842
    %v1845 = vadd.f32 %v1836, %v1843
    %v1846 = vld [vmem:[%s59] sm:$0xff]
    %v1847 = vld [vmem:[%s59 + $0x8] sm:$0xff]
    %v1848 = vld [vmem:[%s59 + $0x10] sm:$0xff]
    %v1849 = vld [vmem:[%s59 + $0x18] sm:$0xff]
    %v1850 = vld [vmem:[%s59 + $0x20] sm:$0xff]
    %v1851 = vld [vmem:[%s59 + $0x28] sm:$0xff]
    %v1852 = vld [vmem:[%s59 + $0x30] sm:$0xff]
    %v1853 = vld [vmem:[%s59 + $0x38] sm:$0xff]
    %v1854 = vld [vmem:[%s59 + $0x40] sm:$0xff]
    %v1855 = vld [vmem:[%s59 + $0x48] sm:$0xff]
    %v1856 = vld [vmem:[%s59 + $0x50] sm:$0xff]
    %v1857 = vld [vmem:[%s59 + $0x58] sm:$0xff]
    %v1858 = vld [vmem:[%s59 + $0x60] sm:$0xff]
    %v1859 = vld [vmem:[%s59 + $0x68] sm:$0xff]
    %v1860 = vld [vmem:[%s59 + $0x70] sm:$0xff]
    %v1861 = vld [vmem:[%s59 + $0x78] sm:$0xff]
    %v1862 = vld [vmem:[#allocation44] sm:$0x1]
    %v1864 = vlaneseq
    %v1865 = vshrl.u32 %v1864, 7
    %v1866 = vsub.s32 0, %v1865
    %v1867 = vrot.slane %v1862, %v1866
    %1869 = vmatprep.subr.mxu0 0.0
    %1870 = vmatpush1.msra.mxu0 %v1846
    %1871 = vmatprep.subr.mxu0 0.0
    %1872 = vmatpush1.msra.mxu0 %v1847
    %1873 = vmatprep.subr.mxu0 0.0
    %1874 = vmatpush1.msra.mxu0 %v1848
    %1875 = vmatprep.subr.mxu0 0.0
    %1876 = vmatpush1.msra.mxu0 %v1849
    %1877 = vmatprep.subr.mxu0 0.0
    %1878 = vmatpush1.msra.mxu0 %v1850
    %1879 = vmatprep.subr.mxu0 0.0
    %1880 = vmatpush1.msra.mxu0 %v1851
    %1881 = vmatprep.subr.mxu0 0.0
    %1882 = vmatpush1.msra.mxu0 %v1852
    %1883 = vmatprep.subr.mxu0 0.0
    %1884 = vmatpush1.msra.mxu0 %v1853
    %1885 = vmatprep.subr.mxu0 0.0
    %1886 = vmatpush1.msra.mxu0 %v1854
    %1887 = vmatprep.subr.mxu0 0.0
    %1888 = vmatpush1.msra.mxu0 %v1855
    %1889 = vmatprep.subr.mxu0 0.0
    %1890 = vmatpush1.msra.mxu0 %v1856
    %1891 = vmatprep.subr.mxu0 0.0
    %1892 = vmatpush1.msra.mxu0 %v1857
    %1893 = vmatprep.subr.mxu0 0.0
    %1894 = vmatpush1.msra.mxu0 %v1858
    %1895 = vmatprep.subr.mxu0 0.0
    %1896 = vmatpush1.msra.mxu0 %v1859
    %1897 = vmatprep.subr.mxu0 0.0
    %1898 = vmatpush1.msra.mxu0 %v1860
    %1899 = vmatprep.subr.mxu0 0.0
    %1900 = vmatpush1.msra.mxu0 %v1861
    %1901 = vmatprep.subr.mxu0 0.0
    %1902 = vmatpush1.msra.mxu0 0.0
    %1903 = vmatprep.subr.mxu0 0.0
    %1904 = vmatpush1.msra.mxu0 0.0
    %1905 = vmatprep.subr.mxu0 0.0
    %1906 = vmatpush1.msra.mxu0 0.0
    %1907 = vmatprep.subr.mxu0 0.0
    %1908 = vmatpush1.msra.mxu0 0.0
    %1909 = vmatprep.subr.mxu0 0.0
    %1910 = vmatpush1.msra.mxu0 0.0
    %1911 = vmatprep.subr.mxu0 0.0
    %1912 = vmatpush1.msra.mxu0 0.0
    %1913 = vmatprep.subr.mxu0 0.0
    %1914 = vmatpush1.msra.mxu0 0.0
    %1915 = vmatprep.subr.mxu0 0.0
    %1916 = vmatpush1.msra.mxu0 0.0
    %1917 = vmatprep.subr.mxu0 0.0
    %1918 = vmatpush1.msra.mxu0 0.0
    %1919 = vmatprep.subr.mxu0 0.0
    %1920 = vmatpush1.msra.mxu0 0.0
    %1921 = vmatprep.subr.mxu0 0.0
    %1922 = vmatpush1.msra.mxu0 0.0
    %1923 = vmatprep.subr.mxu0 0.0
    %1924 = vmatpush1.msra.mxu0 0.0
    %1925 = vmatprep.subr.mxu0 0.0
    %1926 = vmatpush1.msra.mxu0 0.0
    %1927 = vmatprep.subr.mxu0 0.0
    %1928 = vmatpush1.msra.mxu0 0.0
    %1929 = vmatprep.subr.mxu0 0.0
    %1930 = vmatpush1.msra.mxu0 0.0
    %1931 = vmatprep.subr.mxu0 0.0
    %1932 = vmatpush1.msra.mxu0 0.0
    %1933 = vmatprep.mubr.f32.mxu0 0.0
    %1934 = vmatmul.mubr.f32.gmra.mrb[0].mxu0 %v1845
    %v1935 = vpop.f32.mrb[0].mxu0
    %v1936 = vadd.f32 %v1867, %v1935
    %v1937 = vpop.f32.mrb[0].mxu0
    %1938 = vdwg.mxu0
    %1939 = vst [vmem:[#allocation46] sm:$0xff] %v1936
    // Predicated region
    $region238: #{forward.1} parent=1 // pred_check
      _
    $region239: #{forward.1} parent=1 // pred_check_branch
      %1941 = sbr.rel (0) target = $region241
    $region240: #{forward.1} parent=1 // pred_region
      %s1943 = ssub.s32 128, 128
      %1944 = vsyncadd [#allocation4], %s1943
      %s1946 = sshll.u32 [#allocation46], 4
      %s1947 = int_to_ptr.vmem [resolvable:$true] %s1946
      %1949 = dma.vmem_to_hbm [thread:$0]  %s1947, 128, %s63, [#allocation4]
    $region241: #{forward.1} parent=1 // pred_fallthru
      _
    // Predicated region
    $region242: #{forward.1} parent=1 // pred_check
      _
    $region243: #{forward.1} parent=1 // pred_check_branch
      %1951 = sbr.rel (0) target = $region245
    $region244: #{forward.1} parent=1 // pred_region
      %1952 = dma.done [#allocation4], 128
    $region245: #{forward.1} parent=1 // pred_fallthru
      _
    %1953 = vsyncpa [#allocation3], 1
    %1954 = vsyncpa [#allocation6], 1
    %1955 = vsyncpa [#allocation9], 1
    %1956 = vsyncpa [#allocation12], 1
    %1957 = vsyncpa [#allocation15], 1
    %1958 = vsyncpa [#allocation18], 1
    %1959 = vsyncpa [#allocation21], 1
    %1960 = vsyncpa [#allocation24], 1
    %1961 = vsyncpa [#allocation27], 1
    %1962 = vsyncpa [#allocation30], 1
    %1963 = vsyncpa [#allocation33], 1
    %1964 = vsyncpa [#allocation36], 1
    %1965 = vsyncpa [#allocation39], 1
    %1966 = vsyncpa [#allocation42], 1
    %1967 = vsyncpa [#allocation45], 1
    %1968 = vsyncpa [#allocation4], 1

</llo_original>
